<compile_context>
chip_gen: v7x
topology: tpu7x:2x2x1
jax: 0.10.0
libtpu: 0.0.40
codegen_flags: <defaults>
</compile_context>

<pallas_src>
import functools

import jax
import jax.numpy as jnp
import numpy as np
from jax import lax
from jax.experimental import pallas as pl
from jax.experimental.pallas import tpu as pltpu


def _make_backbone_kernel(h, w):
    """Builds the fused two-stage (conv3x3 + folded-BN + ReLU) kernel."""
    hw = h * w

    def conv3x3(a_f32, w_ref, b_ref, yy, xx):
        # a_f32: (Cin, H*W)  f32   lane-dense activation
        # w_ref: (9, Cout, Cin) bf16  per-tap weights, BN scale folded in
        # b_ref: (Cout, 1)   f32   folded BN shift
        # yy/xx: (1, H*W)    int32 row / col index of each output pixel
        cout = w_ref.shape[1]
        acc = jnp.zeros((cout, hw), dtype=jnp.float32)
        for dy in range(3):
            for dx in range(3):
                oy, ox = dy - 1, dx - 1
                d = oy * w + ox                       # flat-index tap offset
                if d == 0:
                    shifted = a_f32
                else:
                    # shifted[p] = a[p + d]  (pltpu.roll == jnp.roll semantics)
                    shifted = pltpu.roll(a_f32, shift=(-d) % hw, axis=1)
                # SAME-padding halo: zero lanes whose source pixel is outside
                # the image (replaces the padded copy of the activation).
                conds = []
                if oy < 0:
                    conds.append(yy >= -oy)
                elif oy > 0:
                    conds.append(yy < h - oy)
                if ox < 0:
                    conds.append(xx >= -ox)
                elif ox > 0:
                    conds.append(xx < w - ox)
                if conds:
                    valid = conds[0]
                    for c in conds[1:]:
                        valid = valid & c
                    shifted = jnp.where(valid, shifted, 0.0)
                acc = acc + jnp.dot(w_ref[dy * 3 + dx],
                                    shifted.astype(jnp.bfloat16),
                                    preferred_element_type=jnp.float32)
        return jnp.maximum(acc + b_ref[...], 0.0)

    def kernel(coords_ref, x_ref, w1_ref, b1_ref, w2_ref, b2_ref,
               high_ref, low_ref):
        yy = coords_ref[0:1, :]                       # (1, H*W) int32
        xx = coords_ref[1:2, :]                       # (1, H*W) int32
        low_act = conv3x3(x_ref[0].astype(jnp.float32), w1_ref, b1_ref, yy, xx)
        low_ref[0] = low_act                          # lane-dense (C1, H*W)
        high_ref[0] = conv3x3(low_act, w2_ref, b2_ref, yy, xx)

    return kernel


def fold_bn(gamma, beta, mean, var, eps=1e-5):
    scale = gamma / jnp.sqrt(var + eps)
    shift = beta - mean * scale
    return scale, shift


def backbone_forward(x_nchw, params):
    """Pallas Backbone: returns (high_level, low_level), both NCHW (PyTorch)."""
    n, cin, h, w = x_nchw.shape
    c1 = params["w1"].shape[-1]
    c2 = params["w2"].shape[-1]
    hw = h * w

    s1, b1 = fold_bn(*params["bn1"])
    s2, b2 = fold_bn(*params["bn2"])

    # Fold BN scale into the conv weights and pre-transpose to (tap, Cout, Cin)
    # so the kernel result is already (Cout, H*W): no in-kernel transposes.
    w1t = jnp.transpose(params["w1"] * s1, (0, 1, 3, 2)).reshape(9, c1, cin)
    w2t = jnp.transpose(params["w2"] * s2, (0, 1, 3, 2)).reshape(9, c2, c1)
    w1t = w1t.astype(jnp.bfloat16)
    w2t = w2t.astype(jnp.bfloat16)
    b1r = b1.reshape(c1, 1).astype(jnp.float32)
    b2r = b2.reshape(c2, 1).astype(jnp.float32)

    # NCHW -> (N, C, H*W) is a free reshape; one bf16 cast halves input DMA.
    # No jnp.pad: the conv halo is handled in-kernel with lane masks.
    x_flat = x_nchw.reshape(n, cin, hw).astype(jnp.bfloat16)

    # Flat-pixel (row, col) coordinates for the in-kernel halo masks.
    pix = jnp.arange(hw, dtype=jnp.int32)
    coords = jnp.stack([pix // w, pix % w], axis=0)           # (2, H*W) int32

    flops = 2 * n * hw * 9 * (cin * c1 + c1 * c2)
    bytes_accessed = (coords.size * 4 + x_flat.size * 2
                      + w1t.size * 2 + w2t.size * 2
                      + (b1r.size + b2r.size) * 4
                      + n * hw * (c1 + c2) * 4)

    kernel = _make_backbone_kernel(h, w)

    high_flat, low_flat = pl.pallas_call(
        kernel,
        out_shape=(jax.ShapeDtypeStruct((n, c2, hw), jnp.float32),
                   jax.ShapeDtypeStruct((n, c1, hw), jnp.float32)),
        grid_spec=pltpu.PrefetchScalarGridSpec(
            num_scalar_prefetch=0,
            grid=(n,),
            in_specs=[
                pl.BlockSpec((2, hw), lambda b: (0, 0)),          # coords
                pl.BlockSpec((1, cin, hw), lambda b: (b, 0, 0)),  # x (bf16)
                pl.BlockSpec((9, c1, cin), lambda b: (0, 0, 0)),  # w1
                pl.BlockSpec((c1, 1), lambda b: (0, 0)),          # b1
                pl.BlockSpec((9, c2, c1), lambda b: (0, 0, 0)),   # w2
                pl.BlockSpec((c2, 1), lambda b: (0, 0)),          # b2
            ],
            out_specs=(
                pl.BlockSpec((1, c2, hw), lambda b: (b, 0, 0)),
                pl.BlockSpec((1, c1, hw), lambda b: (b, 0, 0)),
            )),
        compiler_params=pltpu.CompilerParams(
            dimension_semantics=("parallel",)),
        cost_estimate=pl.CostEstimate(
            flops=flops, transcendentals=0, bytes_accessed=bytes_accessed),
    )(coords, x_flat, w1t, b1r, w2t, b2r)

    # (N, C, H*W) -> NCHW directly (no output transpose needed).
    high = high_flat.reshape(n, c2, h, w)
    low = low_flat.reshape(n, c1, h, w)
    return high, low


def backbone_reference(x_nchw, params):
    """Pure-JAX reference with matched (bf16 operand / f32 accumulate) precision."""
    s1, b1 = fold_bn(*params["bn1"])
    s2, b2 = fold_bn(*params["bn2"])
    w1f = (params["w1"] * s1).astype(jnp.bfloat16)
    w2f = (params["w2"] * s2).astype(jnp.bfloat16)

    x = jnp.transpose(x_nchw, (0, 2, 3, 1))
    low = jnp.maximum(
        lax.conv_general_dilated(
            x.astype(jnp.bfloat16), w1f, (1, 1), "SAME",
            dimension_numbers=("NHWC", "HWIO", "NHWC"),
            preferred_element_type=jnp.float32) + b1, 0.0)
    high = jnp.maximum(
        lax.conv_general_dilated(
            low.astype(jnp.bfloat16), w2f, (1, 1), "SAME",
            dimension_numbers=("NHWC", "HWIO", "NHWC"),
            preferred_element_type=jnp.float32) + b2, 0.0)
    return jnp.transpose(high, (0, 3, 1, 2)), jnp.transpose(low, (0, 3, 1, 2))


if __name__ == "__main__":
    key = jax.random.PRNGKey(0)
    k_x, k_w1, k_w2, k_g1, k_b1, k_g2, k_b2 = jax.random.split(key, 7)

    N, CIN, H, W = 2, 4, 16, 16
    C1, C2 = 32, 64

    x = jax.random.normal(k_x, (N, CIN, H, W), dtype=jnp.float32)

    params = {
        "w1": 0.1 * jax.random.normal(k_w1, (3, 3, CIN, C1), dtype=jnp.float32),
        "w2": 0.1 * jax.random.normal(k_w2, (3, 3, C1, C2), dtype=jnp.float32),
        # BN params: (gamma, beta, running_mean, running_var)
        "bn1": (
            1.0 + 0.1 * jax.random.normal(k_g1, (C1,), dtype=jnp.float32),
            0.1 * jax.random.normal(k_b1, (C1,), dtype=jnp.float32),
            jnp.zeros((C1,), jnp.float32),
            jnp.ones((C1,), jnp.float32),
        ),
        "bn2": (
            1.0 + 0.1 * jax.random.normal(k_g2, (C2,), dtype=jnp.float32),
            0.1 * jax.random.normal(k_b2, (C2,), dtype=jnp.float32),
            jnp.zeros((C2,), jnp.float32),
            jnp.ones((C2,), jnp.float32),
        ),
    }

    fwd = jax.jit(functools.partial(backbone_forward, params=params))
    high, low = fwd(x)
    jax.block_until_ready((high, low))

    # Sanity-check against the precision-matched pure-JAX reference.
    high_r, low_r = jax.jit(
        functools.partial(backbone_reference, params=params))(x)
    np.testing.assert_allclose(np.asarray(low), np.asarray(low_r),
                               rtol=2e-2, atol=1e-2)
    np.testing.assert_allclose(np.asarray(high), np.asarray(high_r),
                               rtol=2e-2, atol=1e-2)

    assert high.shape == (N, C2, H, W) and low.shape == (N, C1, H, W)
    print("KERNEL_OK")
</pallas_src>

<mosaic_0001>
module attributes {stable_mosaic.version = 11 : i64} {
  func.func @kernel(%arg0: i32, %arg1: memref<2x256xi32, #tpu.memory_space<vmem>>, %arg2: memref<1x4x256xbf16, #tpu.memory_space<vmem>>, %arg3: memref<9x32x4xbf16, #tpu.memory_space<vmem>>, %arg4: memref<32x1xf32, #tpu.memory_space<vmem>>, %arg5: memref<9x64x32xbf16, #tpu.memory_space<vmem>>, %arg6: memref<64x1xf32, #tpu.memory_space<vmem>>, %arg7: memref<1x64x256xf32, #tpu.memory_space<vmem>>, %arg8: memref<1x32x256xf32, #tpu.memory_space<vmem>>) attributes {dimension_semantics = [#tpu.dimension_semantics<parallel>], iteration_bounds = array<i64: 2>, scalar_prefetch = 0 : i64, scratch_operands = 0 : i64, tpu.core_type = #tpu.core_type<tc>, window_params = [{pipeline_mode = #tpu.pipeline_mode<synchronous>, transform_indices = @transform_0, window_bounds = array<i64: 2, 256>}, {transform_indices = @transform_1, window_bounds = array<i64: 1, 4, 256>}, {pipeline_mode = #tpu.pipeline_mode<synchronous>, transform_indices = @transform_2, window_bounds = array<i64: 9, 32, 4>}, {pipeline_mode = #tpu.pipeline_mode<synchronous>, transform_indices = @transform_3, window_bounds = array<i64: 32, 1>}, {pipeline_mode = #tpu.pipeline_mode<synchronous>, transform_indices = @transform_4, window_bounds = array<i64: 9, 64, 32>}, {pipeline_mode = #tpu.pipeline_mode<synchronous>, transform_indices = @transform_5, window_bounds = array<i64: 64, 1>}, {transform_indices = @transform_6, window_bounds = array<i64: 1, 64, 256>}, {transform_indices = @transform_7, window_bounds = array<i64: 1, 32, 256>}]} {
    %c0 = arith.constant 0 : index
    %c0_0 = arith.constant 0 : index
    %0 = vector.load %arg1[%c0, %c0_0] : memref<2x256xi32, #tpu.memory_space<vmem>>, vector<1x256xi32>
    %c1 = arith.constant 1 : index
    %c0_1 = arith.constant 0 : index
    %1 = vector.load %arg1[%c1, %c0_1] : memref<2x256xi32, #tpu.memory_space<vmem>>, vector<1x256xi32>
    %c0_2 = arith.constant 0 : index
    %c0_3 = arith.constant 0 : index
    %c0_4 = arith.constant 0 : index
    %2 = vector.load %arg2[%c0_2, %c0_3, %c0_4] : memref<1x4x256xbf16, #tpu.memory_space<vmem>>, vector<1x4x256xbf16>
    %3 = vector.shape_cast %2 : vector<1x4x256xbf16> to vector<4x256xbf16>
    %4 = arith.extf %3 : vector<4x256xbf16> to vector<4x256xf32>
    %cst = arith.constant 0.000000e+00 : f32
    %5 = vector.broadcast %cst : f32 to vector<32x256xf32>
    %c17_i32 = arith.constant 17 : i32
    %6 = tpu.dynamic_rotate %4 by %c17_i32 dim 1 : vector<4x256xf32>, i32 -> vector<4x256xf32>
    %c1_i32 = arith.constant 1 : i32
    %7 = vector.broadcast %c1_i32 : i32 to vector<1x256xi32>
    %8 = arith.cmpi sge, %0, %7 : vector<1x256xi32>
    %c1_i32_5 = arith.constant 1 : i32
    %9 = vector.broadcast %c1_i32_5 : i32 to vector<1x256xi32>
    %10 = arith.cmpi sge, %1, %9 : vector<1x256xi32>
    %11 = arith.andi %8, %10 : vector<1x256xi1>
    %cst_6 = arith.constant 0.000000e+00 : f32
    %12 = vector.shape_cast %11 : vector<1x256xi1> to vector<1x256xi1>
    %13 = vector.broadcast %12 : vector<1x256xi1> to vector<4x256xi1>
    %14 = vector.broadcast %cst_6 : f32 to vector<4x256xf32>
    %15 = arith.select %13, %6, %14 : vector<4x256xi1>, vector<4x256xf32>
    %c0_7 = arith.constant 0 : index
    %c0_8 = arith.constant 0 : index
    %c0_9 = arith.constant 0 : index
    %16 = vector.load %arg3[%c0_7, %c0_8, %c0_9] : memref<9x32x4xbf16, #tpu.memory_space<vmem>>, vector<1x32x4xbf16>
    %17 = vector.shape_cast %16 : vector<1x32x4xbf16> to vector<32x4xbf16>
    %18 = arith.truncf %15 : vector<4x256xf32> to vector<4x256xbf16>
    %cst_10 = arith.constant dense<0.000000e+00> : vector<32x256xf32>
    %19 = tpu.matmul %17, %18, %cst_10 {dimension_numbers = #tpu.dot_dimension_numbers<[1], [0], [0], [1], [0, 0, 1, 1], [], []>} : vector<32x4xbf16>, vector<4x256xbf16>, vector<32x256xf32> -> vector<32x256xf32>
    %20 = arith.addf %5, %19 : vector<32x256xf32>
    %c16_i32 = arith.constant 16 : i32
    %21 = tpu.dynamic_rotate %4 by %c16_i32 dim 1 : vector<4x256xf32>, i32 -> vector<4x256xf32>
    %c1_i32_11 = arith.constant 1 : i32
    %22 = vector.broadcast %c1_i32_11 : i32 to vector<1x256xi32>
    %23 = arith.cmpi sge, %0, %22 : vector<1x256xi32>
    %cst_12 = arith.constant 0.000000e+00 : f32
    %24 = vector.shape_cast %23 : vector<1x256xi1> to vector<1x256xi1>
    %25 = vector.broadcast %24 : vector<1x256xi1> to vector<4x256xi1>
    %26 = vector.broadcast %cst_12 : f32 to vector<4x256xf32>
    %27 = arith.select %25, %21, %26 : vector<4x256xi1>, vector<4x256xf32>
    %c1_13 = arith.constant 1 : index
    %c0_14 = arith.constant 0 : index
    %c0_15 = arith.constant 0 : index
    %28 = vector.load %arg3[%c1_13, %c0_14, %c0_15] : memref<9x32x4xbf16, #tpu.memory_space<vmem>>, vector<1x32x4xbf16>
    %29 = vector.shape_cast %28 : vector<1x32x4xbf16> to vector<32x4xbf16>
    %30 = arith.truncf %27 : vector<4x256xf32> to vector<4x256xbf16>
    %cst_16 = arith.constant dense<0.000000e+00> : vector<32x256xf32>
    %31 = tpu.matmul %29, %30, %cst_16 {dimension_numbers = #tpu.dot_dimension_numbers<[1], [0], [0], [1], [0, 0, 1, 1], [], []>} : vector<32x4xbf16>, vector<4x256xbf16>, vector<32x256xf32> -> vector<32x256xf32>
    %32 = arith.addf %20, %31 : vector<32x256xf32>
    %c15_i32 = arith.constant 15 : i32
    %33 = tpu.dynamic_rotate %4 by %c15_i32 dim 1 : vector<4x256xf32>, i32 -> vector<4x256xf32>
    %c1_i32_17 = arith.constant 1 : i32
    %34 = vector.broadcast %c1_i32_17 : i32 to vector<1x256xi32>
    %35 = arith.cmpi sge, %0, %34 : vector<1x256xi32>
    %c15_i32_18 = arith.constant 15 : i32
    %36 = vector.broadcast %c15_i32_18 : i32 to vector<1x256xi32>
    %37 = arith.cmpi slt, %1, %36 : vector<1x256xi32>
    %38 = arith.andi %35, %37 : vector<1x256xi1>
    %cst_19 = arith.constant 0.000000e+00 : f32
    %39 = vector.shape_cast %38 : vector<1x256xi1> to vector<1x256xi1>
    %40 = vector.broadcast %39 : vector<1x256xi1> to vector<4x256xi1>
    %41 = vector.broadcast %cst_19 : f32 to vector<4x256xf32>
    %42 = arith.select %40, %33, %41 : vector<4x256xi1>, vector<4x256xf32>
    %c2 = arith.constant 2 : index
    %c0_20 = arith.constant 0 : index
    %c0_21 = arith.constant 0 : index
    %43 = vector.load %arg3[%c2, %c0_20, %c0_21] : memref<9x32x4xbf16, #tpu.memory_space<vmem>>, vector<1x32x4xbf16>
    %44 = vector.shape_cast %43 : vector<1x32x4xbf16> to vector<32x4xbf16>
    %45 = arith.truncf %42 : vector<4x256xf32> to vector<4x256xbf16>
    %cst_22 = arith.constant dense<0.000000e+00> : vector<32x256xf32>
    %46 = tpu.matmul %44, %45, %cst_22 {dimension_numbers = #tpu.dot_dimension_numbers<[1], [0], [0], [1], [0, 0, 1, 1], [], []>} : vector<32x4xbf16>, vector<4x256xbf16>, vector<32x256xf32> -> vector<32x256xf32>
    %47 = arith.addf %32, %46 : vector<32x256xf32>
    %c1_i32_23 = arith.constant 1 : i32
    %48 = tpu.dynamic_rotate %4 by %c1_i32_23 dim 1 : vector<4x256xf32>, i32 -> vector<4x256xf32>
    %c1_i32_24 = arith.constant 1 : i32
    %49 = vector.broadcast %c1_i32_24 : i32 to vector<1x256xi32>
    %50 = arith.cmpi sge, %1, %49 : vector<1x256xi32>
    %cst_25 = arith.constant 0.000000e+00 : f32
    %51 = vector.shape_cast %50 : vector<1x256xi1> to vector<1x256xi1>
    %52 = vector.broadcast %51 : vector<1x256xi1> to vector<4x256xi1>
    %53 = vector.broadcast %cst_25 : f32 to vector<4x256xf32>
    %54 = arith.select %52, %48, %53 : vector<4x256xi1>, vector<4x256xf32>
    %c3 = arith.constant 3 : index
    %c0_26 = arith.constant 0 : index
    %c0_27 = arith.constant 0 : index
    %55 = vector.load %arg3[%c3, %c0_26, %c0_27] : memref<9x32x4xbf16, #tpu.memory_space<vmem>>, vector<1x32x4xbf16>
    %56 = vector.shape_cast %55 : vector<1x32x4xbf16> to vector<32x4xbf16>
    %57 = arith.truncf %54 : vector<4x256xf32> to vector<4x256xbf16>
    %cst_28 = arith.constant dense<0.000000e+00> : vector<32x256xf32>
    %58 = tpu.matmul %56, %57, %cst_28 {dimension_numbers = #tpu.dot_dimension_numbers<[1], [0], [0], [1], [0, 0, 1, 1], [], []>} : vector<32x4xbf16>, vector<4x256xbf16>, vector<32x256xf32> -> vector<32x256xf32>
    %59 = arith.addf %47, %58 : vector<32x256xf32>
    %c4 = arith.constant 4 : index
    %c0_29 = arith.constant 0 : index
    %c0_30 = arith.constant 0 : index
    %60 = vector.load %arg3[%c4, %c0_29, %c0_30] : memref<9x32x4xbf16, #tpu.memory_space<vmem>>, vector<1x32x4xbf16>
    %61 = vector.shape_cast %60 : vector<1x32x4xbf16> to vector<32x4xbf16>
    %62 = arith.truncf %4 : vector<4x256xf32> to vector<4x256xbf16>
    %cst_31 = arith.constant dense<0.000000e+00> : vector<32x256xf32>
    %63 = tpu.matmul %61, %62, %cst_31 {dimension_numbers = #tpu.dot_dimension_numbers<[1], [0], [0], [1], [0, 0, 1, 1], [], []>} : vector<32x4xbf16>, vector<4x256xbf16>, vector<32x256xf32> -> vector<32x256xf32>
    %64 = arith.addf %59, %63 : vector<32x256xf32>
    %c255_i32 = arith.constant 255 : i32
    %65 = tpu.dynamic_rotate %4 by %c255_i32 dim 1 : vector<4x256xf32>, i32 -> vector<4x256xf32>
    %c15_i32_32 = arith.constant 15 : i32
    %66 = vector.broadcast %c15_i32_32 : i32 to vector<1x256xi32>
    %67 = arith.cmpi slt, %1, %66 : vector<1x256xi32>
    %cst_33 = arith.constant 0.000000e+00 : f32
    %68 = vector.shape_cast %67 : vector<1x256xi1> to vector<1x256xi1>
    %69 = vector.broadcast %68 : vector<1x256xi1> to vector<4x256xi1>
    %70 = vector.broadcast %cst_33 : f32 to vector<4x256xf32>
    %71 = arith.select %69, %65, %70 : vector<4x256xi1>, vector<4x256xf32>
    %c5 = arith.constant 5 : index
    %c0_34 = arith.constant 0 : index
    %c0_35 = arith.constant 0 : index
    %72 = vector.load %arg3[%c5, %c0_34, %c0_35] : memref<9x32x4xbf16, #tpu.memory_space<vmem>>, vector<1x32x4xbf16>
    %73 = vector.shape_cast %72 : vector<1x32x4xbf16> to vector<32x4xbf16>
    %74 = arith.truncf %71 : vector<4x256xf32> to vector<4x256xbf16>
    %cst_36 = arith.constant dense<0.000000e+00> : vector<32x256xf32>
    %75 = tpu.matmul %73, %74, %cst_36 {dimension_numbers = #tpu.dot_dimension_numbers<[1], [0], [0], [1], [0, 0, 1, 1], [], []>} : vector<32x4xbf16>, vector<4x256xbf16>, vector<32x256xf32> -> vector<32x256xf32>
    %76 = arith.addf %64, %75 : vector<32x256xf32>
    %c241_i32 = arith.constant 241 : i32
    %77 = tpu.dynamic_rotate %4 by %c241_i32 dim 1 : vector<4x256xf32>, i32 -> vector<4x256xf32>
    %c15_i32_37 = arith.constant 15 : i32
    %78 = vector.broadcast %c15_i32_37 : i32 to vector<1x256xi32>
    %79 = arith.cmpi slt, %0, %78 : vector<1x256xi32>
    %c1_i32_38 = arith.constant 1 : i32
    %80 = vector.broadcast %c1_i32_38 : i32 to vector<1x256xi32>
    %81 = arith.cmpi sge, %1, %80 : vector<1x256xi32>
    %82 = arith.andi %79, %81 : vector<1x256xi1>
    %cst_39 = arith.constant 0.000000e+00 : f32
    %83 = vector.shape_cast %82 : vector<1x256xi1> to vector<1x256xi1>
    %84 = vector.broadcast %83 : vector<1x256xi1> to vector<4x256xi1>
    %85 = vector.broadcast %cst_39 : f32 to vector<4x256xf32>
    %86 = arith.select %84, %77, %85 : vector<4x256xi1>, vector<4x256xf32>
    %c6 = arith.constant 6 : index
    %c0_40 = arith.constant 0 : index
    %c0_41 = arith.constant 0 : index
    %87 = vector.load %arg3[%c6, %c0_40, %c0_41] : memref<9x32x4xbf16, #tpu.memory_space<vmem>>, vector<1x32x4xbf16>
    %88 = vector.shape_cast %87 : vector<1x32x4xbf16> to vector<32x4xbf16>
    %89 = arith.truncf %86 : vector<4x256xf32> to vector<4x256xbf16>
    %cst_42 = arith.constant dense<0.000000e+00> : vector<32x256xf32>
    %90 = tpu.matmul %88, %89, %cst_42 {dimension_numbers = #tpu.dot_dimension_numbers<[1], [0], [0], [1], [0, 0, 1, 1], [], []>} : vector<32x4xbf16>, vector<4x256xbf16>, vector<32x256xf32> -> vector<32x256xf32>
    %91 = arith.addf %76, %90 : vector<32x256xf32>
    %c240_i32 = arith.constant 240 : i32
    %92 = tpu.dynamic_rotate %4 by %c240_i32 dim 1 : vector<4x256xf32>, i32 -> vector<4x256xf32>
    %c15_i32_43 = arith.constant 15 : i32
    %93 = vector.broadcast %c15_i32_43 : i32 to vector<1x256xi32>
    %94 = arith.cmpi slt, %0, %93 : vector<1x256xi32>
    %cst_44 = arith.constant 0.000000e+00 : f32
    %95 = vector.shape_cast %94 : vector<1x256xi1> to vector<1x256xi1>
    %96 = vector.broadcast %95 : vector<1x256xi1> to vector<4x256xi1>
    %97 = vector.broadcast %cst_44 : f32 to vector<4x256xf32>
    %98 = arith.select %96, %92, %97 : vector<4x256xi1>, vector<4x256xf32>
    %c7 = arith.constant 7 : index
    %c0_45 = arith.constant 0 : index
    %c0_46 = arith.constant 0 : index
    %99 = vector.load %arg3[%c7, %c0_45, %c0_46] : memref<9x32x4xbf16, #tpu.memory_space<vmem>>, vector<1x32x4xbf16>
    %100 = vector.shape_cast %99 : vector<1x32x4xbf16> to vector<32x4xbf16>
    %101 = arith.truncf %98 : vector<4x256xf32> to vector<4x256xbf16>
    %cst_47 = arith.constant dense<0.000000e+00> : vector<32x256xf32>
    %102 = tpu.matmul %100, %101, %cst_47 {dimension_numbers = #tpu.dot_dimension_numbers<[1], [0], [0], [1], [0, 0, 1, 1], [], []>} : vector<32x4xbf16>, vector<4x256xbf16>, vector<32x256xf32> -> vector<32x256xf32>
    %103 = arith.addf %91, %102 : vector<32x256xf32>
    %c239_i32 = arith.constant 239 : i32
    %104 = tpu.dynamic_rotate %4 by %c239_i32 dim 1 : vector<4x256xf32>, i32 -> vector<4x256xf32>
    %c15_i32_48 = arith.constant 15 : i32
    %105 = vector.broadcast %c15_i32_48 : i32 to vector<1x256xi32>
    %106 = arith.cmpi slt, %0, %105 : vector<1x256xi32>
    %c15_i32_49 = arith.constant 15 : i32
    %107 = vector.broadcast %c15_i32_49 : i32 to vector<1x256xi32>
    %108 = arith.cmpi slt, %1, %107 : vector<1x256xi32>
    %109 = arith.andi %106, %108 : vector<1x256xi1>
    %cst_50 = arith.constant 0.000000e+00 : f32
    %110 = vector.shape_cast %109 : vector<1x256xi1> to vector<1x256xi1>
    %111 = vector.broadcast %110 : vector<1x256xi1> to vector<4x256xi1>
    %112 = vector.broadcast %cst_50 : f32 to vector<4x256xf32>
    %113 = arith.select %111, %104, %112 : vector<4x256xi1>, vector<4x256xf32>
    %c8 = arith.constant 8 : index
    %c0_51 = arith.constant 0 : index
    %c0_52 = arith.constant 0 : index
    %114 = vector.load %arg3[%c8, %c0_51, %c0_52] : memref<9x32x4xbf16, #tpu.memory_space<vmem>>, vector<1x32x4xbf16>
    %115 = vector.shape_cast %114 : vector<1x32x4xbf16> to vector<32x4xbf16>
    %116 = arith.truncf %113 : vector<4x256xf32> to vector<4x256xbf16>
    %cst_53 = arith.constant dense<0.000000e+00> : vector<32x256xf32>
    %117 = tpu.matmul %115, %116, %cst_53 {dimension_numbers = #tpu.dot_dimension_numbers<[1], [0], [0], [1], [0, 0, 1, 1], [], []>} : vector<32x4xbf16>, vector<4x256xbf16>, vector<32x256xf32> -> vector<32x256xf32>
    %118 = arith.addf %103, %117 : vector<32x256xf32>
    %c0_54 = arith.constant 0 : index
    %c0_55 = arith.constant 0 : index
    %119 = vector.load %arg4[%c0_54, %c0_55] : memref<32x1xf32, #tpu.memory_space<vmem>>, vector<32x1xf32>
    %120 = vector.broadcast %119 : vector<32x1xf32> to vector<32x256xf32>
    %121 = arith.addf %118, %120 : vector<32x256xf32>
    %cst_56 = arith.constant 0.000000e+00 : f32
    %122 = vector.broadcast %cst_56 : f32 to vector<32x256xf32>
    %123 = arith.maximumf %121, %122 : vector<32x256xf32>
    %c0_57 = arith.constant 0 : index
    %c0_58 = arith.constant 0 : index
    %c0_59 = arith.constant 0 : index
    %124 = vector.load %arg8[%c0_57, %c0_58, %c0_59] : memref<1x32x256xf32, #tpu.memory_space<vmem>>, vector<1x32x256xf32>
    %125 = vector.shape_cast %124 : vector<1x32x256xf32> to vector<32x256xf32>
    %126 = vector.shape_cast %123 : vector<32x256xf32> to vector<1x32x256xf32>
    tpu.vector_store %arg8[%c0_57, %c0_58, %c0_59], %126 {strides = array<i32>} : memref<1x32x256xf32, #tpu.memory_space<vmem>>, vector<1x32x256xf32>,
    %cst_60 = arith.constant 0.000000e+00 : f32
    %127 = vector.broadcast %cst_60 : f32 to vector<64x256xf32>
    %c17_i32_61 = arith.constant 17 : i32
    %128 = tpu.dynamic_rotate %123 by %c17_i32_61 dim 1 : vector<32x256xf32>, i32 -> vector<32x256xf32>
    %c1_i32_62 = arith.constant 1 : i32
    %129 = vector.broadcast %c1_i32_62 : i32 to vector<1x256xi32>
    %130 = arith.cmpi sge, %0, %129 : vector<1x256xi32>
    %c1_i32_63 = arith.constant 1 : i32
    %131 = vector.broadcast %c1_i32_63 : i32 to vector<1x256xi32>
    %132 = arith.cmpi sge, %1, %131 : vector<1x256xi32>
    %133 = arith.andi %130, %132 : vector<1x256xi1>
    %cst_64 = arith.constant 0.000000e+00 : f32
    %134 = vector.shape_cast %133 : vector<1x256xi1> to vector<1x256xi1>
    %135 = vector.broadcast %134 : vector<1x256xi1> to vector<32x256xi1>
    %136 = vector.broadcast %cst_64 : f32 to vector<32x256xf32>
    %137 = arith.select %135, %128, %136 : vector<32x256xi1>, vector<32x256xf32>
    %c0_65 = arith.constant 0 : index
    %c0_66 = arith.constant 0 : index
    %c0_67 = arith.constant 0 : index
    %138 = vector.load %arg5[%c0_65, %c0_66, %c0_67] : memref<9x64x32xbf16, #tpu.memory_space<vmem>>, vector<1x64x32xbf16>
    %139 = vector.shape_cast %138 : vector<1x64x32xbf16> to vector<64x32xbf16>
    %140 = arith.truncf %137 : vector<32x256xf32> to vector<32x256xbf16>
    %cst_68 = arith.constant dense<0.000000e+00> : vector<64x256xf32>
    %141 = tpu.matmul %139, %140, %cst_68 {dimension_numbers = #tpu.dot_dimension_numbers<[1], [0], [0], [1], [0, 0, 1, 1], [], []>} : vector<64x32xbf16>, vector<32x256xbf16>, vector<64x256xf32> -> vector<64x256xf32>
    %142 = arith.addf %127, %141 : vector<64x256xf32>
    %c16_i32_69 = arith.constant 16 : i32
    %143 = tpu.dynamic_rotate %123 by %c16_i32_69 dim 1 : vector<32x256xf32>, i32 -> vector<32x256xf32>
    %c1_i32_70 = arith.constant 1 : i32
    %144 = vector.broadcast %c1_i32_70 : i32 to vector<1x256xi32>
    %145 = arith.cmpi sge, %0, %144 : vector<1x256xi32>
    %cst_71 = arith.constant 0.000000e+00 : f32
    %146 = vector.shape_cast %145 : vector<1x256xi1> to vector<1x256xi1>
    %147 = vector.broadcast %146 : vector<1x256xi1> to vector<32x256xi1>
    %148 = vector.broadcast %cst_71 : f32 to vector<32x256xf32>
    %149 = arith.select %147, %143, %148 : vector<32x256xi1>, vector<32x256xf32>
    %c1_72 = arith.constant 1 : index
    %c0_73 = arith.constant 0 : index
    %c0_74 = arith.constant 0 : index
    %150 = vector.load %arg5[%c1_72, %c0_73, %c0_74] : memref<9x64x32xbf16, #tpu.memory_space<vmem>>, vector<1x64x32xbf16>
    %151 = vector.shape_cast %150 : vector<1x64x32xbf16> to vector<64x32xbf16>
    %152 = arith.truncf %149 : vector<32x256xf32> to vector<32x256xbf16>
    %cst_75 = arith.constant dense<0.000000e+00> : vector<64x256xf32>
    %153 = tpu.matmul %151, %152, %cst_75 {dimension_numbers = #tpu.dot_dimension_numbers<[1], [0], [0], [1], [0, 0, 1, 1], [], []>} : vector<64x32xbf16>, vector<32x256xbf16>, vector<64x256xf32> -> vector<64x256xf32>
    %154 = arith.addf %142, %153 : vector<64x256xf32>
    %c15_i32_76 = arith.constant 15 : i32
    %155 = tpu.dynamic_rotate %123 by %c15_i32_76 dim 1 : vector<32x256xf32>, i32 -> vector<32x256xf32>
    %c1_i32_77 = arith.constant 1 : i32
    %156 = vector.broadcast %c1_i32_77 : i32 to vector<1x256xi32>
    %157 = arith.cmpi sge, %0, %156 : vector<1x256xi32>
    %c15_i32_78 = arith.constant 15 : i32
    %158 = vector.broadcast %c15_i32_78 : i32 to vector<1x256xi32>
    %159 = arith.cmpi slt, %1, %158 : vector<1x256xi32>
    %160 = arith.andi %157, %159 : vector<1x256xi1>
    %cst_79 = arith.constant 0.000000e+00 : f32
    %161 = vector.shape_cast %160 : vector<1x256xi1> to vector<1x256xi1>
    %162 = vector.broadcast %161 : vector<1x256xi1> to vector<32x256xi1>
    %163 = vector.broadcast %cst_79 : f32 to vector<32x256xf32>
    %164 = arith.select %162, %155, %163 : vector<32x256xi1>, vector<32x256xf32>
    %c2_80 = arith.constant 2 : index
    %c0_81 = arith.constant 0 : index
    %c0_82 = arith.constant 0 : index
    %165 = vector.load %arg5[%c2_80, %c0_81, %c0_82] : memref<9x64x32xbf16, #tpu.memory_space<vmem>>, vector<1x64x32xbf16>
    %166 = vector.shape_cast %165 : vector<1x64x32xbf16> to vector<64x32xbf16>
    %167 = arith.truncf %164 : vector<32x256xf32> to vector<32x256xbf16>
    %cst_83 = arith.constant dense<0.000000e+00> : vector<64x256xf32>
    %168 = tpu.matmul %166, %167, %cst_83 {dimension_numbers = #tpu.dot_dimension_numbers<[1], [0], [0], [1], [0, 0, 1, 1], [], []>} : vector<64x32xbf16>, vector<32x256xbf16>, vector<64x256xf32> -> vector<64x256xf32>
    %169 = arith.addf %154, %168 : vector<64x256xf32>
    %c1_i32_84 = arith.constant 1 : i32
    %170 = tpu.dynamic_rotate %123 by %c1_i32_84 dim 1 : vector<32x256xf32>, i32 -> vector<32x256xf32>
    %c1_i32_85 = arith.constant 1 : i32
    %171 = vector.broadcast %c1_i32_85 : i32 to vector<1x256xi32>
    %172 = arith.cmpi sge, %1, %171 : vector<1x256xi32>
    %cst_86 = arith.constant 0.000000e+00 : f32
    %173 = vector.shape_cast %172 : vector<1x256xi1> to vector<1x256xi1>
    %174 = vector.broadcast %173 : vector<1x256xi1> to vector<32x256xi1>
    %175 = vector.broadcast %cst_86 : f32 to vector<32x256xf32>
    %176 = arith.select %174, %170, %175 : vector<32x256xi1>, vector<32x256xf32>
    %c3_87 = arith.constant 3 : index
    %c0_88 = arith.constant 0 : index
    %c0_89 = arith.constant 0 : index
    %177 = vector.load %arg5[%c3_87, %c0_88, %c0_89] : memref<9x64x32xbf16, #tpu.memory_space<vmem>>, vector<1x64x32xbf16>
    %178 = vector.shape_cast %177 : vector<1x64x32xbf16> to vector<64x32xbf16>
    %179 = arith.truncf %176 : vector<32x256xf32> to vector<32x256xbf16>
    %cst_90 = arith.constant dense<0.000000e+00> : vector<64x256xf32>
    %180 = tpu.matmul %178, %179, %cst_90 {dimension_numbers = #tpu.dot_dimension_numbers<[1], [0], [0], [1], [0, 0, 1, 1], [], []>} : vector<64x32xbf16>, vector<32x256xbf16>, vector<64x256xf32> -> vector<64x256xf32>
    %181 = arith.addf %169, %180 : vector<64x256xf32>
    %c4_91 = arith.constant 4 : index
    %c0_92 = arith.constant 0 : index
    %c0_93 = arith.constant 0 : index
    %182 = vector.load %arg5[%c4_91, %c0_92, %c0_93] : memref<9x64x32xbf16, #tpu.memory_space<vmem>>, vector<1x64x32xbf16>
    %183 = vector.shape_cast %182 : vector<1x64x32xbf16> to vector<64x32xbf16>
    %184 = arith.truncf %123 : vector<32x256xf32> to vector<32x256xbf16>
    %cst_94 = arith.constant dense<0.000000e+00> : vector<64x256xf32>
    %185 = tpu.matmul %183, %184, %cst_94 {dimension_numbers = #tpu.dot_dimension_numbers<[1], [0], [0], [1], [0, 0, 1, 1], [], []>} : vector<64x32xbf16>, vector<32x256xbf16>, vector<64x256xf32> -> vector<64x256xf32>
    %186 = arith.addf %181, %185 : vector<64x256xf32>
    %c255_i32_95 = arith.constant 255 : i32
    %187 = tpu.dynamic_rotate %123 by %c255_i32_95 dim 1 : vector<32x256xf32>, i32 -> vector<32x256xf32>
    %c15_i32_96 = arith.constant 15 : i32
    %188 = vector.broadcast %c15_i32_96 : i32 to vector<1x256xi32>
    %189 = arith.cmpi slt, %1, %188 : vector<1x256xi32>
    %cst_97 = arith.constant 0.000000e+00 : f32
    %190 = vector.shape_cast %189 : vector<1x256xi1> to vector<1x256xi1>
    %191 = vector.broadcast %190 : vector<1x256xi1> to vector<32x256xi1>
    %192 = vector.broadcast %cst_97 : f32 to vector<32x256xf32>
    %193 = arith.select %191, %187, %192 : vector<32x256xi1>, vector<32x256xf32>
    %c5_98 = arith.constant 5 : index
    %c0_99 = arith.constant 0 : index
    %c0_100 = arith.constant 0 : index
    %194 = vector.load %arg5[%c5_98, %c0_99, %c0_100] : memref<9x64x32xbf16, #tpu.memory_space<vmem>>, vector<1x64x32xbf16>
    %195 = vector.shape_cast %194 : vector<1x64x32xbf16> to vector<64x32xbf16>
    %196 = arith.truncf %193 : vector<32x256xf32> to vector<32x256xbf16>
    %cst_101 = arith.constant dense<0.000000e+00> : vector<64x256xf32>
    %197 = tpu.matmul %195, %196, %cst_101 {dimension_numbers = #tpu.dot_dimension_numbers<[1], [0], [0], [1], [0, 0, 1, 1], [], []>} : vector<64x32xbf16>, vector<32x256xbf16>, vector<64x256xf32> -> vector<64x256xf32>
    %198 = arith.addf %186, %197 : vector<64x256xf32>
    %c241_i32_102 = arith.constant 241 : i32
    %199 = tpu.dynamic_rotate %123 by %c241_i32_102 dim 1 : vector<32x256xf32>, i32 -> vector<32x256xf32>
    %c15_i32_103 = arith.constant 15 : i32
    %200 = vector.broadcast %c15_i32_103 : i32 to vector<1x256xi32>
    %201 = arith.cmpi slt, %0, %200 : vector<1x256xi32>
    %c1_i32_104 = arith.constant 1 : i32
    %202 = vector.broadcast %c1_i32_104 : i32 to vector<1x256xi32>
    %203 = arith.cmpi sge, %1, %202 : vector<1x256xi32>
    %204 = arith.andi %201, %203 : vector<1x256xi1>
    %cst_105 = arith.constant 0.000000e+00 : f32
    %205 = vector.shape_cast %204 : vector<1x256xi1> to vector<1x256xi1>
    %206 = vector.broadcast %205 : vector<1x256xi1> to vector<32x256xi1>
    %207 = vector.broadcast %cst_105 : f32 to vector<32x256xf32>
    %208 = arith.select %206, %199, %207 : vector<32x256xi1>, vector<32x256xf32>
    %c6_106 = arith.constant 6 : index
    %c0_107 = arith.constant 0 : index
    %c0_108 = arith.constant 0 : index
    %209 = vector.load %arg5[%c6_106, %c0_107, %c0_108] : memref<9x64x32xbf16, #tpu.memory_space<vmem>>, vector<1x64x32xbf16>
    %210 = vector.shape_cast %209 : vector<1x64x32xbf16> to vector<64x32xbf16>
    %211 = arith.truncf %208 : vector<32x256xf32> to vector<32x256xbf16>
    %cst_109 = arith.constant dense<0.000000e+00> : vector<64x256xf32>
    %212 = tpu.matmul %210, %211, %cst_109 {dimension_numbers = #tpu.dot_dimension_numbers<[1], [0], [0], [1], [0, 0, 1, 1], [], []>} : vector<64x32xbf16>, vector<32x256xbf16>, vector<64x256xf32> -> vector<64x256xf32>
    %213 = arith.addf %198, %212 : vector<64x256xf32>
    %c240_i32_110 = arith.constant 240 : i32
    %214 = tpu.dynamic_rotate %123 by %c240_i32_110 dim 1 : vector<32x256xf32>, i32 -> vector<32x256xf32>
    %c15_i32_111 = arith.constant 15 : i32
    %215 = vector.broadcast %c15_i32_111 : i32 to vector<1x256xi32>
    %216 = arith.cmpi slt, %0, %215 : vector<1x256xi32>
    %cst_112 = arith.constant 0.000000e+00 : f32
    %217 = vector.shape_cast %216 : vector<1x256xi1> to vector<1x256xi1>
    %218 = vector.broadcast %217 : vector<1x256xi1> to vector<32x256xi1>
    %219 = vector.broadcast %cst_112 : f32 to vector<32x256xf32>
    %220 = arith.select %218, %214, %219 : vector<32x256xi1>, vector<32x256xf32>
    %c7_113 = arith.constant 7 : index
    %c0_114 = arith.constant 0 : index
    %c0_115 = arith.constant 0 : index
    %221 = vector.load %arg5[%c7_113, %c0_114, %c0_115] : memref<9x64x32xbf16, #tpu.memory_space<vmem>>, vector<1x64x32xbf16>
    %222 = vector.shape_cast %221 : vector<1x64x32xbf16> to vector<64x32xbf16>
    %223 = arith.truncf %220 : vector<32x256xf32> to vector<32x256xbf16>
    %cst_116 = arith.constant dense<0.000000e+00> : vector<64x256xf32>
    %224 = tpu.matmul %222, %223, %cst_116 {dimension_numbers = #tpu.dot_dimension_numbers<[1], [0], [0], [1], [0, 0, 1, 1], [], []>} : vector<64x32xbf16>, vector<32x256xbf16>, vector<64x256xf32> -> vector<64x256xf32>
    %225 = arith.addf %213, %224 : vector<64x256xf32>
    %c239_i32_117 = arith.constant 239 : i32
    %226 = tpu.dynamic_rotate %123 by %c239_i32_117 dim 1 : vector<32x256xf32>, i32 -> vector<32x256xf32>
    %c15_i32_118 = arith.constant 15 : i32
    %227 = vector.broadcast %c15_i32_118 : i32 to vector<1x256xi32>
    %228 = arith.cmpi slt, %0, %227 : vector<1x256xi32>
    %c15_i32_119 = arith.constant 15 : i32
    %229 = vector.broadcast %c15_i32_119 : i32 to vector<1x256xi32>
    %230 = arith.cmpi slt, %1, %229 : vector<1x256xi32>
    %231 = arith.andi %228, %230 : vector<1x256xi1>
    %cst_120 = arith.constant 0.000000e+00 : f32
    %232 = vector.shape_cast %231 : vector<1x256xi1> to vector<1x256xi1>
    %233 = vector.broadcast %232 : vector<1x256xi1> to vector<32x256xi1>
    %234 = vector.broadcast %cst_120 : f32 to vector<32x256xf32>
    %235 = arith.select %233, %226, %234 : vector<32x256xi1>, vector<32x256xf32>
    %c8_121 = arith.constant 8 : index
    %c0_122 = arith.constant 0 : index
    %c0_123 = arith.constant 0 : index
    %236 = vector.load %arg5[%c8_121, %c0_122, %c0_123] : memref<9x64x32xbf16, #tpu.memory_space<vmem>>, vector<1x64x32xbf16>
    %237 = vector.shape_cast %236 : vector<1x64x32xbf16> to vector<64x32xbf16>
    %238 = arith.truncf %235 : vector<32x256xf32> to vector<32x256xbf16>
    %cst_124 = arith.constant dense<0.000000e+00> : vector<64x256xf32>
    %239 = tpu.matmul %237, %238, %cst_124 {dimension_numbers = #tpu.dot_dimension_numbers<[1], [0], [0], [1], [0, 0, 1, 1], [], []>} : vector<64x32xbf16>, vector<32x256xbf16>, vector<64x256xf32> -> vector<64x256xf32>
    %240 = arith.addf %225, %239 : vector<64x256xf32>
    %c0_125 = arith.constant 0 : index
    %c0_126 = arith.constant 0 : index
    %241 = vector.load %arg6[%c0_125, %c0_126] : memref<64x1xf32, #tpu.memory_space<vmem>>, vector<64x1xf32>
    %242 = vector.broadcast %241 : vector<64x1xf32> to vector<64x256xf32>
    %243 = arith.addf %240, %242 : vector<64x256xf32>
    %cst_127 = arith.constant 0.000000e+00 : f32
    %244 = vector.broadcast %cst_127 : f32 to vector<64x256xf32>
    %245 = arith.maximumf %243, %244 : vector<64x256xf32>
    %c0_128 = arith.constant 0 : index
    %c0_129 = arith.constant 0 : index
    %c0_130 = arith.constant 0 : index
    %246 = vector.load %arg7[%c0_128, %c0_129, %c0_130] : memref<1x64x256xf32, #tpu.memory_space<vmem>>, vector<1x64x256xf32>
    %247 = vector.shape_cast %246 : vector<1x64x256xf32> to vector<64x256xf32>
    %248 = vector.shape_cast %245 : vector<64x256xf32> to vector<1x64x256xf32>
    tpu.vector_store %arg7[%c0_128, %c0_129, %c0_130], %248 {strides = array<i32>} : memref<1x64x256xf32, #tpu.memory_space<vmem>>, vector<1x64x256xf32>,
    return
  }
  func.func @transform_0(%arg0: i32) -> (i32, i32) {
    %c0_i32 = arith.constant 0 : i32
    %c0_i32_0 = arith.constant 0 : i32
    %c0_i32_1 = arith.constant 0 : i32
    return %c0_i32, %c0_i32_0 : i32, i32
  }
  func.func @transform_1(%arg0: i32) -> (i32, i32, i32) {
    %c0_i32 = arith.constant 0 : i32
    %c0_i32_0 = arith.constant 0 : i32
    %c0_i32_1 = arith.constant 0 : i32
    return %arg0, %c0_i32, %c0_i32_0 : i32, i32, i32
  }
  func.func @transform_2(%arg0: i32) -> (i32, i32, i32) {
    %c0_i32 = arith.constant 0 : i32
    %c0_i32_0 = arith.constant 0 : i32
    %c0_i32_1 = arith.constant 0 : i32
    %c0_i32_2 = arith.constant 0 : i32
    return %c0_i32, %c0_i32_0, %c0_i32_1 : i32, i32, i32
  }
  func.func @transform_3(%arg0: i32) -> (i32, i32) {
    %c0_i32 = arith.constant 0 : i32
    %c0_i32_0 = arith.constant 0 : i32
    %c0_i32_1 = arith.constant 0 : i32
    return %c0_i32, %c0_i32_0 : i32, i32
  }
  func.func @transform_4(%arg0: i32) -> (i32, i32, i32) {
    %c0_i32 = arith.constant 0 : i32
    %c0_i32_0 = arith.constant 0 : i32
    %c0_i32_1 = arith.constant 0 : i32
    %c0_i32_2 = arith.constant 0 : i32
    return %c0_i32, %c0_i32_0, %c0_i32_1 : i32, i32, i32
  }
  func.func @transform_5(%arg0: i32) -> (i32, i32) {
    %c0_i32 = arith.constant 0 : i32
    %c0_i32_0 = arith.constant 0 : i32
    %c0_i32_1 = arith.constant 0 : i32
    return %c0_i32, %c0_i32_0 : i32, i32
  }
  func.func @transform_6(%arg0: i32) -> (i32, i32, i32) {
    %c0_i32 = arith.constant 0 : i32
    %c0_i32_0 = arith.constant 0 : i32
    %c0_i32_1 = arith.constant 0 : i32
    return %arg0, %c0_i32, %c0_i32_0 : i32, i32, i32
  }
  func.func @transform_7(%arg0: i32) -> (i32, i32, i32) {
    %c0_i32 = arith.constant 0 : i32
    %c0_i32_0 = arith.constant 0 : i32
    %c0_i32_1 = arith.constant 0 : i32
    return %arg0, %c0_i32, %c0_i32_0 : i32, i32, i32
  }
}

</mosaic_0001>

<llo_original>
// kernel: backbone_forward.1
$region0: #{backbone_forward.1}
  #allocation0 [shape = 'u32[]', space=smem, size = 0x4, offset = 0x4, fixed_abs, tag = 'smem constant byte address 0x4 - core index']
  #allocation1 [shape = 'u32[144,128]{1,0:T(1,128)}', space=vmem, size = 0x12000, scoped, tag = 'internal scratch']
  %s0 = inlined_call_operand.vmem [shape: s32[2,256], index: 0, kind: input, shape index: {}]
  %s1 = inlined_call_operand.vmem [shape: bf16[2,4,256], index: 1, kind: input, shape index: {}]
  %s2 = inlined_call_operand.hbm [shape: bf16[9,32,4], index: 2, kind: input, shape index: {}]
  %s3 = inlined_call_operand.hbm [shape: f32[32,1], index: 3, kind: input, shape index: {}]
  %s4 = inlined_call_operand.vmem [shape: bf16[9,64,32], index: 4, kind: input, shape index: {}]
  %s5 = inlined_call_operand.hbm [shape: f32[64,1], index: 5, kind: input, shape index: {}]
  %s6 = inlined_call_operand.vmem [shape: f32[2,64,256], index: 6, kind: output, shape index: {0}]
  %s7 = inlined_call_operand.vmem [shape: f32[2,32,256], index: 7, kind: output, shape index: {1}]
  %8 = xla_tuple %s6, %s7
  %s9 = sld [smem:[#allocation0]]
  $region77: #{backbone_forward.1} parent=0
    _
  %s11 = ssub.s32 1, %s9
  %s12 = scalar_select 0, %s11, %s9
  $region1: #{backbone_forward.1} parent=0
    #allocation2 [shape = 'u8[73728]{0}', space=vmem, size = 0x12000, scoped, tag = 'input window, operand 2, single buffered']
    #allocation3 [shape = 's32[2]{0}', space=sflag, size = 0x8, scoped, tag = 'scoped memory for backbone_forward.1']
    #allocation4 [shape = 'u8[16384]{0}', space=vmem, size = 0x4000, scoped, tag = 'input window, operand 3, single buffered']
    #allocation5 [shape = 's32[1]{0}', space=sflag, size = 0x4, scoped, tag = 'scoped memory for backbone_forward.1']
    #allocation6 [shape = 'u8[32768]{0}', space=vmem, size = 0x8000, scoped, tag = 'input window, operand 5, single buffered']
    %13 = vsyncpa [#allocation3], 0
    %14 = vsyncpa [#allocation5], 0
    loop: start=0, step=1, limit=4
    $region2: #{backbone_forward.1} parent=1 // loop_pre_header
      _
    $region3: #{backbone_forward.1} parent=1 // loop_header
      %s16 = sphi 0, %s20
      %p17 = scmp.ge.s32.totalorder %s16, 4
      %s24 = sphi 0, %s24
      %s26 = sphi 0, %s24
      %s27 = sphi 0, %s26
      %s41 = sphi 0, %s27
      %s47 = sphi 0, %s49
      %s50 = sphi 0, %s47
      %s51 = sphi 0, %s50
      %s67 = sphi 0, %s51
      %s71 = sphi 0, %s71
      %s73 = sphi 0, %s71
      %s74 = sphi 0, %s73
      %s88 = sphi 0, %s74
      %s92 = sphi 0, %s92
      %s94 = sphi 0, %s92
      %s95 = sphi 0, %s94
      %s109 = sphi 0, %s95
      %s113 = sphi 0, %s113
      %s115 = sphi 0, %s113
      %s116 = sphi 0, %s115
      %s130 = sphi 0, %s116
      %s134 = sphi 0, %s134
      %s136 = sphi 0, %s134
      %s137 = sphi 0, %s136
      %s151 = sphi 0, %s137
      %s157 = sphi 0, %s159
      %s160 = sphi 0, %s157
      %s161 = sphi 0, %s160
      %s177 = sphi 0, %s161
      %s183 = sphi 0, %s185
      %s186 = sphi 0, %s183
      %s187 = sphi 0, %s186
      %s203 = sphi 0, %s187
    $region4: #{backbone_forward.1} parent=1 // loop_header_branch
      %19 = sbr.rel (%p17) target = $region8
    $region5: #{backbone_forward.1} parent=1 // loop_body
      %s21 = ssub.s32 %s16, 1
      %s22 = ssub.s32 %s16, 2
      %s23 = sadd.s32 %s16, 1
      %s25 = sadd.s32 %s24, 1
      %p28 = scmp.eq.s32.totalorder %s16, 1
      %p29 = scmp.ne.s32.totalorder %s24, %s26
      %p30 = scmp.eq.s32.totalorder %s16, 0
      %p31 = por %p29, %p30
      %p32 = scmp.ne.s32.totalorder %s24, %s26
      %p33 = scmp.eq.s32.totalorder %s21, 1
      %p34 = por %p32, %p33
      %p35 = scmp.ne.s32.totalorder %s26, %s27
      %p36 = scmp.eq.s32.totalorder %s21, 0
      %p37 = por %p35, %p36
      %p38 = scmp.ne.s32.totalorder %s26, %s27
      %p39 = scmp.eq.s32.totalorder %s22, 1
      %p40 = por %p38, %p39
      %p42 = scmp.ne.s32.totalorder %s27, %s41
      %p43 = scmp.eq.s32.totalorder %s22, 0
      %p44 = por %p42, %p43
      %s45 = ssub.s32 %s16, %s23
      %p46 = scmp.eq.s32.totalorder %s45, 0
      %s48 = sadd.s32 %s47, 1
      %s49 = scalar_select %p46, %s47, %s48
      %p52 = pneg %p46
      %p53 = scmp.eq.s32.totalorder %s16, 1
      %p54 = por %p52, %p53
      %p55 = scmp.ne.s32.totalorder %s47, %s50
      %p56 = scmp.eq.s32.totalorder %s16, 0
      %p57 = por %p55, %p56
      %p58 = scmp.ne.s32.totalorder %s47, %s50
      %p59 = scmp.eq.s32.totalorder %s21, 1
      %p60 = por %p58, %p59
      %p61 = scmp.ne.s32.totalorder %s50, %s51
      %p62 = scmp.eq.s32.totalorder %s21, 0
      %p63 = por %p61, %p62
      %p64 = scmp.ne.s32.totalorder %s50, %s51
      %p65 = scmp.eq.s32.totalorder %s22, 1
      %p66 = por %p64, %p65
      %p68 = scmp.ne.s32.totalorder %s51, %s67
      %p69 = scmp.eq.s32.totalorder %s22, 0
      %p70 = por %p68, %p69
      %s72 = sadd.s32 %s71, 1
      %p75 = scmp.eq.s32.totalorder %s16, 1
      %p76 = scmp.ne.s32.totalorder %s71, %s73
      %p77 = scmp.eq.s32.totalorder %s16, 0
      %p78 = por %p76, %p77
      %p79 = scmp.ne.s32.totalorder %s71, %s73
      %p80 = scmp.eq.s32.totalorder %s21, 1
      %p81 = por %p79, %p80
      %p82 = scmp.ne.s32.totalorder %s73, %s74
      %p83 = scmp.eq.s32.totalorder %s21, 0
      %p84 = por %p82, %p83
      %p85 = scmp.ne.s32.totalorder %s73, %s74
      %p86 = scmp.eq.s32.totalorder %s22, 1
      %p87 = por %p85, %p86
      %p89 = scmp.ne.s32.totalorder %s74, %s88
      %p90 = scmp.eq.s32.totalorder %s22, 0
      %p91 = por %p89, %p90
      %s93 = sadd.s32 %s92, 1
      %p96 = scmp.eq.s32.totalorder %s16, 1
      %p97 = scmp.ne.s32.totalorder %s92, %s94
      %p98 = scmp.eq.s32.totalorder %s16, 0
      %p99 = por %p97, %p98
      %p100 = scmp.ne.s32.totalorder %s92, %s94
      %p101 = scmp.eq.s32.totalorder %s21, 1
      %p102 = por %p100, %p101
      %p103 = scmp.ne.s32.totalorder %s94, %s95
      %p104 = scmp.eq.s32.totalorder %s21, 0
      %p105 = por %p103, %p104
      %p106 = scmp.ne.s32.totalorder %s94, %s95
      %p107 = scmp.eq.s32.totalorder %s22, 1
      %p108 = por %p106, %p107
      %p110 = scmp.ne.s32.totalorder %s95, %s109
      %p111 = scmp.eq.s32.totalorder %s22, 0
      %p112 = por %p110, %p111
      %s114 = sadd.s32 %s113, 1
      %p117 = scmp.eq.s32.totalorder %s16, 1
      %p118 = scmp.ne.s32.totalorder %s113, %s115
      %p119 = scmp.eq.s32.totalorder %s16, 0
      %p120 = por %p118, %p119
      %p121 = scmp.ne.s32.totalorder %s113, %s115
      %p122 = scmp.eq.s32.totalorder %s21, 1
      %p123 = por %p121, %p122
      %p124 = scmp.ne.s32.totalorder %s115, %s116
      %p125 = scmp.eq.s32.totalorder %s21, 0
      %p126 = por %p124, %p125
      %p127 = scmp.ne.s32.totalorder %s115, %s116
      %p128 = scmp.eq.s32.totalorder %s22, 1
      %p129 = por %p127, %p128
      %p131 = scmp.ne.s32.totalorder %s116, %s130
      %p132 = scmp.eq.s32.totalorder %s22, 0
      %p133 = por %p131, %p132
      %s135 = sadd.s32 %s134, 1
      %p138 = scmp.eq.s32.totalorder %s16, 1
      %p139 = scmp.ne.s32.totalorder %s134, %s136
      %p140 = scmp.eq.s32.totalorder %s16, 0
      %p141 = por %p139, %p140
      %p142 = scmp.ne.s32.totalorder %s134, %s136
      %p143 = scmp.eq.s32.totalorder %s21, 1
      %p144 = por %p142, %p143
      %p145 = scmp.ne.s32.totalorder %s136, %s137
      %p146 = scmp.eq.s32.totalorder %s21, 0
      %p147 = por %p145, %p146
      %p148 = scmp.ne.s32.totalorder %s136, %s137
      %p149 = scmp.eq.s32.totalorder %s22, 1
      %p150 = por %p148, %p149
      %p152 = scmp.ne.s32.totalorder %s137, %s151
      %p153 = scmp.eq.s32.totalorder %s22, 0
      %p154 = por %p152, %p153
      %s155 = ssub.s32 %s16, %s23
      %p156 = scmp.eq.s32.totalorder %s155, 0
      %s158 = sadd.s32 %s157, 1
      %s159 = scalar_select %p156, %s157, %s158
      %p162 = pneg %p156
      %p163 = scmp.eq.s32.totalorder %s16, 1
      %p164 = por %p162, %p163
      %p165 = scmp.ne.s32.totalorder %s157, %s160
      %p166 = scmp.eq.s32.totalorder %s16, 0
      %p167 = por %p165, %p166
      %p168 = scmp.ne.s32.totalorder %s157, %s160
      %p169 = scmp.eq.s32.totalorder %s21, 1
      %p170 = por %p168, %p169
      %p171 = scmp.ne.s32.totalorder %s160, %s161
      %p172 = scmp.eq.s32.totalorder %s21, 0
      %p173 = por %p171, %p172
      %p174 = scmp.ne.s32.totalorder %s160, %s161
      %p175 = scmp.eq.s32.totalorder %s22, 1
      %p176 = por %p174, %p175
      %p178 = scmp.ne.s32.totalorder %s161, %s177
      %p179 = scmp.eq.s32.totalorder %s22, 0
      %p180 = por %p178, %p179
      %s181 = ssub.s32 %s16, %s23
      %p182 = scmp.eq.s32.totalorder %s181, 0
      %s184 = sadd.s32 %s183, 1
      %s185 = scalar_select %p182, %s183, %s184
      %p188 = pneg %p182
      %p189 = scmp.eq.s32.totalorder %s16, 1
      %p190 = por %p188, %p189
      %p191 = scmp.ne.s32.totalorder %s183, %s186
      %p192 = scmp.eq.s32.totalorder %s16, 0
      %p193 = por %p191, %p192
      %p194 = scmp.ne.s32.totalorder %s183, %s186
      %p195 = scmp.eq.s32.totalorder %s21, 1
      %p196 = por %p194, %p195
      %p197 = scmp.ne.s32.totalorder %s186, %s187
      %p198 = scmp.eq.s32.totalorder %s21, 0
      %p199 = por %p197, %p198
      %p200 = scmp.ne.s32.totalorder %s186, %s187
      %p201 = scmp.eq.s32.totalorder %s22, 1
      %p202 = por %p200, %p201
      %p204 = scmp.ne.s32.totalorder %s187, %s203
      %p205 = scmp.eq.s32.totalorder %s22, 0
      %p206 = por %p204, %p205
      %p207 = scmp.le.s32.totalorder 1, %s16
      %p208 = scmp.lt.s32.totalorder %s16, 3
      %p209 = pnand %p207, %p208
      %p210 = pneg %p209
      // Predicated region
      $region9: #{backbone_forward.1} parent=5 // pred_check
        _
      $region10: #{backbone_forward.1} parent=5 // pred_check_branch
        %212 = sbr.rel (%p209) target = $region12
      $region11: #{backbone_forward.1} parent=5 // pred_region
        %s213 = ssub.s32 %s16, 1
        // Predicated region
        $region13: #{backbone_forward.1} parent=11 // pred_check
          %p214 = pneg %p37
        $region14: #{backbone_forward.1} parent=11 // pred_check_branch
          %216 = sbr.rel (%p214) target = $region16
        $region15: #{backbone_forward.1} parent=11 // pred_region
          _
        $region16: #{backbone_forward.1} parent=11 // pred_fallthru
          _
        // Predicated region
        $region17: #{backbone_forward.1} parent=11 // pred_check
          %p217 = pneg %p84
        $region18: #{backbone_forward.1} parent=11 // pred_check_branch
          %219 = sbr.rel (%p217) target = $region20
        $region19: #{backbone_forward.1} parent=11 // pred_region
          %s221 = ssub.s32 2304, 2304
          %222 = vsyncadd [#allocation3], %s221
          %s223 = sshll.u32 [#allocation2], 4
          %s224 = int_to_ptr.vmem [resolvable:$true] %s223
          %229 = dma.hbm_to_vmem [thread:$0]  %s2, 2304, %s224, [#allocation3], 64, 64, 4
        $region20: #{backbone_forward.1} parent=11 // pred_fallthru
          _
        // Predicated region
        $region21: #{backbone_forward.1} parent=11 // pred_check
          %p230 = pneg %p105
        $region22: #{backbone_forward.1} parent=11 // pred_check_branch
          %232 = sbr.rel (%p230) target = $region24
        $region23: #{backbone_forward.1} parent=11 // pred_region
          %s234 = ssub.s32 512, 512
          %235 = vsyncadd [#allocation5], %s234
          %s236 = sshll.u32 [#allocation4], 4
          %s237 = int_to_ptr.vmem [resolvable:$true] %s236
          %242 = dma.hbm_to_vmem [thread:$0]  %s3, 512, %s237, [#allocation5], 128, 128, 8
        $region24: #{backbone_forward.1} parent=11 // pred_fallthru
          _
        // Predicated region
        $region25: #{backbone_forward.1} parent=11 // pred_check
          %p243 = pneg %p126
        $region26: #{backbone_forward.1} parent=11 // pred_check_branch
          %245 = sbr.rel (%p243) target = $region28
        $region27: #{backbone_forward.1} parent=11 // pred_region
          _
        $region28: #{backbone_forward.1} parent=11 // pred_fallthru
          _
        // Predicated region
        $region29: #{backbone_forward.1} parent=11 // pred_check
          %p246 = pneg %p147
        $region30: #{backbone_forward.1} parent=11 // pred_check_branch
          %248 = sbr.rel (%p246) target = $region32
        $region31: #{backbone_forward.1} parent=11 // pred_region
          %s250 = ssub.s32 1024, 1024
          %251 = vsyncadd [#allocation5], %s250
          %s252 = sshll.u32 [#allocation6], 4
          %s253 = int_to_ptr.vmem [resolvable:$true] %s252
          %258 = dma.hbm_to_vmem [thread:$0]  %s5, 1024, %s253, [#allocation5], 128, 128, 8
        $region32: #{backbone_forward.1} parent=11 // pred_fallthru
          _
      $region12: #{backbone_forward.1} parent=5 // pred_fallthru
        _
      %p259 = scmp.lt.s32.totalorder %s16, 2
      // Predicated region
      $region33: #{backbone_forward.1} parent=5 // pred_check
        %p260 = pneg %p259
      $region34: #{backbone_forward.1} parent=5 // pred_check_branch
        %262 = sbr.rel (%p260) target = $region36
      $region35: #{backbone_forward.1} parent=5 // pred_region
        // Predicated region
        $region37: #{backbone_forward.1} parent=35 // pred_check
          %p263 = pneg %p57
        $region38: #{backbone_forward.1} parent=35 // pred_check_branch
          %265 = sbr.rel (%p263) target = $region40
        $region39: #{backbone_forward.1} parent=35 // pred_region
          %p266 = scmp.lt.s32.totalorder %s16, 1
          %s267 = scalar_select %p266, %s16, 1
          %s268 = smul.addr %s267, 2
          %s269 = smul.addr %s268, 2
          %s270 = scalar_lea.vmem %s1, %s269
        $region40: #{backbone_forward.1} parent=35 // pred_fallthru
          _
      $region36: #{backbone_forward.1} parent=5 // pred_fallthru
        _
      %p271 = scmp.le.s32.totalorder 1, %s16
      %p272 = scmp.lt.s32.totalorder %s16, 3
      %p273 = pnand %p271, %p272
      %p274 = pneg %p273
      // Predicated region
      $region41: #{backbone_forward.1} parent=5 // pred_check
        _
      $region42: #{backbone_forward.1} parent=5 // pred_check_branch
        %276 = sbr.rel (%p273) target = $region44
      $region43: #{backbone_forward.1} parent=5 // pred_region
        %s277 = ssub.s32 %s16, 1
        // Predicated region
        $region45: #{backbone_forward.1} parent=43 // pred_check
          %p278 = pneg %p84
        $region46: #{backbone_forward.1} parent=43 // pred_check_branch
          %280 = sbr.rel (%p278) target = $region48
        $region47: #{backbone_forward.1} parent=43 // pred_region
          %281 = dma.done [#allocation3], 2304
        $region48: #{backbone_forward.1} parent=43 // pred_fallthru
          _
        // Predicated region
        $region49: #{backbone_forward.1} parent=43 // pred_check
          %p282 = pneg %p105
        $region50: #{backbone_forward.1} parent=43 // pred_check_branch
          %284 = sbr.rel (%p282) target = $region52
        $region51: #{backbone_forward.1} parent=43 // pred_region
          %285 = dma.done [#allocation5], 512
        $region52: #{backbone_forward.1} parent=43 // pred_fallthru
          _
        // Predicated region
        $region53: #{backbone_forward.1} parent=43 // pred_check
          %p286 = pneg %p147
        $region54: #{backbone_forward.1} parent=43 // pred_check_branch
          %288 = sbr.rel (%p286) target = $region56
        $region55: #{backbone_forward.1} parent=43 // pred_region
          %289 = dma.done [#allocation5], 1024
        $region56: #{backbone_forward.1} parent=43 // pred_fallthru
          _
        %p290 = pneg %p37
        %p291 = pneg %p34
        %p292 = scmp.lt.s32.totalorder %s21, 1
        %s293 = scalar_select %p292, %s21, 1
        %s294 = smul.addr %s293, 2
        %s295 = smul.addr %s294, 2
        %s296 = scalar_lea.vmem %s1, %s295
        %p297 = pneg %p63
        %p298 = pneg %p60
        %p299 = pneg %p84
        %p300 = pneg %p81
        %p301 = pneg %p105
        %p302 = pneg %p102
        %p303 = pneg %p126
        %p304 = pneg %p123
        %p305 = pneg %p147
        %p306 = pneg %p144
        %p307 = pneg %p173
        %p308 = pneg %p170
        %p309 = scmp.lt.s32.totalorder %s21, 1
        %s310 = scalar_select %p309, %s21, 1
        %s311 = smul.addr %s310, 16
        %s312 = smul.addr %s311, 8
        %s313 = scalar_lea.vmem %s6, %s312
        %p314 = pneg %p199
        %p315 = pneg %p196
        %p316 = scmp.lt.s32.totalorder %s21, 1
        %s317 = scalar_select %p316, %s21, 1
        %s318 = smul.addr %s317, 8
        %s319 = smul.addr %s318, 8
        %s320 = scalar_lea.vmem %s7, %s319
        %p321 = scmp.lt.s32.totalorder %s21, 1
        %s322 = scalar_select %p321, %s21, 1
        %s323 = smul.addr %s322, 2
        %s324 = smul.addr %s323, 2
        %s325 = scalar_lea.vmem %s1, %s324
        %p326 = scmp.lt.s32.totalorder %s21, 1
        %s327 = scalar_select %p326, %s21, 1
        %s328 = smul.addr %s327, 16
        %s329 = smul.addr %s328, 8
        %s330 = scalar_lea.vmem %s6, %s329
        %p331 = scmp.lt.s32.totalorder %s21, 1
        %s332 = scalar_select %p331, %s21, 1
        %s333 = smul.addr %s332, 8
        %s334 = smul.addr %s333, 8
        %s335 = scalar_lea.vmem %s7, %s334
        %v337 = vld [vmem:[%s0] ss:$2 sm:$0x3]
        %s338 = scalar_lea.vmem %s0, 1
        %v339 = vld [vmem:[%s338] ss:$2 sm:$0x3]
        %v340 = vld [vmem:[%s325] sm:$0xf]
        %v341 = vunpack.c.l.bf16 %v340
        %v343 = vcombine.high %v341, %v341
        %345 = vrot.lane.b32.xlu0 %v341, 17
        %v346 = vpop.permute.xlu0 %345
        %347 = vrot.lane.b32.xlu0 %v343, 17
        %v348 = vpop.permute.xlu0 %347
        %v349 = vlaneseq
        %v350 = vand.u32 %v349, 127
        %vm351 = vcmp.lt.s32.totalorder %v350, 17
        %v352 = vsel %vm351, %v346, %v348
        %v353 = vsel %vm351, %v348, %v346
        %vm354 = vcmp.ge.s32.totalorder %v337, 1
        %vm355 = vcmp.ge.s32.totalorder %v339, 1
        %vm356 = vmand %vm354, %vm355
        %v357 = vsel %vm356, 1, 0
        %v358 = vlaneseq
        %v359 = vshrl.u32 %v358, 7
        %v360 = vsub.s32 0, %v359
        %v361 = vrot.slane %v357, %v360
        %v362 = vlaneseq
        %v363 = vshrl.u32 %v362, 7
        %v364 = vsub.s32 1, %v363
        %v365 = vrot.slane %v357, %v364
        %vm366 = vcmp.eq.s32.totalorder %v361, 1
        %vm367 = vcmp.eq.s32.totalorder %v365, 1
        %v368 = vsel %vm366, %v353, 0.0
        %v369 = vsel %vm367, %v352, 0.0
        %v370 = vld [vmem:[#allocation2] sm:$0xf]
        %v371 = vld [vmem:[#allocation2 + $0x4] sm:$0xf]
        %v372 = vld [vmem:[#allocation2 + $0x8] sm:$0xf]
        %v373 = vld [vmem:[#allocation2 + $0xc] sm:$0xf]
        %v374 = vpack.c.bf16 %v368, %v368
        %v375 = vpack.c.bf16 %v369, %v369
        %376 = vrot.lane.b32.xlu0 %v341, 16
        %v377 = vpop.permute.xlu0 %376
        %378 = vrot.lane.b32.xlu0 %v343, 16
        %v379 = vpop.permute.xlu0 %378
        %vm380 = vcmp.lt.s32.totalorder %v350, 16
        %v381 = vsel %vm380, %v377, %v379
        %v382 = vsel %vm380, %v379, %v377
        %v383 = vsel %vm354, 1, 0
        %v384 = vlaneseq
        %v385 = vshrl.u32 %v384, 7
        %v386 = vsub.s32 0, %v385
        %v387 = vrot.slane %v383, %v386
        %v388 = vlaneseq
        %v389 = vshrl.u32 %v388, 7
        %v390 = vsub.s32 1, %v389
        %v391 = vrot.slane %v383, %v390
        %vm392 = vcmp.eq.s32.totalorder %v387, 1
        %vm393 = vcmp.eq.s32.totalorder %v391, 1
        %v394 = vsel %vm392, %v382, 0.0
        %v395 = vsel %vm393, %v381, 0.0
        %s396 = scalar_lea.vmem [#allocation2], 16
        %v397 = vld [vmem:[%s396] sm:$0xf]
        %v398 = vld [vmem:[%s396 + $0x4] sm:$0xf]
        %v399 = vld [vmem:[%s396 + $0x8] sm:$0xf]
        %v400 = vld [vmem:[%s396 + $0xc] sm:$0xf]
        %v401 = vpack.c.bf16 %v394, %v394
        %v402 = vpack.c.bf16 %v395, %v395
        %v407 = vunpack.c.l.b16 %v397
        %v408 = vunpack.c.l.b16 %v398
        %v409 = vunpack.c.l.b16 %v399
        %v410 = vunpack.c.l.b16 %v400
        %v411 = vpack.c.b16 %v408, %v407
        %v412 = vpack.c.b16 %v410, %v409
        %vm413 = vcmask 31744
        %v415 = vsel %vm413, %v411, 0
        %v418 = vsel %vm413, %v412, 0
        %vm420 = vcmask 1041408
        %v422 = vsel %vm420, %v401, 0
        %v425 = vsel %vm420, %v402, 0
        %427 = vmatprep.subr.bf16.mxu0 %v425
        %428 = vmatpush1.bf16.msra.mxu0 %v422
        %429 = vmatprep.subr.bf16.mxu0 0
        %430 = vmatpush1.bf16.msra.mxu0 0
        %431 = vmatprep.subr.bf16.mxu0 0
        %432 = vmatpush1.bf16.msra.mxu0 0
        %433 = vmatprep.subr.bf16.mxu0 0
        %434 = vmatpush1.bf16.msra.mxu0 0
        %435 = vmatprep.subr.bf16.mxu0 0
        %436 = vmatpush1.bf16.msra.mxu0 0
        %437 = vmatprep.subr.bf16.mxu0 0
        %438 = vmatpush1.bf16.msra.mxu0 0
        %439 = vmatprep.subr.bf16.mxu0 0
        %440 = vmatpush1.bf16.msra.mxu0 0
        %441 = vmatprep.subr.bf16.mxu0 0
        %442 = vmatpush1.bf16.msra.mxu0 0
        %443 = vmatprep.subr.bf16.mxu0 0
        %444 = vmatpush1.bf16.msra.mxu0 0
        %445 = vmatprep.subr.bf16.mxu0 0
        %446 = vmatpush1.bf16.msra.mxu0 0
        %447 = vmatprep.subr.bf16.mxu0 0
        %448 = vmatpush1.bf16.msra.mxu0 0
        %449 = vmatprep.subr.bf16.mxu0 0
        %450 = vmatpush1.bf16.msra.mxu0 0
        %451 = vmatprep.subr.bf16.mxu0 0
        %452 = vmatpush1.bf16.msra.mxu0 0
        %453 = vmatprep.subr.bf16.mxu0 0
        %454 = vmatpush1.bf16.msra.mxu0 0
        %455 = vmatprep.subr.bf16.mxu0 0
        %456 = vmatpush1.bf16.msra.mxu0 0
        %457 = vmatprep.subr.bf16.mxu0 0
        %458 = vmatpush1.bf16.msra.mxu0 0
        %459 = vmatprep.mubr.bf16.mxu0 0
        %460 = vmatmul.mubr.bf16.gmra.mrb[0].mxu0 %v415
        %v461 = vpop.f32.mrb[0].mxu0
        %v462 = vadd.f32 0.0, %v461
        %v463 = vpop.f32.mrb[0].mxu0
        %v464 = vadd.f32 0.0, %v463
        %v465 = vpop.f32.mrb[0].mxu0
        %v466 = vadd.f32 0.0, %v465
        %v467 = vpop.f32.mrb[0].mxu0
        %v468 = vadd.f32 0.0, %v467
        %469 = vmatprep.mubr.bf16.mxu0 0
        %470 = vmatmul.mubr.bf16.gmra.mrb[0].mxu0 %v418
        %v471 = vpop.f32.mrb[0].mxu0
        %v472 = vadd.f32 0.0, %v471
        %v473 = vpop.f32.mrb[0].mxu0
        %v474 = vadd.f32 0.0, %v473
        %v475 = vpop.f32.mrb[0].mxu0
        %v476 = vadd.f32 0.0, %v475
        %v477 = vpop.f32.mrb[0].mxu0
        %v478 = vadd.f32 0.0, %v477
        %479 = vdwg.mxu0
        %v484 = vunpack.c.l.b16 %v370
        %v485 = vunpack.c.l.b16 %v371
        %v486 = vunpack.c.l.b16 %v372
        %v487 = vunpack.c.l.b16 %v373
        %v488 = vpack.c.b16 %v485, %v484
        %v489 = vpack.c.b16 %v487, %v486
        %v491 = vsel %vm413, %v488, 0
        %v494 = vsel %vm413, %v489, 0
        %v497 = vsel %vm420, %v374, 0
        %v500 = vsel %vm420, %v375, 0
        %502 = vmatprep.subr.bf16.mxu0 %v500
        %503 = vmatpush1.bf16.msra.mxu0 %v497
        %504 = vmatprep.subr.bf16.mxu0 0
        %505 = vmatpush1.bf16.msra.mxu0 0
        %506 = vmatprep.subr.bf16.mxu0 0
        %507 = vmatpush1.bf16.msra.mxu0 0
        %508 = vmatprep.subr.bf16.mxu0 0
        %509 = vmatpush1.bf16.msra.mxu0 0
        %510 = vmatprep.subr.bf16.mxu0 0
        %511 = vmatpush1.bf16.msra.mxu0 0
        %512 = vmatprep.subr.bf16.mxu0 0
        %513 = vmatpush1.bf16.msra.mxu0 0
        %514 = vmatprep.subr.bf16.mxu0 0
        %515 = vmatpush1.bf16.msra.mxu0 0
        %516 = vmatprep.subr.bf16.mxu0 0
        %517 = vmatpush1.bf16.msra.mxu0 0
        %518 = vmatprep.subr.bf16.mxu0 0
        %519 = vmatpush1.bf16.msra.mxu0 0
        %520 = vmatprep.subr.bf16.mxu0 0
        %521 = vmatpush1.bf16.msra.mxu0 0
        %522 = vmatprep.subr.bf16.mxu0 0
        %523 = vmatpush1.bf16.msra.mxu0 0
        %524 = vmatprep.subr.bf16.mxu0 0
        %525 = vmatpush1.bf16.msra.mxu0 0
        %526 = vmatprep.subr.bf16.mxu0 0
        %527 = vmatpush1.bf16.msra.mxu0 0
        %528 = vmatprep.subr.bf16.mxu0 0
        %529 = vmatpush1.bf16.msra.mxu0 0
        %530 = vmatprep.subr.bf16.mxu0 0
        %531 = vmatpush1.bf16.msra.mxu0 0
        %532 = vmatprep.subr.bf16.mxu0 0
        %533 = vmatpush1.bf16.msra.mxu0 0
        %534 = vmatprep.mubr.bf16.mxu0 0
        %535 = vmatmul.mubr.bf16.gmra.mrb[0].mxu0 %v491
        %v536 = vpop.f32.mrb[0].mxu0
        %v537 = vadd.f32 %v462, %v536
        %v538 = vpop.f32.mrb[0].mxu0
        %v539 = vadd.f32 %v464, %v538
        %v540 = vpop.f32.mrb[0].mxu0
        %v541 = vadd.f32 %v466, %v540
        %v542 = vpop.f32.mrb[0].mxu0
        %v543 = vadd.f32 %v468, %v542
        %544 = vmatprep.mubr.bf16.mxu0 0
        %545 = vmatmul.mubr.bf16.gmra.mrb[0].mxu0 %v494
        %v546 = vpop.f32.mrb[0].mxu0
        %v547 = vadd.f32 %v472, %v546
        %v548 = vpop.f32.mrb[0].mxu0
        %v549 = vadd.f32 %v474, %v548
        %v550 = vpop.f32.mrb[0].mxu0
        %v551 = vadd.f32 %v476, %v550
        %v552 = vpop.f32.mrb[0].mxu0
        %v553 = vadd.f32 %v478, %v552
        %554 = vdwg.mxu0
        %555 = vrot.lane.b32.xlu0 %v341, 15
        %v556 = vpop.permute.xlu0 %555
        %557 = vrot.lane.b32.xlu0 %v343, 15
        %v558 = vpop.permute.xlu0 %557
        %vm559 = vcmp.lt.s32.totalorder %v350, 15
        %v560 = vsel %vm559, %v556, %v558
        %v561 = vsel %vm559, %v558, %v556
        %vm562 = vcmp.lt.s32.totalorder %v339, 15
        %vm563 = vmand %vm354, %vm562
        %v564 = vsel %vm563, 1, 0
        %v565 = vlaneseq
        %v566 = vshrl.u32 %v565, 7
        %v567 = vsub.s32 0, %v566
        %v568 = vrot.slane %v564, %v567
        %v569 = vlaneseq
        %v570 = vshrl.u32 %v569, 7
        %v571 = vsub.s32 1, %v570
        %v572 = vrot.slane %v564, %v571
        %vm573 = vcmp.eq.s32.totalorder %v568, 1
        %vm574 = vcmp.eq.s32.totalorder %v572, 1
        %v575 = vsel %vm573, %v561, 0.0
        %v576 = vsel %vm574, %v560, 0.0
        %s577 = scalar_lea.vmem [#allocation2], 32
        %v578 = vld [vmem:[%s577] sm:$0xf]
        %v579 = vld [vmem:[%s577 + $0x4] sm:$0xf]
        %v580 = vld [vmem:[%s577 + $0x8] sm:$0xf]
        %v581 = vld [vmem:[%s577 + $0xc] sm:$0xf]
        %v582 = vpack.c.bf16 %v575, %v575
        %v583 = vpack.c.bf16 %v576, %v576
        %v588 = vunpack.c.l.b16 %v578
        %v589 = vunpack.c.l.b16 %v579
        %v590 = vunpack.c.l.b16 %v580
        %v591 = vunpack.c.l.b16 %v581
        %v592 = vpack.c.b16 %v589, %v588
        %v593 = vpack.c.b16 %v591, %v590
        %v595 = vsel %vm413, %v592, 0
        %v598 = vsel %vm413, %v593, 0
        %v601 = vsel %vm420, %v582, 0
        %v604 = vsel %vm420, %v583, 0
        %606 = vmatprep.subr.bf16.mxu0 %v604
        %607 = vmatpush1.bf16.msra.mxu0 %v601
        %608 = vmatprep.subr.bf16.mxu0 0
        %609 = vmatpush1.bf16.msra.mxu0 0
        %610 = vmatprep.subr.bf16.mxu0 0
        %611 = vmatpush1.bf16.msra.mxu0 0
        %612 = vmatprep.subr.bf16.mxu0 0
        %613 = vmatpush1.bf16.msra.mxu0 0
        %614 = vmatprep.subr.bf16.mxu0 0
        %615 = vmatpush1.bf16.msra.mxu0 0
        %616 = vmatprep.subr.bf16.mxu0 0
        %617 = vmatpush1.bf16.msra.mxu0 0
        %618 = vmatprep.subr.bf16.mxu0 0
        %619 = vmatpush1.bf16.msra.mxu0 0
        %620 = vmatprep.subr.bf16.mxu0 0
        %621 = vmatpush1.bf16.msra.mxu0 0
        %622 = vmatprep.subr.bf16.mxu0 0
        %623 = vmatpush1.bf16.msra.mxu0 0
        %624 = vmatprep.subr.bf16.mxu0 0
        %625 = vmatpush1.bf16.msra.mxu0 0
        %626 = vmatprep.subr.bf16.mxu0 0
        %627 = vmatpush1.bf16.msra.mxu0 0
        %628 = vmatprep.subr.bf16.mxu0 0
        %629 = vmatpush1.bf16.msra.mxu0 0
        %630 = vmatprep.subr.bf16.mxu0 0
        %631 = vmatpush1.bf16.msra.mxu0 0
        %632 = vmatprep.subr.bf16.mxu0 0
        %633 = vmatpush1.bf16.msra.mxu0 0
        %634 = vmatprep.subr.bf16.mxu0 0
        %635 = vmatpush1.bf16.msra.mxu0 0
        %636 = vmatprep.subr.bf16.mxu0 0
        %637 = vmatpush1.bf16.msra.mxu0 0
        %638 = vmatprep.mubr.bf16.mxu0 0
        %639 = vmatmul.mubr.bf16.gmra.mrb[0].mxu0 %v595
        %v640 = vpop.f32.mrb[0].mxu0
        %v641 = vadd.f32 0.0, %v640
        %v642 = vpop.f32.mrb[0].mxu0
        %v643 = vadd.f32 0.0, %v642
        %v644 = vpop.f32.mrb[0].mxu0
        %v645 = vadd.f32 0.0, %v644
        %v646 = vpop.f32.mrb[0].mxu0
        %v647 = vadd.f32 0.0, %v646
        %648 = vmatprep.mubr.bf16.mxu0 0
        %649 = vmatmul.mubr.bf16.gmra.mrb[0].mxu0 %v598
        %v650 = vpop.f32.mrb[0].mxu0
        %v651 = vadd.f32 0.0, %v650
        %v652 = vpop.f32.mrb[0].mxu0
        %v653 = vadd.f32 0.0, %v652
        %v654 = vpop.f32.mrb[0].mxu0
        %v655 = vadd.f32 0.0, %v654
        %v656 = vpop.f32.mrb[0].mxu0
        %v657 = vadd.f32 0.0, %v656
        %658 = vdwg.mxu0
        %v659 = vadd.f32 %v537, %v641
        %v660 = vadd.f32 %v539, %v643
        %v661 = vadd.f32 %v541, %v645
        %v662 = vadd.f32 %v543, %v647
        %v663 = vadd.f32 %v547, %v651
        %v664 = vadd.f32 %v549, %v653
        %v665 = vadd.f32 %v551, %v655
        %v666 = vadd.f32 %v553, %v657
        %667 = vrot.lane.b32.xlu0 %v341, 1
        %v668 = vpop.permute.xlu0 %667
        %669 = vrot.lane.b32.xlu0 %v343, 1
        %v670 = vpop.permute.xlu0 %669
        %vm671 = vcmp.lt.s32.totalorder %v350, 1
        %v672 = vsel %vm671, %v668, %v670
        %v673 = vsel %vm671, %v670, %v668
        %v674 = vsel %vm355, 1, 0
        %v675 = vlaneseq
        %v676 = vshrl.u32 %v675, 7
        %v677 = vsub.s32 0, %v676
        %v678 = vrot.slane %v674, %v677
        %v679 = vlaneseq
        %v680 = vshrl.u32 %v679, 7
        %v681 = vsub.s32 1, %v680
        %v682 = vrot.slane %v674, %v681
        %vm683 = vcmp.eq.s32.totalorder %v678, 1
        %vm684 = vcmp.eq.s32.totalorder %v682, 1
        %v685 = vsel %vm683, %v673, 0.0
        %v686 = vsel %vm684, %v672, 0.0
        %s687 = scalar_lea.vmem [#allocation2], 48
        %v688 = vld [vmem:[%s687] sm:$0xf]
        %v689 = vld [vmem:[%s687 + $0x4] sm:$0xf]
        %v690 = vld [vmem:[%s687 + $0x8] sm:$0xf]
        %v691 = vld [vmem:[%s687 + $0xc] sm:$0xf]
        %v692 = vpack.c.bf16 %v685, %v685
        %v693 = vpack.c.bf16 %v686, %v686
        %v698 = vunpack.c.l.b16 %v688
        %v699 = vunpack.c.l.b16 %v689
        %v700 = vunpack.c.l.b16 %v690
        %v701 = vunpack.c.l.b16 %v691
        %v702 = vpack.c.b16 %v699, %v698
        %v703 = vpack.c.b16 %v701, %v700
        %v705 = vsel %vm413, %v702, 0
        %v708 = vsel %vm413, %v703, 0
        %v711 = vsel %vm420, %v692, 0
        %v714 = vsel %vm420, %v693, 0
        %716 = vmatprep.subr.bf16.mxu0 %v714
        %717 = vmatpush1.bf16.msra.mxu0 %v711
        %718 = vmatprep.subr.bf16.mxu0 0
        %719 = vmatpush1.bf16.msra.mxu0 0
        %720 = vmatprep.subr.bf16.mxu0 0
        %721 = vmatpush1.bf16.msra.mxu0 0
        %722 = vmatprep.subr.bf16.mxu0 0
        %723 = vmatpush1.bf16.msra.mxu0 0
        %724 = vmatprep.subr.bf16.mxu0 0
        %725 = vmatpush1.bf16.msra.mxu0 0
        %726 = vmatprep.subr.bf16.mxu0 0
        %727 = vmatpush1.bf16.msra.mxu0 0
        %728 = vmatprep.subr.bf16.mxu0 0
        %729 = vmatpush1.bf16.msra.mxu0 0
        %730 = vmatprep.subr.bf16.mxu0 0
        %731 = vmatpush1.bf16.msra.mxu0 0
        %732 = vmatprep.subr.bf16.mxu0 0
        %733 = vmatpush1.bf16.msra.mxu0 0
        %734 = vmatprep.subr.bf16.mxu0 0
        %735 = vmatpush1.bf16.msra.mxu0 0
        %736 = vmatprep.subr.bf16.mxu0 0
        %737 = vmatpush1.bf16.msra.mxu0 0
        %738 = vmatprep.subr.bf16.mxu0 0
        %739 = vmatpush1.bf16.msra.mxu0 0
        %740 = vmatprep.subr.bf16.mxu0 0
        %741 = vmatpush1.bf16.msra.mxu0 0
        %742 = vmatprep.subr.bf16.mxu0 0
        %743 = vmatpush1.bf16.msra.mxu0 0
        %744 = vmatprep.subr.bf16.mxu0 0
        %745 = vmatpush1.bf16.msra.mxu0 0
        %746 = vmatprep.subr.bf16.mxu0 0
        %747 = vmatpush1.bf16.msra.mxu0 0
        %748 = vmatprep.mubr.bf16.mxu0 0
        %749 = vmatmul.mubr.bf16.gmra.mrb[0].mxu0 %v705
        %v750 = vpop.f32.mrb[0].mxu0
        %v751 = vadd.f32 0.0, %v750
        %v752 = vpop.f32.mrb[0].mxu0
        %v753 = vadd.f32 0.0, %v752
        %v754 = vpop.f32.mrb[0].mxu0
        %v755 = vadd.f32 0.0, %v754
        %v756 = vpop.f32.mrb[0].mxu0
        %v757 = vadd.f32 0.0, %v756
        %758 = vmatprep.mubr.bf16.mxu0 0
        %759 = vmatmul.mubr.bf16.gmra.mrb[0].mxu0 %v708
        %v760 = vpop.f32.mrb[0].mxu0
        %v761 = vadd.f32 0.0, %v760
        %v762 = vpop.f32.mrb[0].mxu0
        %v763 = vadd.f32 0.0, %v762
        %v764 = vpop.f32.mrb[0].mxu0
        %v765 = vadd.f32 0.0, %v764
        %v766 = vpop.f32.mrb[0].mxu0
        %v767 = vadd.f32 0.0, %v766
        %768 = vdwg.mxu0
        %v769 = vadd.f32 %v659, %v751
        %v770 = vadd.f32 %v660, %v753
        %v771 = vadd.f32 %v661, %v755
        %v772 = vadd.f32 %v662, %v757
        %v773 = vadd.f32 %v663, %v761
        %v774 = vadd.f32 %v664, %v763
        %v775 = vadd.f32 %v665, %v765
        %v776 = vadd.f32 %v666, %v767
        %s777 = scalar_lea.vmem [#allocation2], 64
        %v778 = vld [vmem:[%s777] sm:$0xf]
        %v779 = vld [vmem:[%s777 + $0x4] sm:$0xf]
        %v780 = vld [vmem:[%s777 + $0x8] sm:$0xf]
        %v781 = vld [vmem:[%s777 + $0xc] sm:$0xf]
        %v786 = vunpack.c.l.b16 %v778
        %v787 = vunpack.c.l.b16 %v779
        %v788 = vunpack.c.l.b16 %v780
        %v789 = vunpack.c.l.b16 %v781
        %v790 = vpack.c.b16 %v787, %v786
        %v791 = vpack.c.b16 %v789, %v788
        %v794 = vunpack.c.l.s4 1983009808
        %v795 = vunpack.c.0.s8 %v794
        %v796 = vlaneseq
        %v797 = vshrl.u32 %v796, 7
        %v798 = vsub.s32 %v795, %v797
        %v799 = vrot.slane %v340, %v798
        %v800 = vcombine.high %v799, %v799
        %v802 = vsel %vm413, %v790, 0
        %v805 = vsel %vm413, %v791, 0
        %v808 = vsel %vm420, %v799, 0
        %v811 = vsel %vm420, %v800, 0
        %813 = vmatprep.subr.bf16.mxu0 %v811
        %814 = vmatpush1.bf16.msra.mxu0 %v808
        %815 = vmatprep.subr.bf16.mxu0 0
        %816 = vmatpush1.bf16.msra.mxu0 0
        %817 = vmatprep.subr.bf16.mxu0 0
        %818 = vmatpush1.bf16.msra.mxu0 0
        %819 = vmatprep.subr.bf16.mxu0 0
        %820 = vmatpush1.bf16.msra.mxu0 0
        %821 = vmatprep.subr.bf16.mxu0 0
        %822 = vmatpush1.bf16.msra.mxu0 0
        %823 = vmatprep.subr.bf16.mxu0 0
        %824 = vmatpush1.bf16.msra.mxu0 0
        %825 = vmatprep.subr.bf16.mxu0 0
        %826 = vmatpush1.bf16.msra.mxu0 0
        %827 = vmatprep.subr.bf16.mxu0 0
        %828 = vmatpush1.bf16.msra.mxu0 0
        %829 = vmatprep.subr.bf16.mxu0 0
        %830 = vmatpush1.bf16.msra.mxu0 0
        %831 = vmatprep.subr.bf16.mxu0 0
        %832 = vmatpush1.bf16.msra.mxu0 0
        %833 = vmatprep.subr.bf16.mxu0 0
        %834 = vmatpush1.bf16.msra.mxu0 0
        %835 = vmatprep.subr.bf16.mxu0 0
        %836 = vmatpush1.bf16.msra.mxu0 0
        %837 = vmatprep.subr.bf16.mxu0 0
        %838 = vmatpush1.bf16.msra.mxu0 0
        %839 = vmatprep.subr.bf16.mxu0 0
        %840 = vmatpush1.bf16.msra.mxu0 0
        %841 = vmatprep.subr.bf16.mxu0 0
        %842 = vmatpush1.bf16.msra.mxu0 0
        %843 = vmatprep.subr.bf16.mxu0 0
        %844 = vmatpush1.bf16.msra.mxu0 0
        %845 = vmatprep.mubr.bf16.mxu0 0
        %846 = vmatmul.mubr.bf16.gmra.mrb[0].mxu0 %v802
        %v847 = vpop.f32.mrb[0].mxu0
        %v848 = vadd.f32 0.0, %v847
        %v849 = vpop.f32.mrb[0].mxu0
        %v850 = vadd.f32 0.0, %v849
        %v851 = vpop.f32.mrb[0].mxu0
        %v852 = vadd.f32 0.0, %v851
        %v853 = vpop.f32.mrb[0].mxu0
        %v854 = vadd.f32 0.0, %v853
        %855 = vmatprep.mubr.bf16.mxu0 0
        %856 = vmatmul.mubr.bf16.gmra.mrb[0].mxu0 %v805
        %v857 = vpop.f32.mrb[0].mxu0
        %v858 = vadd.f32 0.0, %v857
        %v859 = vpop.f32.mrb[0].mxu0
        %v860 = vadd.f32 0.0, %v859
        %v861 = vpop.f32.mrb[0].mxu0
        %v862 = vadd.f32 0.0, %v861
        %v863 = vpop.f32.mrb[0].mxu0
        %v864 = vadd.f32 0.0, %v863
        %865 = vdwg.mxu0
        %v866 = vadd.f32 %v769, %v848
        %v867 = vadd.f32 %v770, %v850
        %v868 = vadd.f32 %v771, %v852
        %v869 = vadd.f32 %v772, %v854
        %v870 = vadd.f32 %v773, %v858
        %v871 = vadd.f32 %v774, %v860
        %v872 = vadd.f32 %v775, %v862
        %v873 = vadd.f32 %v776, %v864
        %874 = vrot.lane.b32.xlu0 %v341, 127
        %v875 = vpop.permute.xlu0 %874
        %876 = vrot.lane.b32.xlu0 %v343, 127
        %v877 = vpop.permute.xlu0 %876
        %vm878 = vcmp.lt.s32.totalorder %v350, 127
        %v879 = vsel %vm878, %v875, %v877
        %v880 = vsel %vm878, %v877, %v875
        %v881 = vsel %vm562, 1, 0
        %v882 = vlaneseq
        %v883 = vshrl.u32 %v882, 7
        %v884 = vsub.s32 0, %v883
        %v885 = vrot.slane %v881, %v884
        %v886 = vlaneseq
        %v887 = vshrl.u32 %v886, 7
        %v888 = vsub.s32 1, %v887
        %v889 = vrot.slane %v881, %v888
        %vm890 = vcmp.eq.s32.totalorder %v885, 1
        %vm891 = vcmp.eq.s32.totalorder %v889, 1
        %v892 = vsel %vm890, %v879, 0.0
        %v893 = vsel %vm891, %v880, 0.0
        %s894 = scalar_lea.vmem [#allocation2], 80
        %v895 = vld [vmem:[%s894] sm:$0xf]
        %v896 = vld [vmem:[%s894 + $0x4] sm:$0xf]
        %v897 = vld [vmem:[%s894 + $0x8] sm:$0xf]
        %v898 = vld [vmem:[%s894 + $0xc] sm:$0xf]
        %v899 = vpack.c.bf16 %v892, %v892
        %v900 = vpack.c.bf16 %v893, %v893
        %v905 = vunpack.c.l.b16 %v895
        %v906 = vunpack.c.l.b16 %v896
        %v907 = vunpack.c.l.b16 %v897
        %v908 = vunpack.c.l.b16 %v898
        %v909 = vpack.c.b16 %v906, %v905
        %v910 = vpack.c.b16 %v908, %v907
        %v912 = vsel %vm413, %v909, 0
        %v915 = vsel %vm413, %v910, 0
        %v918 = vsel %vm420, %v899, 0
        %v921 = vsel %vm420, %v900, 0
        %923 = vmatprep.subr.bf16.mxu0 %v921
        %924 = vmatpush1.bf16.msra.mxu0 %v918
        %925 = vmatprep.subr.bf16.mxu0 0
        %926 = vmatpush1.bf16.msra.mxu0 0
        %927 = vmatprep.subr.bf16.mxu0 0
        %928 = vmatpush1.bf16.msra.mxu0 0
        %929 = vmatprep.subr.bf16.mxu0 0
        %930 = vmatpush1.bf16.msra.mxu0 0
        %931 = vmatprep.subr.bf16.mxu0 0
        %932 = vmatpush1.bf16.msra.mxu0 0
        %933 = vmatprep.subr.bf16.mxu0 0
        %934 = vmatpush1.bf16.msra.mxu0 0
        %935 = vmatprep.subr.bf16.mxu0 0
        %936 = vmatpush1.bf16.msra.mxu0 0
        %937 = vmatprep.subr.bf16.mxu0 0
        %938 = vmatpush1.bf16.msra.mxu0 0
        %939 = vmatprep.subr.bf16.mxu0 0
        %940 = vmatpush1.bf16.msra.mxu0 0
        %941 = vmatprep.subr.bf16.mxu0 0
        %942 = vmatpush1.bf16.msra.mxu0 0
        %943 = vmatprep.subr.bf16.mxu0 0
        %944 = vmatpush1.bf16.msra.mxu0 0
        %945 = vmatprep.subr.bf16.mxu0 0
        %946 = vmatpush1.bf16.msra.mxu0 0
        %947 = vmatprep.subr.bf16.mxu0 0
        %948 = vmatpush1.bf16.msra.mxu0 0
        %949 = vmatprep.subr.bf16.mxu0 0
        %950 = vmatpush1.bf16.msra.mxu0 0
        %951 = vmatprep.subr.bf16.mxu0 0
        %952 = vmatpush1.bf16.msra.mxu0 0
        %953 = vmatprep.subr.bf16.mxu0 0
        %954 = vmatpush1.bf16.msra.mxu0 0
        %955 = vmatprep.mubr.bf16.mxu0 0
        %956 = vmatmul.mubr.bf16.gmra.mrb[0].mxu0 %v912
        %v957 = vpop.f32.mrb[0].mxu0
        %v958 = vadd.f32 0.0, %v957
        %v959 = vpop.f32.mrb[0].mxu0
        %v960 = vadd.f32 0.0, %v959
        %v961 = vpop.f32.mrb[0].mxu0
        %v962 = vadd.f32 0.0, %v961
        %v963 = vpop.f32.mrb[0].mxu0
        %v964 = vadd.f32 0.0, %v963
        %965 = vmatprep.mubr.bf16.mxu0 0
        %966 = vmatmul.mubr.bf16.gmra.mrb[0].mxu0 %v915
        %v967 = vpop.f32.mrb[0].mxu0
        %v968 = vadd.f32 0.0, %v967
        %v969 = vpop.f32.mrb[0].mxu0
        %v970 = vadd.f32 0.0, %v969
        %v971 = vpop.f32.mrb[0].mxu0
        %v972 = vadd.f32 0.0, %v971
        %v973 = vpop.f32.mrb[0].mxu0
        %v974 = vadd.f32 0.0, %v973
        %975 = vdwg.mxu0
        %v976 = vadd.f32 %v866, %v958
        %v977 = vadd.f32 %v867, %v960
        %v978 = vadd.f32 %v868, %v962
        %v979 = vadd.f32 %v869, %v964
        %v980 = vadd.f32 %v870, %v968
        %v981 = vadd.f32 %v871, %v970
        %v982 = vadd.f32 %v872, %v972
        %v983 = vadd.f32 %v873, %v974
        %984 = vrot.lane.b32.xlu0 %v341, 113
        %v985 = vpop.permute.xlu0 %984
        %986 = vrot.lane.b32.xlu0 %v343, 113
        %v987 = vpop.permute.xlu0 %986
        %vm988 = vcmp.lt.s32.totalorder %v350, 113
        %v989 = vsel %vm988, %v985, %v987
        %v990 = vsel %vm988, %v987, %v985
        %vm991 = vcmp.lt.s32.totalorder %v337, 15
        %vm992 = vmand %vm991, %vm355
        %v993 = vsel %vm992, 1, 0
        %v994 = vlaneseq
        %v995 = vshrl.u32 %v994, 7
        %v996 = vsub.s32 0, %v995
        %v997 = vrot.slane %v993, %v996
        %v998 = vlaneseq
        %v999 = vshrl.u32 %v998, 7
        %v1000 = vsub.s32 1, %v999
        %v1001 = vrot.slane %v993, %v1000
        %vm1002 = vcmp.eq.s32.totalorder %v997, 1
        %vm1003 = vcmp.eq.s32.totalorder %v1001, 1
        %v1004 = vsel %vm1002, %v989, 0.0
        %v1005 = vsel %vm1003, %v990, 0.0
        %s1006 = scalar_lea.vmem [#allocation2], 96
        %v1007 = vld [vmem:[%s1006] sm:$0xf]
        %v1008 = vld [vmem:[%s1006 + $0x4] sm:$0xf]
        %v1009 = vld [vmem:[%s1006 + $0x8] sm:$0xf]
        %v1010 = vld [vmem:[%s1006 + $0xc] sm:$0xf]
        %v1011 = vpack.c.bf16 %v1004, %v1004
        %v1012 = vpack.c.bf16 %v1005, %v1005
        %v1017 = vunpack.c.l.b16 %v1007
        %v1018 = vunpack.c.l.b16 %v1008
        %v1019 = vunpack.c.l.b16 %v1009
        %v1020 = vunpack.c.l.b16 %v1010
        %v1021 = vpack.c.b16 %v1018, %v1017
        %v1022 = vpack.c.b16 %v1020, %v1019
        %v1024 = vsel %vm413, %v1021, 0
        %v1027 = vsel %vm413, %v1022, 0
        %v1030 = vsel %vm420, %v1011, 0
        %v1033 = vsel %vm420, %v1012, 0
        %1035 = vmatprep.subr.bf16.mxu0 %v1033
        %1036 = vmatpush1.bf16.msra.mxu0 %v1030
        %1037 = vmatprep.subr.bf16.mxu0 0
        %1038 = vmatpush1.bf16.msra.mxu0 0
        %1039 = vmatprep.subr.bf16.mxu0 0
        %1040 = vmatpush1.bf16.msra.mxu0 0
        %1041 = vmatprep.subr.bf16.mxu0 0
        %1042 = vmatpush1.bf16.msra.mxu0 0
        %1043 = vmatprep.subr.bf16.mxu0 0
        %1044 = vmatpush1.bf16.msra.mxu0 0
        %1045 = vmatprep.subr.bf16.mxu0 0
        %1046 = vmatpush1.bf16.msra.mxu0 0
        %1047 = vmatprep.subr.bf16.mxu0 0
        %1048 = vmatpush1.bf16.msra.mxu0 0
        %1049 = vmatprep.subr.bf16.mxu0 0
        %1050 = vmatpush1.bf16.msra.mxu0 0
        %1051 = vmatprep.subr.bf16.mxu0 0
        %1052 = vmatpush1.bf16.msra.mxu0 0
        %1053 = vmatprep.subr.bf16.mxu0 0
        %1054 = vmatpush1.bf16.msra.mxu0 0
        %1055 = vmatprep.subr.bf16.mxu0 0
        %1056 = vmatpush1.bf16.msra.mxu0 0
        %1057 = vmatprep.subr.bf16.mxu0 0
        %1058 = vmatpush1.bf16.msra.mxu0 0
        %1059 = vmatprep.subr.bf16.mxu0 0
        %1060 = vmatpush1.bf16.msra.mxu0 0
        %1061 = vmatprep.subr.bf16.mxu0 0
        %1062 = vmatpush1.bf16.msra.mxu0 0
        %1063 = vmatprep.subr.bf16.mxu0 0
        %1064 = vmatpush1.bf16.msra.mxu0 0
        %1065 = vmatprep.subr.bf16.mxu0 0
        %1066 = vmatpush1.bf16.msra.mxu0 0
        %1067 = vmatprep.mubr.bf16.mxu0 0
        %1068 = vmatmul.mubr.bf16.gmra.mrb[0].mxu0 %v1024
        %v1069 = vpop.f32.mrb[0].mxu0
        %v1070 = vadd.f32 0.0, %v1069
        %v1071 = vpop.f32.mrb[0].mxu0
        %v1072 = vadd.f32 0.0, %v1071
        %v1073 = vpop.f32.mrb[0].mxu0
        %v1074 = vadd.f32 0.0, %v1073
        %v1075 = vpop.f32.mrb[0].mxu0
        %v1076 = vadd.f32 0.0, %v1075
        %1077 = vmatprep.mubr.bf16.mxu0 0
        %1078 = vmatmul.mubr.bf16.gmra.mrb[0].mxu0 %v1027
        %v1079 = vpop.f32.mrb[0].mxu0
        %v1080 = vadd.f32 0.0, %v1079
        %v1081 = vpop.f32.mrb[0].mxu0
        %v1082 = vadd.f32 0.0, %v1081
        %v1083 = vpop.f32.mrb[0].mxu0
        %v1084 = vadd.f32 0.0, %v1083
        %v1085 = vpop.f32.mrb[0].mxu0
        %v1086 = vadd.f32 0.0, %v1085
        %1087 = vdwg.mxu0
        %v1088 = vadd.f32 %v976, %v1070
        %v1089 = vadd.f32 %v977, %v1072
        %v1090 = vadd.f32 %v978, %v1074
        %v1091 = vadd.f32 %v979, %v1076
        %v1092 = vadd.f32 %v980, %v1080
        %v1093 = vadd.f32 %v981, %v1082
        %v1094 = vadd.f32 %v982, %v1084
        %v1095 = vadd.f32 %v983, %v1086
        %1096 = vrot.lane.b32.xlu0 %v341, 112
        %v1097 = vpop.permute.xlu0 %1096
        %1098 = vrot.lane.b32.xlu0 %v343, 112
        %v1099 = vpop.permute.xlu0 %1098
        %vm1100 = vcmp.lt.s32.totalorder %v350, 112
        %v1101 = vsel %vm1100, %v1097, %v1099
        %v1102 = vsel %vm1100, %v1099, %v1097
        %v1103 = vsel %vm991, 1, 0
        %v1104 = vlaneseq
        %v1105 = vshrl.u32 %v1104, 7
        %v1106 = vsub.s32 0, %v1105
        %v1107 = vrot.slane %v1103, %v1106
        %v1108 = vlaneseq
        %v1109 = vshrl.u32 %v1108, 7
        %v1110 = vsub.s32 1, %v1109
        %v1111 = vrot.slane %v1103, %v1110
        %vm1112 = vcmp.eq.s32.totalorder %v1107, 1
        %vm1113 = vcmp.eq.s32.totalorder %v1111, 1
        %v1114 = vsel %vm1112, %v1101, 0.0
        %v1115 = vsel %vm1113, %v1102, 0.0
        %s1116 = scalar_lea.vmem [#allocation2], 112
        %v1117 = vld [vmem:[%s1116] sm:$0xf]
        %v1118 = vld [vmem:[%s1116 + $0x4] sm:$0xf]
        %v1119 = vld [vmem:[%s1116 + $0x8] sm:$0xf]
        %v1120 = vld [vmem:[%s1116 + $0xc] sm:$0xf]
        %v1121 = vpack.c.bf16 %v1114, %v1114
        %v1122 = vpack.c.bf16 %v1115, %v1115
        %v1127 = vunpack.c.l.b16 %v1117
        %v1128 = vunpack.c.l.b16 %v1118
        %v1129 = vunpack.c.l.b16 %v1119
        %v1130 = vunpack.c.l.b16 %v1120
        %v1131 = vpack.c.b16 %v1128, %v1127
        %v1132 = vpack.c.b16 %v1130, %v1129
        %v1134 = vsel %vm413, %v1131, 0
        %v1137 = vsel %vm413, %v1132, 0
        %v1140 = vsel %vm420, %v1121, 0
        %v1143 = vsel %vm420, %v1122, 0
        %1145 = vmatprep.subr.bf16.mxu0 %v1143
        %1146 = vmatpush1.bf16.msra.mxu0 %v1140
        %1147 = vmatprep.subr.bf16.mxu0 0
        %1148 = vmatpush1.bf16.msra.mxu0 0
        %1149 = vmatprep.subr.bf16.mxu0 0
        %1150 = vmatpush1.bf16.msra.mxu0 0
        %1151 = vmatprep.subr.bf16.mxu0 0
        %1152 = vmatpush1.bf16.msra.mxu0 0
        %1153 = vmatprep.subr.bf16.mxu0 0
        %1154 = vmatpush1.bf16.msra.mxu0 0
        %1155 = vmatprep.subr.bf16.mxu0 0
        %1156 = vmatpush1.bf16.msra.mxu0 0
        %1157 = vmatprep.subr.bf16.mxu0 0
        %1158 = vmatpush1.bf16.msra.mxu0 0
        %1159 = vmatprep.subr.bf16.mxu0 0
        %1160 = vmatpush1.bf16.msra.mxu0 0
        %1161 = vmatprep.subr.bf16.mxu0 0
        %1162 = vmatpush1.bf16.msra.mxu0 0
        %1163 = vmatprep.subr.bf16.mxu0 0
        %1164 = vmatpush1.bf16.msra.mxu0 0
        %1165 = vmatprep.subr.bf16.mxu0 0
        %1166 = vmatpush1.bf16.msra.mxu0 0
        %1167 = vmatprep.subr.bf16.mxu0 0
        %1168 = vmatpush1.bf16.msra.mxu0 0
        %1169 = vmatprep.subr.bf16.mxu0 0
        %1170 = vmatpush1.bf16.msra.mxu0 0
        %1171 = vmatprep.subr.bf16.mxu0 0
        %1172 = vmatpush1.bf16.msra.mxu0 0
        %1173 = vmatprep.subr.bf16.mxu0 0
        %1174 = vmatpush1.bf16.msra.mxu0 0
        %1175 = vmatprep.subr.bf16.mxu0 0
        %1176 = vmatpush1.bf16.msra.mxu0 0
        %1177 = vmatprep.mubr.bf16.mxu0 0
        %1178 = vmatmul.mubr.bf16.gmra.mrb[0].mxu0 %v1134
        %v1179 = vpop.f32.mrb[0].mxu0
        %v1180 = vadd.f32 0.0, %v1179
        %v1181 = vpop.f32.mrb[0].mxu0
        %v1182 = vadd.f32 0.0, %v1181
        %v1183 = vpop.f32.mrb[0].mxu0
        %v1184 = vadd.f32 0.0, %v1183
        %v1185 = vpop.f32.mrb[0].mxu0
        %v1186 = vadd.f32 0.0, %v1185
        %1187 = vmatprep.mubr.bf16.mxu0 0
        %1188 = vmatmul.mubr.bf16.gmra.mrb[0].mxu0 %v1137
        %v1189 = vpop.f32.mrb[0].mxu0
        %v1190 = vadd.f32 0.0, %v1189
        %v1191 = vpop.f32.mrb[0].mxu0
        %v1192 = vadd.f32 0.0, %v1191
        %v1193 = vpop.f32.mrb[0].mxu0
        %v1194 = vadd.f32 0.0, %v1193
        %v1195 = vpop.f32.mrb[0].mxu0
        %v1196 = vadd.f32 0.0, %v1195
        %1197 = vdwg.mxu0
        %v1198 = vadd.f32 %v1088, %v1180
        %v1199 = vadd.f32 %v1089, %v1182
        %v1200 = vadd.f32 %v1090, %v1184
        %v1201 = vadd.f32 %v1091, %v1186
        %v1202 = vadd.f32 %v1092, %v1190
        %v1203 = vadd.f32 %v1093, %v1192
        %v1204 = vadd.f32 %v1094, %v1194
        %v1205 = vadd.f32 %v1095, %v1196
        %1206 = vrot.lane.b32.xlu0 %v341, 111
        %v1207 = vpop.permute.xlu0 %1206
        %1208 = vrot.lane.b32.xlu0 %v343, 111
        %v1209 = vpop.permute.xlu0 %1208
        %vm1210 = vcmp.lt.s32.totalorder %v350, 111
        %v1211 = vsel %vm1210, %v1207, %v1209
        %v1212 = vsel %vm1210, %v1209, %v1207
        %vm1213 = vmand %vm991, %vm562
        %v1214 = vsel %vm1213, 1, 0
        %v1215 = vlaneseq
        %v1216 = vshrl.u32 %v1215, 7
        %v1217 = vsub.s32 0, %v1216
        %v1218 = vrot.slane %v1214, %v1217
        %v1219 = vlaneseq
        %v1220 = vshrl.u32 %v1219, 7
        %v1221 = vsub.s32 1, %v1220
        %v1222 = vrot.slane %v1214, %v1221
        %vm1223 = vcmp.eq.s32.totalorder %v1218, 1
        %vm1224 = vcmp.eq.s32.totalorder %v1222, 1
        %v1225 = vsel %vm1223, %v1211, 0.0
        %v1226 = vsel %vm1224, %v1212, 0.0
        %s1227 = scalar_lea.vmem [#allocation2], 128
        %v1228 = vld [vmem:[%s1227] sm:$0xf]
        %v1229 = vld [vmem:[%s1227 + $0x4] sm:$0xf]
        %v1230 = vld [vmem:[%s1227 + $0x8] sm:$0xf]
        %v1231 = vld [vmem:[%s1227 + $0xc] sm:$0xf]
        %v1232 = vpack.c.bf16 %v1225, %v1225
        %v1233 = vpack.c.bf16 %v1226, %v1226
        %v1238 = vunpack.c.l.b16 %v1228
        %v1239 = vunpack.c.l.b16 %v1229
        %v1240 = vunpack.c.l.b16 %v1230
        %v1241 = vunpack.c.l.b16 %v1231
        %v1242 = vpack.c.b16 %v1239, %v1238
        %v1243 = vpack.c.b16 %v1241, %v1240
        %v1245 = vsel %vm413, %v1242, 0
        %v1248 = vsel %vm413, %v1243, 0
        %v1251 = vsel %vm420, %v1232, 0
        %v1254 = vsel %vm420, %v1233, 0
        %1256 = vmatprep.subr.bf16.mxu0 %v1254
        %1257 = vmatpush1.bf16.msra.mxu0 %v1251
        %1258 = vmatprep.subr.bf16.mxu0 0
        %1259 = vmatpush1.bf16.msra.mxu0 0
        %1260 = vmatprep.subr.bf16.mxu0 0
        %1261 = vmatpush1.bf16.msra.mxu0 0
        %1262 = vmatprep.subr.bf16.mxu0 0
        %1263 = vmatpush1.bf16.msra.mxu0 0
        %1264 = vmatprep.subr.bf16.mxu0 0
        %1265 = vmatpush1.bf16.msra.mxu0 0
        %1266 = vmatprep.subr.bf16.mxu0 0
        %1267 = vmatpush1.bf16.msra.mxu0 0
        %1268 = vmatprep.subr.bf16.mxu0 0
        %1269 = vmatpush1.bf16.msra.mxu0 0
        %1270 = vmatprep.subr.bf16.mxu0 0
        %1271 = vmatpush1.bf16.msra.mxu0 0
        %1272 = vmatprep.subr.bf16.mxu0 0
        %1273 = vmatpush1.bf16.msra.mxu0 0
        %1274 = vmatprep.subr.bf16.mxu0 0
        %1275 = vmatpush1.bf16.msra.mxu0 0
        %1276 = vmatprep.subr.bf16.mxu0 0
        %1277 = vmatpush1.bf16.msra.mxu0 0
        %1278 = vmatprep.subr.bf16.mxu0 0
        %1279 = vmatpush1.bf16.msra.mxu0 0
        %1280 = vmatprep.subr.bf16.mxu0 0
        %1281 = vmatpush1.bf16.msra.mxu0 0
        %1282 = vmatprep.subr.bf16.mxu0 0
        %1283 = vmatpush1.bf16.msra.mxu0 0
        %1284 = vmatprep.subr.bf16.mxu0 0
        %1285 = vmatpush1.bf16.msra.mxu0 0
        %1286 = vmatprep.subr.bf16.mxu0 0
        %1287 = vmatpush1.bf16.msra.mxu0 0
        %1288 = vmatprep.mubr.bf16.mxu0 0
        %1289 = vmatmul.mubr.bf16.gmra.mrb[0].mxu0 %v1245
        %v1290 = vpop.f32.mrb[0].mxu0
        %v1291 = vadd.f32 0.0, %v1290
        %v1292 = vpop.f32.mrb[0].mxu0
        %v1293 = vadd.f32 0.0, %v1292
        %v1294 = vpop.f32.mrb[0].mxu0
        %v1295 = vadd.f32 0.0, %v1294
        %v1296 = vpop.f32.mrb[0].mxu0
        %v1297 = vadd.f32 0.0, %v1296
        %1298 = vmatprep.mubr.bf16.mxu0 0
        %1299 = vmatmul.mubr.bf16.gmra.mrb[0].mxu0 %v1248
        %v1300 = vpop.f32.mrb[0].mxu0
        %v1301 = vadd.f32 0.0, %v1300
        %v1302 = vpop.f32.mrb[0].mxu0
        %v1303 = vadd.f32 0.0, %v1302
        %v1304 = vpop.f32.mrb[0].mxu0
        %v1305 = vadd.f32 0.0, %v1304
        %v1306 = vpop.f32.mrb[0].mxu0
        %v1307 = vadd.f32 0.0, %v1306
        %1308 = vdwg.mxu0
        %v1309 = vadd.f32 %v1198, %v1291
        %v1310 = vadd.f32 %v1199, %v1293
        %v1311 = vadd.f32 %v1200, %v1295
        %v1312 = vadd.f32 %v1201, %v1297
        %v1313 = vadd.f32 %v1202, %v1301
        %v1314 = vadd.f32 %v1203, %v1303
        %v1315 = vadd.f32 %v1204, %v1305
        %v1316 = vadd.f32 %v1205, %v1307
        %v1317 = vld [vmem:[#allocation4] sm:$0xff]
        %v1318 = vld [vmem:[#allocation4 + $0x8] sm:$0xff]
        %v1319 = vld [vmem:[#allocation4 + $0x10] sm:$0xff]
        %v1320 = vld [vmem:[#allocation4 + $0x18] sm:$0xff]
        %1322 = vset.pattern.permute.xlu0 0
        %1323 = vperm.xlu0 %1322, %v1317
        %v1324 = vpop.permute.xlu0 %1323
        %1327 = vset.pattern.permute.xlu0 0
        %1328 = vperm.xlu0 %1327, %v1318
        %v1329 = vpop.permute.xlu0 %1328
        %1332 = vset.pattern.permute.xlu0 0
        %1333 = vperm.xlu0 %1332, %v1319
        %v1334 = vpop.permute.xlu0 %1333
        %1337 = vset.pattern.permute.xlu0 0
        %1338 = vperm.xlu0 %1337, %v1320
        %v1339 = vpop.permute.xlu0 %1338
        %v1341 = vadd.f32 %v1309, %v1324
        %v1342 = vadd.f32 %v1310, %v1324
        %v1343 = vadd.f32 %v1311, %v1329
        %v1344 = vadd.f32 %v1312, %v1329
        %v1345 = vadd.f32 %v1313, %v1334
        %v1346 = vadd.f32 %v1314, %v1334
        %v1347 = vadd.f32 %v1315, %v1339
        %v1348 = vadd.f32 %v1316, %v1339
        %v1349 = vmax.f32 %v1341, 0.0
        %v1350 = vmax.f32 %v1342, 0.0
        %v1351 = vmax.f32 %v1343, 0.0
        %v1352 = vmax.f32 %v1344, 0.0
        %v1353 = vmax.f32 %v1345, 0.0
        %v1354 = vmax.f32 %v1346, 0.0
        %v1355 = vmax.f32 %v1347, 0.0
        %v1356 = vmax.f32 %v1348, 0.0
        %1357 = vst [vmem:[%s335] sm:$0xff] %v1349
        %1358 = vst [vmem:[%s335 + $0x8] sm:$0xff] %v1350
        %1359 = vst [vmem:[%s335 + $0x10] sm:$0xff] %v1351
        %1360 = vst [vmem:[%s335 + $0x18] sm:$0xff] %v1352
        %1361 = vst [vmem:[%s335 + $0x20] sm:$0xff] %v1353
        %1362 = vst [vmem:[%s335 + $0x28] sm:$0xff] %v1354
        %1363 = vst [vmem:[%s335 + $0x30] sm:$0xff] %v1355
        %1364 = vst [vmem:[%s335 + $0x38] sm:$0xff] %v1356
        %1365 = vrot.lane.b32.xlu0 %v1349, 17
        %v1366 = vpop.permute.xlu0 %1365
        %1367 = vrot.lane.b32.xlu0 %v1351, 17
        %v1368 = vpop.permute.xlu0 %1367
        %1369 = vrot.lane.b32.xlu0 %v1353, 17
        %v1370 = vpop.permute.xlu0 %1369
        %1371 = vrot.lane.b32.xlu0 %v1355, 17
        %v1372 = vpop.permute.xlu0 %1371
        %1373 = vrot.lane.b32.xlu0 %v1350, 17
        %v1374 = vpop.permute.xlu0 %1373
        %1375 = vrot.lane.b32.xlu0 %v1352, 17
        %v1376 = vpop.permute.xlu0 %1375
        %1377 = vrot.lane.b32.xlu0 %v1354, 17
        %v1378 = vpop.permute.xlu0 %1377
        %1379 = vrot.lane.b32.xlu0 %v1356, 17
        %v1380 = vpop.permute.xlu0 %1379
        %v1381 = vsel %vm351, %v1366, %v1374
        %v1382 = vsel %vm351, %v1368, %v1376
        %v1383 = vsel %vm351, %v1370, %v1378
        %v1384 = vsel %vm351, %v1372, %v1380
        %v1385 = vsel %vm351, %v1374, %v1366
        %v1386 = vsel %vm351, %v1376, %v1368
        %v1387 = vsel %vm351, %v1378, %v1370
        %v1388 = vsel %vm351, %v1380, %v1372
        %v1389 = vsel %vm366, %v1385, 0.0
        %v1390 = vsel %vm367, %v1381, 0.0
        %v1391 = vsel %vm366, %v1386, 0.0
        %v1392 = vsel %vm367, %v1382, 0.0
        %v1393 = vsel %vm366, %v1387, 0.0
        %v1394 = vsel %vm367, %v1383, 0.0
        %v1395 = vsel %vm366, %v1388, 0.0
        %v1396 = vsel %vm367, %v1384, 0.0
        %v1397 = vld [vmem:[%s4] sm:$0xf]
        %v1398 = vld [vmem:[%s4 + $0x4] sm:$0xf]
        %v1399 = vld [vmem:[%s4 + $0x8] sm:$0xf]
        %v1400 = vld [vmem:[%s4 + $0xc] sm:$0xf]
        %v1401 = vld [vmem:[%s4 + $0x10] sm:$0xf]
        %v1402 = vld [vmem:[%s4 + $0x14] sm:$0xf]
        %v1403 = vld [vmem:[%s4 + $0x18] sm:$0xf]
        %v1404 = vld [vmem:[%s4 + $0x1c] sm:$0xf]
        %v1405 = vpack.c.bf16 %v1391, %v1389
        %v1406 = vpack.c.bf16 %v1392, %v1390
        %v1407 = vpack.c.bf16 %v1395, %v1393
        %v1408 = vpack.c.bf16 %v1396, %v1394
        %1409 = vrot.lane.b32.xlu0 %v1349, 16
        %v1410 = vpop.permute.xlu0 %1409
        %1411 = vrot.lane.b32.xlu0 %v1351, 16
        %v1412 = vpop.permute.xlu0 %1411
        %1413 = vrot.lane.b32.xlu0 %v1353, 16
        %v1414 = vpop.permute.xlu0 %1413
        %1415 = vrot.lane.b32.xlu0 %v1355, 16
        %v1416 = vpop.permute.xlu0 %1415
        %1417 = vrot.lane.b32.xlu0 %v1350, 16
        %v1418 = vpop.permute.xlu0 %1417
        %1419 = vrot.lane.b32.xlu0 %v1352, 16
        %v1420 = vpop.permute.xlu0 %1419
        %1421 = vrot.lane.b32.xlu0 %v1354, 16
        %v1422 = vpop.permute.xlu0 %1421
        %1423 = vrot.lane.b32.xlu0 %v1356, 16
        %v1424 = vpop.permute.xlu0 %1423
        %v1425 = vsel %vm380, %v1410, %v1418
        %v1426 = vsel %vm380, %v1412, %v1420
        %v1427 = vsel %vm380, %v1414, %v1422
        %v1428 = vsel %vm380, %v1416, %v1424
        %v1429 = vsel %vm380, %v1418, %v1410
        %v1430 = vsel %vm380, %v1420, %v1412
        %v1431 = vsel %vm380, %v1422, %v1414
        %v1432 = vsel %vm380, %v1424, %v1416
        %v1433 = vsel %vm392, %v1429, 0.0
        %v1434 = vsel %vm393, %v1425, 0.0
        %v1435 = vsel %vm392, %v1430, 0.0
        %v1436 = vsel %vm393, %v1426, 0.0
        %v1437 = vsel %vm392, %v1431, 0.0
        %v1438 = vsel %vm393, %v1427, 0.0
        %v1439 = vsel %vm392, %v1432, 0.0
        %v1440 = vsel %vm393, %v1428, 0.0
        %s1441 = scalar_lea.vmem %s4, 32
        %v1442 = vld [vmem:[%s1441] sm:$0xf]
        %v1443 = vld [vmem:[%s1441 + $0x4] sm:$0xf]
        %v1444 = vld [vmem:[%s1441 + $0x8] sm:$0xf]
        %v1445 = vld [vmem:[%s1441 + $0xc] sm:$0xf]
        %v1446 = vld [vmem:[%s1441 + $0x10] sm:$0xf]
        %v1447 = vld [vmem:[%s1441 + $0x14] sm:$0xf]
        %v1448 = vld [vmem:[%s1441 + $0x18] sm:$0xf]
        %v1449 = vld [vmem:[%s1441 + $0x1c] sm:$0xf]
        %v1450 = vpack.c.bf16 %v1435, %v1433
        %v1451 = vpack.c.bf16 %v1436, %v1434
        %v1452 = vpack.c.bf16 %v1439, %v1437
        %v1453 = vpack.c.bf16 %v1440, %v1438
        %v1462 = vunpack.c.l.b16 %v1442
        %v1463 = vunpack.c.l.b16 %v1443
        %v1464 = vunpack.c.l.b16 %v1444
        %v1465 = vunpack.c.l.b16 %v1445
        %v1466 = vunpack.c.l.b16 %v1446
        %v1467 = vunpack.c.l.b16 %v1447
        %v1468 = vunpack.c.l.b16 %v1448
        %v1469 = vunpack.c.l.b16 %v1449
        %v1470 = vpack.c.b16 %v1463, %v1462
        %v1471 = vpack.c.b16 %v1465, %v1464
        %v1472 = vpack.c.b16 %v1467, %v1466
        %v1473 = vpack.c.b16 %v1469, %v1468
        %vm1474 = vcmask 261120
        %v1476 = vsel %vm1474, %v1470, 0
        %v1479 = vsel %vm1474, %v1471, 0
        %v1482 = vsel %vm1474, %v1472, 0
        %v1485 = vsel %vm1474, %v1473, 0
        %1487 = vmatprep.subr.bf16.mxu0 %v1451
        %1488 = vmatpush1.bf16.msra.mxu0 %v1450
        %1489 = vmatprep.subr.bf16.mxu0 %v1453
        %1490 = vmatpush1.bf16.msra.mxu0 %v1452
        %1491 = vmatprep.subr.bf16.mxu0 0
        %1492 = vmatpush1.bf16.msra.mxu0 0
        %1493 = vmatprep.subr.bf16.mxu0 0
        %1494 = vmatpush1.bf16.msra.mxu0 0
        %1495 = vmatprep.subr.bf16.mxu0 0
        %1496 = vmatpush1.bf16.msra.mxu0 0
        %1497 = vmatprep.subr.bf16.mxu0 0
        %1498 = vmatpush1.bf16.msra.mxu0 0
        %1499 = vmatprep.subr.bf16.mxu0 0
        %1500 = vmatpush1.bf16.msra.mxu0 0
        %1501 = vmatprep.subr.bf16.mxu0 0
        %1502 = vmatpush1.bf16.msra.mxu0 0
        %1503 = vmatprep.subr.bf16.mxu0 0
        %1504 = vmatpush1.bf16.msra.mxu0 0
        %1505 = vmatprep.subr.bf16.mxu0 0
        %1506 = vmatpush1.bf16.msra.mxu0 0
        %1507 = vmatprep.subr.bf16.mxu0 0
        %1508 = vmatpush1.bf16.msra.mxu0 0
        %1509 = vmatprep.subr.bf16.mxu0 0
        %1510 = vmatpush1.bf16.msra.mxu0 0
        %1511 = vmatprep.subr.bf16.mxu0 0
        %1512 = vmatpush1.bf16.msra.mxu0 0
        %1513 = vmatprep.subr.bf16.mxu0 0
        %1514 = vmatpush1.bf16.msra.mxu0 0
        %1515 = vmatprep.subr.bf16.mxu0 0
        %1516 = vmatpush1.bf16.msra.mxu0 0
        %1517 = vmatprep.subr.bf16.mxu0 0
        %1518 = vmatpush1.bf16.msra.mxu0 0
        %1519 = vmatprep.mubr.bf16.mxu0 0
        %1520 = vmatmul.mubr.bf16.gmra.mrb[0].mxu0 %v1476
        %v1521 = vpop.f32.mrb[0].mxu0
        %v1522 = vadd.f32 0.0, %v1521
        %v1523 = vpop.f32.mrb[0].mxu0
        %v1524 = vadd.f32 0.0, %v1523
        %v1525 = vpop.f32.mrb[0].mxu0
        %v1526 = vadd.f32 0.0, %v1525
        %v1527 = vpop.f32.mrb[0].mxu0
        %v1528 = vadd.f32 0.0, %v1527
        %1529 = vmatprep.mubr.bf16.mxu0 0
        %1530 = vmatmul.mubr.bf16.gmra.mrb[0].mxu0 %v1479
        %v1531 = vpop.f32.mrb[0].mxu0
        %v1532 = vadd.f32 0.0, %v1531
        %v1533 = vpop.f32.mrb[0].mxu0
        %v1534 = vadd.f32 0.0, %v1533
        %v1535 = vpop.f32.mrb[0].mxu0
        %v1536 = vadd.f32 0.0, %v1535
        %v1537 = vpop.f32.mrb[0].mxu0
        %v1538 = vadd.f32 0.0, %v1537
        %1539 = vmatprep.mubr.bf16.mxu0 0
        %1540 = vmatmul.mubr.bf16.gmra.mrb[0].mxu0 %v1482
        %v1541 = vpop.f32.mrb[0].mxu0
        %v1542 = vadd.f32 0.0, %v1541
        %v1543 = vpop.f32.mrb[0].mxu0
        %v1544 = vadd.f32 0.0, %v1543
        %v1545 = vpop.f32.mrb[0].mxu0
        %v1546 = vadd.f32 0.0, %v1545
        %v1547 = vpop.f32.mrb[0].mxu0
        %v1548 = vadd.f32 0.0, %v1547
        %1549 = vmatprep.mubr.bf16.mxu0 0
        %1550 = vmatmul.mubr.bf16.gmra.mrb[0].mxu0 %v1485
        %v1551 = vpop.f32.mrb[0].mxu0
        %v1552 = vadd.f32 0.0, %v1551
        %v1553 = vpop.f32.mrb[0].mxu0
        %v1554 = vadd.f32 0.0, %v1553
        %v1555 = vpop.f32.mrb[0].mxu0
        %v1556 = vadd.f32 0.0, %v1555
        %v1557 = vpop.f32.mrb[0].mxu0
        %v1558 = vadd.f32 0.0, %v1557
        %1559 = vdwg.mxu0
        %v1568 = vunpack.c.l.b16 %v1397
        %v1569 = vunpack.c.l.b16 %v1398
        %v1570 = vunpack.c.l.b16 %v1399
        %v1571 = vunpack.c.l.b16 %v1400
        %v1572 = vunpack.c.l.b16 %v1401
        %v1573 = vunpack.c.l.b16 %v1402
        %v1574 = vunpack.c.l.b16 %v1403
        %v1575 = vunpack.c.l.b16 %v1404
        %v1576 = vpack.c.b16 %v1569, %v1568
        %v1577 = vpack.c.b16 %v1571, %v1570
        %v1578 = vpack.c.b16 %v1573, %v1572
        %v1579 = vpack.c.b16 %v1575, %v1574
        %v1581 = vsel %vm1474, %v1576, 0
        %v1584 = vsel %vm1474, %v1577, 0
        %v1587 = vsel %vm1474, %v1578, 0
        %v1590 = vsel %vm1474, %v1579, 0
        %1592 = vmatprep.subr.bf16.mxu0 %v1406
        %1593 = vmatpush1.bf16.msra.mxu0 %v1405
        %1594 = vmatprep.subr.bf16.mxu0 %v1408
        %1595 = vmatpush1.bf16.msra.mxu0 %v1407
        %1596 = vmatprep.subr.bf16.mxu0 0
        %1597 = vmatpush1.bf16.msra.mxu0 0
        %1598 = vmatprep.subr.bf16.mxu0 0
        %1599 = vmatpush1.bf16.msra.mxu0 0
        %1600 = vmatprep.subr.bf16.mxu0 0
        %1601 = vmatpush1.bf16.msra.mxu0 0
        %1602 = vmatprep.subr.bf16.mxu0 0
        %1603 = vmatpush1.bf16.msra.mxu0 0
        %1604 = vmatprep.subr.bf16.mxu0 0
        %1605 = vmatpush1.bf16.msra.mxu0 0
        %1606 = vmatprep.subr.bf16.mxu0 0
        %1607 = vmatpush1.bf16.msra.mxu0 0
        %1608 = vmatprep.subr.bf16.mxu0 0
        %1609 = vmatpush1.bf16.msra.mxu0 0
        %1610 = vmatprep.subr.bf16.mxu0 0
        %1611 = vmatpush1.bf16.msra.mxu0 0
        %1612 = vmatprep.subr.bf16.mxu0 0
        %1613 = vmatpush1.bf16.msra.mxu0 0
        %1614 = vmatprep.subr.bf16.mxu0 0
        %1615 = vmatpush1.bf16.msra.mxu0 0
        %1616 = vmatprep.subr.bf16.mxu0 0
        %1617 = vmatpush1.bf16.msra.mxu0 0
        %1618 = vmatprep.subr.bf16.mxu0 0
        %1619 = vmatpush1.bf16.msra.mxu0 0
        %1620 = vmatprep.subr.bf16.mxu0 0
        %1621 = vmatpush1.bf16.msra.mxu0 0
        %1622 = vmatprep.subr.bf16.mxu0 0
        %1623 = vmatpush1.bf16.msra.mxu0 0
        %1624 = vmatprep.mubr.bf16.mxu0 0
        %1625 = vmatmul.mubr.bf16.gmra.mrb[0].mxu0 %v1581
        %v1626 = vpop.f32.mrb[0].mxu0
        %v1627 = vadd.f32 %v1522, %v1626
        %v1628 = vpop.f32.mrb[0].mxu0
        %v1629 = vadd.f32 %v1524, %v1628
        %v1630 = vpop.f32.mrb[0].mxu0
        %v1631 = vadd.f32 %v1526, %v1630
        %v1632 = vpop.f32.mrb[0].mxu0
        %v1633 = vadd.f32 %v1528, %v1632
        %1634 = vmatprep.mubr.bf16.mxu0 0
        %1635 = vmatmul.mubr.bf16.gmra.mrb[0].mxu0 %v1584
        %v1636 = vpop.f32.mrb[0].mxu0
        %v1637 = vadd.f32 %v1532, %v1636
        %v1638 = vpop.f32.mrb[0].mxu0
        %v1639 = vadd.f32 %v1534, %v1638
        %v1640 = vpop.f32.mrb[0].mxu0
        %v1641 = vadd.f32 %v1536, %v1640
        %v1642 = vpop.f32.mrb[0].mxu0
        %v1643 = vadd.f32 %v1538, %v1642
        %1644 = vmatprep.mubr.bf16.mxu0 0
        %1645 = vmatmul.mubr.bf16.gmra.mrb[0].mxu0 %v1587
        %v1646 = vpop.f32.mrb[0].mxu0
        %v1647 = vadd.f32 %v1542, %v1646
        %v1648 = vpop.f32.mrb[0].mxu0
        %v1649 = vadd.f32 %v1544, %v1648
        %v1650 = vpop.f32.mrb[0].mxu0
        %v1651 = vadd.f32 %v1546, %v1650
        %v1652 = vpop.f32.mrb[0].mxu0
        %v1653 = vadd.f32 %v1548, %v1652
        %1654 = vmatprep.mubr.bf16.mxu0 0
        %1655 = vmatmul.mubr.bf16.gmra.mrb[0].mxu0 %v1590
        %v1656 = vpop.f32.mrb[0].mxu0
        %v1657 = vadd.f32 %v1552, %v1656
        %v1658 = vpop.f32.mrb[0].mxu0
        %v1659 = vadd.f32 %v1554, %v1658
        %v1660 = vpop.f32.mrb[0].mxu0
        %v1661 = vadd.f32 %v1556, %v1660
        %v1662 = vpop.f32.mrb[0].mxu0
        %v1663 = vadd.f32 %v1558, %v1662
        %1664 = vdwg.mxu0
        %1665 = vrot.lane.b32.xlu0 %v1349, 15
        %v1666 = vpop.permute.xlu0 %1665
        %1667 = vrot.lane.b32.xlu0 %v1351, 15
        %v1668 = vpop.permute.xlu0 %1667
        %1669 = vrot.lane.b32.xlu0 %v1353, 15
        %v1670 = vpop.permute.xlu0 %1669
        %1671 = vrot.lane.b32.xlu0 %v1355, 15
        %v1672 = vpop.permute.xlu0 %1671
        %1673 = vrot.lane.b32.xlu0 %v1350, 15
        %v1674 = vpop.permute.xlu0 %1673
        %1675 = vrot.lane.b32.xlu0 %v1352, 15
        %v1676 = vpop.permute.xlu0 %1675
        %1677 = vrot.lane.b32.xlu0 %v1354, 15
        %v1678 = vpop.permute.xlu0 %1677
        %1679 = vrot.lane.b32.xlu0 %v1356, 15
        %v1680 = vpop.permute.xlu0 %1679
        %v1681 = vsel %vm559, %v1666, %v1674
        %v1682 = vsel %vm559, %v1668, %v1676
        %v1683 = vsel %vm559, %v1670, %v1678
        %v1684 = vsel %vm559, %v1672, %v1680
        %v1685 = vsel %vm559, %v1674, %v1666
        %v1686 = vsel %vm559, %v1676, %v1668
        %v1687 = vsel %vm559, %v1678, %v1670
        %v1688 = vsel %vm559, %v1680, %v1672
        %v1689 = vsel %vm573, %v1685, 0.0
        %v1690 = vsel %vm574, %v1681, 0.0
        %v1691 = vsel %vm573, %v1686, 0.0
        %v1692 = vsel %vm574, %v1682, 0.0
        %v1693 = vsel %vm573, %v1687, 0.0
        %v1694 = vsel %vm574, %v1683, 0.0
        %v1695 = vsel %vm573, %v1688, 0.0
        %v1696 = vsel %vm574, %v1684, 0.0
        %s1697 = scalar_lea.vmem %s4, 64
        %v1698 = vld [vmem:[%s1697] sm:$0xf]
        %v1699 = vld [vmem:[%s1697 + $0x4] sm:$0xf]
        %v1700 = vld [vmem:[%s1697 + $0x8] sm:$0xf]
        %v1701 = vld [vmem:[%s1697 + $0xc] sm:$0xf]
        %v1702 = vld [vmem:[%s1697 + $0x10] sm:$0xf]
        %v1703 = vld [vmem:[%s1697 + $0x14] sm:$0xf]
        %v1704 = vld [vmem:[%s1697 + $0x18] sm:$0xf]
        %v1705 = vld [vmem:[%s1697 + $0x1c] sm:$0xf]
        %v1706 = vpack.c.bf16 %v1691, %v1689
        %v1707 = vpack.c.bf16 %v1692, %v1690
        %v1708 = vpack.c.bf16 %v1695, %v1693
        %v1709 = vpack.c.bf16 %v1696, %v1694
        %v1718 = vunpack.c.l.b16 %v1698
        %v1719 = vunpack.c.l.b16 %v1699
        %v1720 = vunpack.c.l.b16 %v1700
        %v1721 = vunpack.c.l.b16 %v1701
        %v1722 = vunpack.c.l.b16 %v1702
        %v1723 = vunpack.c.l.b16 %v1703
        %v1724 = vunpack.c.l.b16 %v1704
        %v1725 = vunpack.c.l.b16 %v1705
        %v1726 = vpack.c.b16 %v1719, %v1718
        %v1727 = vpack.c.b16 %v1721, %v1720
        %v1728 = vpack.c.b16 %v1723, %v1722
        %v1729 = vpack.c.b16 %v1725, %v1724
        %v1731 = vsel %vm1474, %v1726, 0
        %v1734 = vsel %vm1474, %v1727, 0
        %v1737 = vsel %vm1474, %v1728, 0
        %v1740 = vsel %vm1474, %v1729, 0
        %1742 = vmatprep.subr.bf16.mxu0 %v1707
        %1743 = vmatpush1.bf16.msra.mxu0 %v1706
        %1744 = vmatprep.subr.bf16.mxu0 %v1709
        %1745 = vmatpush1.bf16.msra.mxu0 %v1708
        %1746 = vmatprep.subr.bf16.mxu0 0
        %1747 = vmatpush1.bf16.msra.mxu0 0
        %1748 = vmatprep.subr.bf16.mxu0 0
        %1749 = vmatpush1.bf16.msra.mxu0 0
        %1750 = vmatprep.subr.bf16.mxu0 0
        %1751 = vmatpush1.bf16.msra.mxu0 0
        %1752 = vmatprep.subr.bf16.mxu0 0
        %1753 = vmatpush1.bf16.msra.mxu0 0
        %1754 = vmatprep.subr.bf16.mxu0 0
        %1755 = vmatpush1.bf16.msra.mxu0 0
        %1756 = vmatprep.subr.bf16.mxu0 0
        %1757 = vmatpush1.bf16.msra.mxu0 0
        %1758 = vmatprep.subr.bf16.mxu0 0
        %1759 = vmatpush1.bf16.msra.mxu0 0
        %1760 = vmatprep.subr.bf16.mxu0 0
        %1761 = vmatpush1.bf16.msra.mxu0 0
        %1762 = vmatprep.subr.bf16.mxu0 0
        %1763 = vmatpush1.bf16.msra.mxu0 0
        %1764 = vmatprep.subr.bf16.mxu0 0
        %1765 = vmatpush1.bf16.msra.mxu0 0
        %1766 = vmatprep.subr.bf16.mxu0 0
        %1767 = vmatpush1.bf16.msra.mxu0 0
        %1768 = vmatprep.subr.bf16.mxu0 0
        %1769 = vmatpush1.bf16.msra.mxu0 0
        %1770 = vmatprep.subr.bf16.mxu0 0
        %1771 = vmatpush1.bf16.msra.mxu0 0
        %1772 = vmatprep.subr.bf16.mxu0 0
        %1773 = vmatpush1.bf16.msra.mxu0 0
        %1774 = vmatprep.mubr.bf16.mxu0 0
        %1775 = vmatmul.mubr.bf16.gmra.mrb[0].mxu0 %v1731
        %v1776 = vpop.f32.mrb[0].mxu0
        %v1777 = vadd.f32 0.0, %v1776
        %v1778 = vpop.f32.mrb[0].mxu0
        %v1779 = vadd.f32 0.0, %v1778
        %v1780 = vpop.f32.mrb[0].mxu0
        %v1781 = vadd.f32 0.0, %v1780
        %v1782 = vpop.f32.mrb[0].mxu0
        %v1783 = vadd.f32 0.0, %v1782
        %1784 = vmatprep.mubr.bf16.mxu0 0
        %1785 = vmatmul.mubr.bf16.gmra.mrb[0].mxu0 %v1734
        %v1786 = vpop.f32.mrb[0].mxu0
        %v1787 = vadd.f32 0.0, %v1786
        %v1788 = vpop.f32.mrb[0].mxu0
        %v1789 = vadd.f32 0.0, %v1788
        %v1790 = vpop.f32.mrb[0].mxu0
        %v1791 = vadd.f32 0.0, %v1790
        %v1792 = vpop.f32.mrb[0].mxu0
        %v1793 = vadd.f32 0.0, %v1792
        %1794 = vmatprep.mubr.bf16.mxu0 0
        %1795 = vmatmul.mubr.bf16.gmra.mrb[0].mxu0 %v1737
        %v1796 = vpop.f32.mrb[0].mxu0
        %v1797 = vadd.f32 0.0, %v1796
        %v1798 = vpop.f32.mrb[0].mxu0
        %v1799 = vadd.f32 0.0, %v1798
        %v1800 = vpop.f32.mrb[0].mxu0
        %v1801 = vadd.f32 0.0, %v1800
        %v1802 = vpop.f32.mrb[0].mxu0
        %v1803 = vadd.f32 0.0, %v1802
        %1804 = vmatprep.mubr.bf16.mxu0 0
        %1805 = vmatmul.mubr.bf16.gmra.mrb[0].mxu0 %v1740
        %v1806 = vpop.f32.mrb[0].mxu0
        %v1807 = vadd.f32 0.0, %v1806
        %v1808 = vpop.f32.mrb[0].mxu0
        %v1809 = vadd.f32 0.0, %v1808
        %v1810 = vpop.f32.mrb[0].mxu0
        %v1811 = vadd.f32 0.0, %v1810
        %v1812 = vpop.f32.mrb[0].mxu0
        %v1813 = vadd.f32 0.0, %v1812
        %1814 = vdwg.mxu0
        %v1815 = vadd.f32 %v1627, %v1777
        %v1816 = vadd.f32 %v1629, %v1779
        %v1817 = vadd.f32 %v1631, %v1781
        %v1818 = vadd.f32 %v1633, %v1783
        %v1819 = vadd.f32 %v1637, %v1787
        %v1820 = vadd.f32 %v1639, %v1789
        %v1821 = vadd.f32 %v1641, %v1791
        %v1822 = vadd.f32 %v1643, %v1793
        %v1823 = vadd.f32 %v1647, %v1797
        %v1824 = vadd.f32 %v1649, %v1799
        %v1825 = vadd.f32 %v1651, %v1801
        %v1826 = vadd.f32 %v1653, %v1803
        %v1827 = vadd.f32 %v1657, %v1807
        %v1828 = vadd.f32 %v1659, %v1809
        %v1829 = vadd.f32 %v1661, %v1811
        %v1830 = vadd.f32 %v1663, %v1813
        %1831 = vrot.lane.b32.xlu0 %v1349, 1
        %v1832 = vpop.permute.xlu0 %1831
        %1833 = vrot.lane.b32.xlu0 %v1351, 1
        %v1834 = vpop.permute.xlu0 %1833
        %1835 = vrot.lane.b32.xlu0 %v1353, 1
        %v1836 = vpop.permute.xlu0 %1835
        %1837 = vrot.lane.b32.xlu0 %v1355, 1
        %v1838 = vpop.permute.xlu0 %1837
        %1839 = vrot.lane.b32.xlu0 %v1350, 1
        %v1840 = vpop.permute.xlu0 %1839
        %1841 = vrot.lane.b32.xlu0 %v1352, 1
        %v1842 = vpop.permute.xlu0 %1841
        %1843 = vrot.lane.b32.xlu0 %v1354, 1
        %v1844 = vpop.permute.xlu0 %1843
        %1845 = vrot.lane.b32.xlu0 %v1356, 1
        %v1846 = vpop.permute.xlu0 %1845
        %v1847 = vsel %vm671, %v1832, %v1840
        %v1848 = vsel %vm671, %v1834, %v1842
        %v1849 = vsel %vm671, %v1836, %v1844
        %v1850 = vsel %vm671, %v1838, %v1846
        %v1851 = vsel %vm671, %v1840, %v1832
        %v1852 = vsel %vm671, %v1842, %v1834
        %v1853 = vsel %vm671, %v1844, %v1836
        %v1854 = vsel %vm671, %v1846, %v1838
        %v1855 = vsel %vm683, %v1851, 0.0
        %v1856 = vsel %vm684, %v1847, 0.0
        %v1857 = vsel %vm683, %v1852, 0.0
        %v1858 = vsel %vm684, %v1848, 0.0
        %v1859 = vsel %vm683, %v1853, 0.0
        %v1860 = vsel %vm684, %v1849, 0.0
        %v1861 = vsel %vm683, %v1854, 0.0
        %v1862 = vsel %vm684, %v1850, 0.0
        %s1863 = scalar_lea.vmem %s4, 96
        %v1864 = vld [vmem:[%s1863] sm:$0xf]
        %v1865 = vld [vmem:[%s1863 + $0x4] sm:$0xf]
        %v1866 = vld [vmem:[%s1863 + $0x8] sm:$0xf]
        %v1867 = vld [vmem:[%s1863 + $0xc] sm:$0xf]
        %v1868 = vld [vmem:[%s1863 + $0x10] sm:$0xf]
        %v1869 = vld [vmem:[%s1863 + $0x14] sm:$0xf]
        %v1870 = vld [vmem:[%s1863 + $0x18] sm:$0xf]
        %v1871 = vld [vmem:[%s1863 + $0x1c] sm:$0xf]
        %v1872 = vpack.c.bf16 %v1857, %v1855
        %v1873 = vpack.c.bf16 %v1858, %v1856
        %v1874 = vpack.c.bf16 %v1861, %v1859
        %v1875 = vpack.c.bf16 %v1862, %v1860
        %v1884 = vunpack.c.l.b16 %v1864
        %v1885 = vunpack.c.l.b16 %v1865
        %v1886 = vunpack.c.l.b16 %v1866
        %v1887 = vunpack.c.l.b16 %v1867
        %v1888 = vunpack.c.l.b16 %v1868
        %v1889 = vunpack.c.l.b16 %v1869
        %v1890 = vunpack.c.l.b16 %v1870
        %v1891 = vunpack.c.l.b16 %v1871
        %v1892 = vpack.c.b16 %v1885, %v1884
        %v1893 = vpack.c.b16 %v1887, %v1886
        %v1894 = vpack.c.b16 %v1889, %v1888
        %v1895 = vpack.c.b16 %v1891, %v1890
        %v1897 = vsel %vm1474, %v1892, 0
        %v1900 = vsel %vm1474, %v1893, 0
        %v1903 = vsel %vm1474, %v1894, 0
        %v1906 = vsel %vm1474, %v1895, 0
        %1908 = vmatprep.subr.bf16.mxu0 %v1873
        %1909 = vmatpush1.bf16.msra.mxu0 %v1872
        %1910 = vmatprep.subr.bf16.mxu0 %v1875
        %1911 = vmatpush1.bf16.msra.mxu0 %v1874
        %1912 = vmatprep.subr.bf16.mxu0 0
        %1913 = vmatpush1.bf16.msra.mxu0 0
        %1914 = vmatprep.subr.bf16.mxu0 0
        %1915 = vmatpush1.bf16.msra.mxu0 0
        %1916 = vmatprep.subr.bf16.mxu0 0
        %1917 = vmatpush1.bf16.msra.mxu0 0
        %1918 = vmatprep.subr.bf16.mxu0 0
        %1919 = vmatpush1.bf16.msra.mxu0 0
        %1920 = vmatprep.subr.bf16.mxu0 0
        %1921 = vmatpush1.bf16.msra.mxu0 0
        %1922 = vmatprep.subr.bf16.mxu0 0
        %1923 = vmatpush1.bf16.msra.mxu0 0
        %1924 = vmatprep.subr.bf16.mxu0 0
        %1925 = vmatpush1.bf16.msra.mxu0 0
        %1926 = vmatprep.subr.bf16.mxu0 0
        %1927 = vmatpush1.bf16.msra.mxu0 0
        %1928 = vmatprep.subr.bf16.mxu0 0
        %1929 = vmatpush1.bf16.msra.mxu0 0
        %1930 = vmatprep.subr.bf16.mxu0 0
        %1931 = vmatpush1.bf16.msra.mxu0 0
        %1932 = vmatprep.subr.bf16.mxu0 0
        %1933 = vmatpush1.bf16.msra.mxu0 0
        %1934 = vmatprep.subr.bf16.mxu0 0
        %1935 = vmatpush1.bf16.msra.mxu0 0
        %1936 = vmatprep.subr.bf16.mxu0 0
        %1937 = vmatpush1.bf16.msra.mxu0 0
        %1938 = vmatprep.subr.bf16.mxu0 0
        %1939 = vmatpush1.bf16.msra.mxu0 0
        %1940 = vmatprep.mubr.bf16.mxu0 0
        %1941 = vmatmul.mubr.bf16.gmra.mrb[0].mxu0 %v1897
        %v1942 = vpop.f32.mrb[0].mxu0
        %v1943 = vadd.f32 0.0, %v1942
        %v1944 = vpop.f32.mrb[0].mxu0
        %v1945 = vadd.f32 0.0, %v1944
        %v1946 = vpop.f32.mrb[0].mxu0
        %v1947 = vadd.f32 0.0, %v1946
        %v1948 = vpop.f32.mrb[0].mxu0
        %v1949 = vadd.f32 0.0, %v1948
        %1950 = vmatprep.mubr.bf16.mxu0 0
        %1951 = vmatmul.mubr.bf16.gmra.mrb[0].mxu0 %v1900
        %v1952 = vpop.f32.mrb[0].mxu0
        %v1953 = vadd.f32 0.0, %v1952
        %v1954 = vpop.f32.mrb[0].mxu0
        %v1955 = vadd.f32 0.0, %v1954
        %v1956 = vpop.f32.mrb[0].mxu0
        %v1957 = vadd.f32 0.0, %v1956
        %v1958 = vpop.f32.mrb[0].mxu0
        %v1959 = vadd.f32 0.0, %v1958
        %1960 = vmatprep.mubr.bf16.mxu0 0
        %1961 = vmatmul.mubr.bf16.gmra.mrb[0].mxu0 %v1903
        %v1962 = vpop.f32.mrb[0].mxu0
        %v1963 = vadd.f32 0.0, %v1962
        %v1964 = vpop.f32.mrb[0].mxu0
        %v1965 = vadd.f32 0.0, %v1964
        %v1966 = vpop.f32.mrb[0].mxu0
        %v1967 = vadd.f32 0.0, %v1966
        %v1968 = vpop.f32.mrb[0].mxu0
        %v1969 = vadd.f32 0.0, %v1968
        %1970 = vmatprep.mubr.bf16.mxu0 0
        %1971 = vmatmul.mubr.bf16.gmra.mrb[0].mxu0 %v1906
        %v1972 = vpop.f32.mrb[0].mxu0
        %v1973 = vadd.f32 0.0, %v1972
        %v1974 = vpop.f32.mrb[0].mxu0
        %v1975 = vadd.f32 0.0, %v1974
        %v1976 = vpop.f32.mrb[0].mxu0
        %v1977 = vadd.f32 0.0, %v1976
        %v1978 = vpop.f32.mrb[0].mxu0
        %v1979 = vadd.f32 0.0, %v1978
        %1980 = vdwg.mxu0
        %v1981 = vadd.f32 %v1815, %v1943
        %v1982 = vadd.f32 %v1816, %v1945
        %v1983 = vadd.f32 %v1817, %v1947
        %v1984 = vadd.f32 %v1818, %v1949
        %v1985 = vadd.f32 %v1819, %v1953
        %v1986 = vadd.f32 %v1820, %v1955
        %v1987 = vadd.f32 %v1821, %v1957
        %v1988 = vadd.f32 %v1822, %v1959
        %v1989 = vadd.f32 %v1823, %v1963
        %v1990 = vadd.f32 %v1824, %v1965
        %v1991 = vadd.f32 %v1825, %v1967
        %v1992 = vadd.f32 %v1826, %v1969
        %v1993 = vadd.f32 %v1827, %v1973
        %v1994 = vadd.f32 %v1828, %v1975
        %v1995 = vadd.f32 %v1829, %v1977
        %v1996 = vadd.f32 %v1830, %v1979
        %s1997 = scalar_lea.vmem %s4, 128
        %v1998 = vld [vmem:[%s1997] sm:$0xf]
        %v1999 = vld [vmem:[%s1997 + $0x4] sm:$0xf]
        %v2000 = vld [vmem:[%s1997 + $0x8] sm:$0xf]
        %v2001 = vld [vmem:[%s1997 + $0xc] sm:$0xf]
        %v2002 = vld [vmem:[%s1997 + $0x10] sm:$0xf]
        %v2003 = vld [vmem:[%s1997 + $0x14] sm:$0xf]
        %v2004 = vld [vmem:[%s1997 + $0x18] sm:$0xf]
        %v2005 = vld [vmem:[%s1997 + $0x1c] sm:$0xf]
        %v2006 = vpack.c.bf16 %v1351, %v1349
        %v2007 = vpack.c.bf16 %v1352, %v1350
        %v2008 = vpack.c.bf16 %v1355, %v1353
        %v2009 = vpack.c.bf16 %v1356, %v1354
        %v2018 = vunpack.c.l.b16 %v1998
        %v2019 = vunpack.c.l.b16 %v1999
        %v2020 = vunpack.c.l.b16 %v2000
        %v2021 = vunpack.c.l.b16 %v2001
        %v2022 = vunpack.c.l.b16 %v2002
        %v2023 = vunpack.c.l.b16 %v2003
        %v2024 = vunpack.c.l.b16 %v2004
        %v2025 = vunpack.c.l.b16 %v2005
        %v2026 = vpack.c.b16 %v2019, %v2018
        %v2027 = vpack.c.b16 %v2021, %v2020
        %v2028 = vpack.c.b16 %v2023, %v2022
        %v2029 = vpack.c.b16 %v2025, %v2024
        %v2031 = vsel %vm1474, %v2026, 0
        %v2034 = vsel %vm1474, %v2027, 0
        %v2037 = vsel %vm1474, %v2028, 0
        %v2040 = vsel %vm1474, %v2029, 0
        %2042 = vmatprep.subr.bf16.mxu0 %v2007
        %2043 = vmatpush1.bf16.msra.mxu0 %v2006
        %2044 = vmatprep.subr.bf16.mxu0 %v2009
        %2045 = vmatpush1.bf16.msra.mxu0 %v2008
        %2046 = vmatprep.subr.bf16.mxu0 0
        %2047 = vmatpush1.bf16.msra.mxu0 0
        %2048 = vmatprep.subr.bf16.mxu0 0
        %2049 = vmatpush1.bf16.msra.mxu0 0
        %2050 = vmatprep.subr.bf16.mxu0 0
        %2051 = vmatpush1.bf16.msra.mxu0 0
        %2052 = vmatprep.subr.bf16.mxu0 0
        %2053 = vmatpush1.bf16.msra.mxu0 0
        %2054 = vmatprep.subr.bf16.mxu0 0
        %2055 = vmatpush1.bf16.msra.mxu0 0
        %2056 = vmatprep.subr.bf16.mxu0 0
        %2057 = vmatpush1.bf16.msra.mxu0 0
        %2058 = vmatprep.subr.bf16.mxu0 0
        %2059 = vmatpush1.bf16.msra.mxu0 0
        %2060 = vmatprep.subr.bf16.mxu0 0
        %2061 = vmatpush1.bf16.msra.mxu0 0
        %2062 = vmatprep.subr.bf16.mxu0 0
        %2063 = vmatpush1.bf16.msra.mxu0 0
        %2064 = vmatprep.subr.bf16.mxu0 0
        %2065 = vmatpush1.bf16.msra.mxu0 0
        %2066 = vmatprep.subr.bf16.mxu0 0
        %2067 = vmatpush1.bf16.msra.mxu0 0
        %2068 = vmatprep.subr.bf16.mxu0 0
        %2069 = vmatpush1.bf16.msra.mxu0 0
        %2070 = vmatprep.subr.bf16.mxu0 0
        %2071 = vmatpush1.bf16.msra.mxu0 0
        %2072 = vmatprep.subr.bf16.mxu0 0
        %2073 = vmatpush1.bf16.msra.mxu0 0
        %2074 = vmatprep.mubr.bf16.mxu0 0
        %2075 = vmatmul.mubr.bf16.gmra.mrb[0].mxu0 %v2031
        %v2076 = vpop.f32.mrb[0].mxu0
        %v2077 = vadd.f32 0.0, %v2076
        %v2078 = vpop.f32.mrb[0].mxu0
        %v2079 = vadd.f32 0.0, %v2078
        %v2080 = vpop.f32.mrb[0].mxu0
        %v2081 = vadd.f32 0.0, %v2080
        %v2082 = vpop.f32.mrb[0].mxu0
        %v2083 = vadd.f32 0.0, %v2082
        %2084 = vmatprep.mubr.bf16.mxu0 0
        %2085 = vmatmul.mubr.bf16.gmra.mrb[0].mxu0 %v2034
        %v2086 = vpop.f32.mrb[0].mxu0
        %v2087 = vadd.f32 0.0, %v2086
        %v2088 = vpop.f32.mrb[0].mxu0
        %v2089 = vadd.f32 0.0, %v2088
        %v2090 = vpop.f32.mrb[0].mxu0
        %v2091 = vadd.f32 0.0, %v2090
        %v2092 = vpop.f32.mrb[0].mxu0
        %v2093 = vadd.f32 0.0, %v2092
        %2094 = vmatprep.mubr.bf16.mxu0 0
        %2095 = vmatmul.mubr.bf16.gmra.mrb[0].mxu0 %v2037
        %v2096 = vpop.f32.mrb[0].mxu0
        %v2097 = vadd.f32 0.0, %v2096
        %v2098 = vpop.f32.mrb[0].mxu0
        %v2099 = vadd.f32 0.0, %v2098
        %v2100 = vpop.f32.mrb[0].mxu0
        %v2101 = vadd.f32 0.0, %v2100
        %v2102 = vpop.f32.mrb[0].mxu0
        %v2103 = vadd.f32 0.0, %v2102
        %2104 = vmatprep.mubr.bf16.mxu0 0
        %2105 = vmatmul.mubr.bf16.gmra.mrb[0].mxu0 %v2040
        %v2106 = vpop.f32.mrb[0].mxu0
        %v2107 = vadd.f32 0.0, %v2106
        %v2108 = vpop.f32.mrb[0].mxu0
        %v2109 = vadd.f32 0.0, %v2108
        %v2110 = vpop.f32.mrb[0].mxu0
        %v2111 = vadd.f32 0.0, %v2110
        %v2112 = vpop.f32.mrb[0].mxu0
        %v2113 = vadd.f32 0.0, %v2112
        %2114 = vdwg.mxu0
        %v2115 = vadd.f32 %v1981, %v2077
        %v2116 = vadd.f32 %v1982, %v2079
        %v2117 = vadd.f32 %v1983, %v2081
        %v2118 = vadd.f32 %v1984, %v2083
        %v2119 = vadd.f32 %v1985, %v2087
        %v2120 = vadd.f32 %v1986, %v2089
        %v2121 = vadd.f32 %v1987, %v2091
        %v2122 = vadd.f32 %v1988, %v2093
        %v2123 = vadd.f32 %v1989, %v2097
        %v2124 = vadd.f32 %v1990, %v2099
        %v2125 = vadd.f32 %v1991, %v2101
        %v2126 = vadd.f32 %v1992, %v2103
        %v2127 = vadd.f32 %v1993, %v2107
        %v2128 = vadd.f32 %v1994, %v2109
        %v2129 = vadd.f32 %v1995, %v2111
        %v2130 = vadd.f32 %v1996, %v2113
        %2131 = vrot.lane.b32.xlu0 %v1349, 127
        %v2132 = vpop.permute.xlu0 %2131
        %2133 = vrot.lane.b32.xlu0 %v1351, 127
        %v2134 = vpop.permute.xlu0 %2133
        %2135 = vrot.lane.b32.xlu0 %v1353, 127
        %v2136 = vpop.permute.xlu0 %2135
        %2137 = vrot.lane.b32.xlu0 %v1355, 127
        %v2138 = vpop.permute.xlu0 %2137
        %2139 = vrot.lane.b32.xlu0 %v1350, 127
        %v2140 = vpop.permute.xlu0 %2139
        %2141 = vrot.lane.b32.xlu0 %v1352, 127
        %v2142 = vpop.permute.xlu0 %2141
        %2143 = vrot.lane.b32.xlu0 %v1354, 127
        %v2144 = vpop.permute.xlu0 %2143
        %2145 = vrot.lane.b32.xlu0 %v1356, 127
        %v2146 = vpop.permute.xlu0 %2145
        %v2147 = vsel %vm878, %v2132, %v2140
        %v2148 = vsel %vm878, %v2134, %v2142
        %v2149 = vsel %vm878, %v2136, %v2144
        %v2150 = vsel %vm878, %v2138, %v2146
        %v2151 = vsel %vm878, %v2140, %v2132
        %v2152 = vsel %vm878, %v2142, %v2134
        %v2153 = vsel %vm878, %v2144, %v2136
        %v2154 = vsel %vm878, %v2146, %v2138
        %v2155 = vsel %vm890, %v2147, 0.0
        %v2156 = vsel %vm891, %v2151, 0.0
        %v2157 = vsel %vm890, %v2148, 0.0
        %v2158 = vsel %vm891, %v2152, 0.0
        %v2159 = vsel %vm890, %v2149, 0.0
        %v2160 = vsel %vm891, %v2153, 0.0
        %v2161 = vsel %vm890, %v2150, 0.0
        %v2162 = vsel %vm891, %v2154, 0.0
        %s2163 = scalar_lea.vmem %s4, 160
        %v2164 = vld [vmem:[%s2163] sm:$0xf]
        %v2165 = vld [vmem:[%s2163 + $0x4] sm:$0xf]
        %v2166 = vld [vmem:[%s2163 + $0x8] sm:$0xf]
        %v2167 = vld [vmem:[%s2163 + $0xc] sm:$0xf]
        %v2168 = vld [vmem:[%s2163 + $0x10] sm:$0xf]
        %v2169 = vld [vmem:[%s2163 + $0x14] sm:$0xf]
        %v2170 = vld [vmem:[%s2163 + $0x18] sm:$0xf]
        %v2171 = vld [vmem:[%s2163 + $0x1c] sm:$0xf]
        %v2172 = vpack.c.bf16 %v2157, %v2155
        %v2173 = vpack.c.bf16 %v2158, %v2156
        %v2174 = vpack.c.bf16 %v2161, %v2159
        %v2175 = vpack.c.bf16 %v2162, %v2160
        %v2184 = vunpack.c.l.b16 %v2164
        %v2185 = vunpack.c.l.b16 %v2165
        %v2186 = vunpack.c.l.b16 %v2166
        %v2187 = vunpack.c.l.b16 %v2167
        %v2188 = vunpack.c.l.b16 %v2168
        %v2189 = vunpack.c.l.b16 %v2169
        %v2190 = vunpack.c.l.b16 %v2170
        %v2191 = vunpack.c.l.b16 %v2171
        %v2192 = vpack.c.b16 %v2185, %v2184
        %v2193 = vpack.c.b16 %v2187, %v2186
        %v2194 = vpack.c.b16 %v2189, %v2188
        %v2195 = vpack.c.b16 %v2191, %v2190
        %v2197 = vsel %vm1474, %v2192, 0
        %v2200 = vsel %vm1474, %v2193, 0
        %v2203 = vsel %vm1474, %v2194, 0
        %v2206 = vsel %vm1474, %v2195, 0
        %2208 = vmatprep.subr.bf16.mxu0 %v2173
        %2209 = vmatpush1.bf16.msra.mxu0 %v2172
        %2210 = vmatprep.subr.bf16.mxu0 %v2175
        %2211 = vmatpush1.bf16.msra.mxu0 %v2174
        %2212 = vmatprep.subr.bf16.mxu0 0
        %2213 = vmatpush1.bf16.msra.mxu0 0
        %2214 = vmatprep.subr.bf16.mxu0 0
        %2215 = vmatpush1.bf16.msra.mxu0 0
        %2216 = vmatprep.subr.bf16.mxu0 0
        %2217 = vmatpush1.bf16.msra.mxu0 0
        %2218 = vmatprep.subr.bf16.mxu0 0
        %2219 = vmatpush1.bf16.msra.mxu0 0
        %2220 = vmatprep.subr.bf16.mxu0 0
        %2221 = vmatpush1.bf16.msra.mxu0 0
        %2222 = vmatprep.subr.bf16.mxu0 0
        %2223 = vmatpush1.bf16.msra.mxu0 0
        %2224 = vmatprep.subr.bf16.mxu0 0
        %2225 = vmatpush1.bf16.msra.mxu0 0
        %2226 = vmatprep.subr.bf16.mxu0 0
        %2227 = vmatpush1.bf16.msra.mxu0 0
        %2228 = vmatprep.subr.bf16.mxu0 0
        %2229 = vmatpush1.bf16.msra.mxu0 0
        %2230 = vmatprep.subr.bf16.mxu0 0
        %2231 = vmatpush1.bf16.msra.mxu0 0
        %2232 = vmatprep.subr.bf16.mxu0 0
        %2233 = vmatpush1.bf16.msra.mxu0 0
        %2234 = vmatprep.subr.bf16.mxu0 0
        %2235 = vmatpush1.bf16.msra.mxu0 0
        %2236 = vmatprep.subr.bf16.mxu0 0
        %2237 = vmatpush1.bf16.msra.mxu0 0
        %2238 = vmatprep.subr.bf16.mxu0 0
        %2239 = vmatpush1.bf16.msra.mxu0 0
        %2240 = vmatprep.mubr.bf16.mxu0 0
        %2241 = vmatmul.mubr.bf16.gmra.mrb[0].mxu0 %v2197
        %v2242 = vpop.f32.mrb[0].mxu0
        %v2243 = vadd.f32 0.0, %v2242
        %v2244 = vpop.f32.mrb[0].mxu0
        %v2245 = vadd.f32 0.0, %v2244
        %v2246 = vpop.f32.mrb[0].mxu0
        %v2247 = vadd.f32 0.0, %v2246
        %v2248 = vpop.f32.mrb[0].mxu0
        %v2249 = vadd.f32 0.0, %v2248
        %2250 = vmatprep.mubr.bf16.mxu0 0
        %2251 = vmatmul.mubr.bf16.gmra.mrb[0].mxu0 %v2200
        %v2252 = vpop.f32.mrb[0].mxu0
        %v2253 = vadd.f32 0.0, %v2252
        %v2254 = vpop.f32.mrb[0].mxu0
        %v2255 = vadd.f32 0.0, %v2254
        %v2256 = vpop.f32.mrb[0].mxu0
        %v2257 = vadd.f32 0.0, %v2256
        %v2258 = vpop.f32.mrb[0].mxu0
        %v2259 = vadd.f32 0.0, %v2258
        %2260 = vmatprep.mubr.bf16.mxu0 0
        %2261 = vmatmul.mubr.bf16.gmra.mrb[0].mxu0 %v2203
        %v2262 = vpop.f32.mrb[0].mxu0
        %v2263 = vadd.f32 0.0, %v2262
        %v2264 = vpop.f32.mrb[0].mxu0
        %v2265 = vadd.f32 0.0, %v2264
        %v2266 = vpop.f32.mrb[0].mxu0
        %v2267 = vadd.f32 0.0, %v2266
        %v2268 = vpop.f32.mrb[0].mxu0
        %v2269 = vadd.f32 0.0, %v2268
        %2270 = vmatprep.mubr.bf16.mxu0 0
        %2271 = vmatmul.mubr.bf16.gmra.mrb[0].mxu0 %v2206
        %v2272 = vpop.f32.mrb[0].mxu0
        %v2273 = vadd.f32 0.0, %v2272
        %v2274 = vpop.f32.mrb[0].mxu0
        %v2275 = vadd.f32 0.0, %v2274
        %v2276 = vpop.f32.mrb[0].mxu0
        %v2277 = vadd.f32 0.0, %v2276
        %v2278 = vpop.f32.mrb[0].mxu0
        %v2279 = vadd.f32 0.0, %v2278
        %2280 = vdwg.mxu0
        %v2281 = vadd.f32 %v2115, %v2243
        %v2282 = vadd.f32 %v2116, %v2245
        %v2283 = vadd.f32 %v2117, %v2247
        %v2284 = vadd.f32 %v2118, %v2249
        %v2285 = vadd.f32 %v2119, %v2253
        %v2286 = vadd.f32 %v2120, %v2255
        %v2287 = vadd.f32 %v2121, %v2257
        %v2288 = vadd.f32 %v2122, %v2259
        %v2289 = vadd.f32 %v2123, %v2263
        %v2290 = vadd.f32 %v2124, %v2265
        %v2291 = vadd.f32 %v2125, %v2267
        %v2292 = vadd.f32 %v2126, %v2269
        %v2293 = vadd.f32 %v2127, %v2273
        %v2294 = vadd.f32 %v2128, %v2275
        %v2295 = vadd.f32 %v2129, %v2277
        %v2296 = vadd.f32 %v2130, %v2279
        %2297 = vrot.lane.b32.xlu0 %v1349, 113
        %v2298 = vpop.permute.xlu0 %2297
        %2299 = vrot.lane.b32.xlu0 %v1351, 113
        %v2300 = vpop.permute.xlu0 %2299
        %2301 = vrot.lane.b32.xlu0 %v1353, 113
        %v2302 = vpop.permute.xlu0 %2301
        %2303 = vrot.lane.b32.xlu0 %v1355, 113
        %v2304 = vpop.permute.xlu0 %2303
        %2305 = vrot.lane.b32.xlu0 %v1350, 113
        %v2306 = vpop.permute.xlu0 %2305
        %2307 = vrot.lane.b32.xlu0 %v1352, 113
        %v2308 = vpop.permute.xlu0 %2307
        %2309 = vrot.lane.b32.xlu0 %v1354, 113
        %v2310 = vpop.permute.xlu0 %2309
        %2311 = vrot.lane.b32.xlu0 %v1356, 113
        %v2312 = vpop.permute.xlu0 %2311
        %v2313 = vsel %vm988, %v2298, %v2306
        %v2314 = vsel %vm988, %v2300, %v2308
        %v2315 = vsel %vm988, %v2302, %v2310
        %v2316 = vsel %vm988, %v2304, %v2312
        %v2317 = vsel %vm988, %v2306, %v2298
        %v2318 = vsel %vm988, %v2308, %v2300
        %v2319 = vsel %vm988, %v2310, %v2302
        %v2320 = vsel %vm988, %v2312, %v2304
        %v2321 = vsel %vm1002, %v2313, 0.0
        %v2322 = vsel %vm1003, %v2317, 0.0
        %v2323 = vsel %vm1002, %v2314, 0.0
        %v2324 = vsel %vm1003, %v2318, 0.0
        %v2325 = vsel %vm1002, %v2315, 0.0
        %v2326 = vsel %vm1003, %v2319, 0.0
        %v2327 = vsel %vm1002, %v2316, 0.0
        %v2328 = vsel %vm1003, %v2320, 0.0
        %s2329 = scalar_lea.vmem %s4, 192
        %v2330 = vld [vmem:[%s2329] sm:$0xf]
        %v2331 = vld [vmem:[%s2329 + $0x4] sm:$0xf]
        %v2332 = vld [vmem:[%s2329 + $0x8] sm:$0xf]
        %v2333 = vld [vmem:[%s2329 + $0xc] sm:$0xf]
        %v2334 = vld [vmem:[%s2329 + $0x10] sm:$0xf]
        %v2335 = vld [vmem:[%s2329 + $0x14] sm:$0xf]
        %v2336 = vld [vmem:[%s2329 + $0x18] sm:$0xf]
        %v2337 = vld [vmem:[%s2329 + $0x1c] sm:$0xf]
        %v2338 = vpack.c.bf16 %v2323, %v2321
        %v2339 = vpack.c.bf16 %v2324, %v2322
        %v2340 = vpack.c.bf16 %v2327, %v2325
        %v2341 = vpack.c.bf16 %v2328, %v2326
        %v2350 = vunpack.c.l.b16 %v2330
        %v2351 = vunpack.c.l.b16 %v2331
        %v2352 = vunpack.c.l.b16 %v2332
        %v2353 = vunpack.c.l.b16 %v2333
        %v2354 = vunpack.c.l.b16 %v2334
        %v2355 = vunpack.c.l.b16 %v2335
        %v2356 = vunpack.c.l.b16 %v2336
        %v2357 = vunpack.c.l.b16 %v2337
        %v2358 = vpack.c.b16 %v2351, %v2350
        %v2359 = vpack.c.b16 %v2353, %v2352
        %v2360 = vpack.c.b16 %v2355, %v2354
        %v2361 = vpack.c.b16 %v2357, %v2356
        %v2363 = vsel %vm1474, %v2358, 0
        %v2366 = vsel %vm1474, %v2359, 0
        %v2369 = vsel %vm1474, %v2360, 0
        %v2372 = vsel %vm1474, %v2361, 0
        %2374 = vmatprep.subr.bf16.mxu0 %v2339
        %2375 = vmatpush1.bf16.msra.mxu0 %v2338
        %2376 = vmatprep.subr.bf16.mxu0 %v2341
        %2377 = vmatpush1.bf16.msra.mxu0 %v2340
        %2378 = vmatprep.subr.bf16.mxu0 0
        %2379 = vmatpush1.bf16.msra.mxu0 0
        %2380 = vmatprep.subr.bf16.mxu0 0
        %2381 = vmatpush1.bf16.msra.mxu0 0
        %2382 = vmatprep.subr.bf16.mxu0 0
        %2383 = vmatpush1.bf16.msra.mxu0 0
        %2384 = vmatprep.subr.bf16.mxu0 0
        %2385 = vmatpush1.bf16.msra.mxu0 0
        %2386 = vmatprep.subr.bf16.mxu0 0
        %2387 = vmatpush1.bf16.msra.mxu0 0
        %2388 = vmatprep.subr.bf16.mxu0 0
        %2389 = vmatpush1.bf16.msra.mxu0 0
        %2390 = vmatprep.subr.bf16.mxu0 0
        %2391 = vmatpush1.bf16.msra.mxu0 0
        %2392 = vmatprep.subr.bf16.mxu0 0
        %2393 = vmatpush1.bf16.msra.mxu0 0
        %2394 = vmatprep.subr.bf16.mxu0 0
        %2395 = vmatpush1.bf16.msra.mxu0 0
        %2396 = vmatprep.subr.bf16.mxu0 0
        %2397 = vmatpush1.bf16.msra.mxu0 0
        %2398 = vmatprep.subr.bf16.mxu0 0
        %2399 = vmatpush1.bf16.msra.mxu0 0
        %2400 = vmatprep.subr.bf16.mxu0 0
        %2401 = vmatpush1.bf16.msra.mxu0 0
        %2402 = vmatprep.subr.bf16.mxu0 0
        %2403 = vmatpush1.bf16.msra.mxu0 0
        %2404 = vmatprep.subr.bf16.mxu0 0
        %2405 = vmatpush1.bf16.msra.mxu0 0
        %2406 = vmatprep.mubr.bf16.mxu0 0
        %2407 = vmatmul.mubr.bf16.gmra.mrb[0].mxu0 %v2363
        %v2408 = vpop.f32.mrb[0].mxu0
        %v2409 = vadd.f32 0.0, %v2408
        %v2410 = vpop.f32.mrb[0].mxu0
        %v2411 = vadd.f32 0.0, %v2410
        %v2412 = vpop.f32.mrb[0].mxu0
        %v2413 = vadd.f32 0.0, %v2412
        %v2414 = vpop.f32.mrb[0].mxu0
        %v2415 = vadd.f32 0.0, %v2414
        %2416 = vmatprep.mubr.bf16.mxu0 0
        %2417 = vmatmul.mubr.bf16.gmra.mrb[0].mxu0 %v2366
        %v2418 = vpop.f32.mrb[0].mxu0
        %v2419 = vadd.f32 0.0, %v2418
        %v2420 = vpop.f32.mrb[0].mxu0
        %v2421 = vadd.f32 0.0, %v2420
        %v2422 = vpop.f32.mrb[0].mxu0
        %v2423 = vadd.f32 0.0, %v2422
        %v2424 = vpop.f32.mrb[0].mxu0
        %v2425 = vadd.f32 0.0, %v2424
        %2426 = vmatprep.mubr.bf16.mxu0 0
        %2427 = vmatmul.mubr.bf16.gmra.mrb[0].mxu0 %v2369
        %v2428 = vpop.f32.mrb[0].mxu0
        %v2429 = vadd.f32 0.0, %v2428
        %v2430 = vpop.f32.mrb[0].mxu0
        %v2431 = vadd.f32 0.0, %v2430
        %v2432 = vpop.f32.mrb[0].mxu0
        %v2433 = vadd.f32 0.0, %v2432
        %v2434 = vpop.f32.mrb[0].mxu0
        %v2435 = vadd.f32 0.0, %v2434
        %2436 = vmatprep.mubr.bf16.mxu0 0
        %2437 = vmatmul.mubr.bf16.gmra.mrb[0].mxu0 %v2372
        %v2438 = vpop.f32.mrb[0].mxu0
        %v2439 = vadd.f32 0.0, %v2438
        %v2440 = vpop.f32.mrb[0].mxu0
        %v2441 = vadd.f32 0.0, %v2440
        %v2442 = vpop.f32.mrb[0].mxu0
        %v2443 = vadd.f32 0.0, %v2442
        %v2444 = vpop.f32.mrb[0].mxu0
        %v2445 = vadd.f32 0.0, %v2444
        %2446 = vdwg.mxu0
        %v2447 = vadd.f32 %v2281, %v2409
        %v2448 = vadd.f32 %v2282, %v2411
        %v2449 = vadd.f32 %v2283, %v2413
        %v2450 = vadd.f32 %v2284, %v2415
        %v2451 = vadd.f32 %v2285, %v2419
        %v2452 = vadd.f32 %v2286, %v2421
        %v2453 = vadd.f32 %v2287, %v2423
        %v2454 = vadd.f32 %v2288, %v2425
        %v2455 = vadd.f32 %v2289, %v2429
        %v2456 = vadd.f32 %v2290, %v2431
        %v2457 = vadd.f32 %v2291, %v2433
        %v2458 = vadd.f32 %v2292, %v2435
        %v2459 = vadd.f32 %v2293, %v2439
        %v2460 = vadd.f32 %v2294, %v2441
        %v2461 = vadd.f32 %v2295, %v2443
        %v2462 = vadd.f32 %v2296, %v2445
        %2463 = vrot.lane.b32.xlu0 %v1349, 112
        %v2464 = vpop.permute.xlu0 %2463
        %2465 = vrot.lane.b32.xlu0 %v1351, 112
        %v2466 = vpop.permute.xlu0 %2465
        %2467 = vrot.lane.b32.xlu0 %v1353, 112
        %v2468 = vpop.permute.xlu0 %2467
        %2469 = vrot.lane.b32.xlu0 %v1355, 112
        %v2470 = vpop.permute.xlu0 %2469
        %2471 = vrot.lane.b32.xlu0 %v1350, 112
        %v2472 = vpop.permute.xlu0 %2471
        %2473 = vrot.lane.b32.xlu0 %v1352, 112
        %v2474 = vpop.permute.xlu0 %2473
        %2475 = vrot.lane.b32.xlu0 %v1354, 112
        %v2476 = vpop.permute.xlu0 %2475
        %2477 = vrot.lane.b32.xlu0 %v1356, 112
        %v2478 = vpop.permute.xlu0 %2477
        %v2479 = vsel %vm1100, %v2464, %v2472
        %v2480 = vsel %vm1100, %v2466, %v2474
        %v2481 = vsel %vm1100, %v2468, %v2476
        %v2482 = vsel %vm1100, %v2470, %v2478
        %v2483 = vsel %vm1100, %v2472, %v2464
        %v2484 = vsel %vm1100, %v2474, %v2466
        %v2485 = vsel %vm1100, %v2476, %v2468
        %v2486 = vsel %vm1100, %v2478, %v2470
        %v2487 = vsel %vm1112, %v2479, 0.0
        %v2488 = vsel %vm1113, %v2483, 0.0
        %v2489 = vsel %vm1112, %v2480, 0.0
        %v2490 = vsel %vm1113, %v2484, 0.0
        %v2491 = vsel %vm1112, %v2481, 0.0
        %v2492 = vsel %vm1113, %v2485, 0.0
        %v2493 = vsel %vm1112, %v2482, 0.0
        %v2494 = vsel %vm1113, %v2486, 0.0
        %s2495 = scalar_lea.vmem %s4, 224
        %v2496 = vld [vmem:[%s2495] sm:$0xf]
        %v2497 = vld [vmem:[%s2495 + $0x4] sm:$0xf]
        %v2498 = vld [vmem:[%s2495 + $0x8] sm:$0xf]
        %v2499 = vld [vmem:[%s2495 + $0xc] sm:$0xf]
        %v2500 = vld [vmem:[%s2495 + $0x10] sm:$0xf]
        %v2501 = vld [vmem:[%s2495 + $0x14] sm:$0xf]
        %v2502 = vld [vmem:[%s2495 + $0x18] sm:$0xf]
        %v2503 = vld [vmem:[%s2495 + $0x1c] sm:$0xf]
        %v2504 = vpack.c.bf16 %v2489, %v2487
        %v2505 = vpack.c.bf16 %v2490, %v2488
        %v2506 = vpack.c.bf16 %v2493, %v2491
        %v2507 = vpack.c.bf16 %v2494, %v2492
        %v2516 = vunpack.c.l.b16 %v2496
        %v2517 = vunpack.c.l.b16 %v2497
        %v2518 = vunpack.c.l.b16 %v2498
        %v2519 = vunpack.c.l.b16 %v2499
        %v2520 = vunpack.c.l.b16 %v2500
        %v2521 = vunpack.c.l.b16 %v2501
        %v2522 = vunpack.c.l.b16 %v2502
        %v2523 = vunpack.c.l.b16 %v2503
        %v2524 = vpack.c.b16 %v2517, %v2516
        %v2525 = vpack.c.b16 %v2519, %v2518
        %v2526 = vpack.c.b16 %v2521, %v2520
        %v2527 = vpack.c.b16 %v2523, %v2522
        %v2529 = vsel %vm1474, %v2524, 0
        %v2532 = vsel %vm1474, %v2525, 0
        %v2535 = vsel %vm1474, %v2526, 0
        %v2538 = vsel %vm1474, %v2527, 0
        %2540 = vmatprep.subr.bf16.mxu0 %v2505
        %2541 = vmatpush1.bf16.msra.mxu0 %v2504
        %2542 = vmatprep.subr.bf16.mxu0 %v2507
        %2543 = vmatpush1.bf16.msra.mxu0 %v2506
        %2544 = vmatprep.subr.bf16.mxu0 0
        %2545 = vmatpush1.bf16.msra.mxu0 0
        %2546 = vmatprep.subr.bf16.mxu0 0
        %2547 = vmatpush1.bf16.msra.mxu0 0
        %2548 = vmatprep.subr.bf16.mxu0 0
        %2549 = vmatpush1.bf16.msra.mxu0 0
        %2550 = vmatprep.subr.bf16.mxu0 0
        %2551 = vmatpush1.bf16.msra.mxu0 0
        %2552 = vmatprep.subr.bf16.mxu0 0
        %2553 = vmatpush1.bf16.msra.mxu0 0
        %2554 = vmatprep.subr.bf16.mxu0 0
        %2555 = vmatpush1.bf16.msra.mxu0 0
        %2556 = vmatprep.subr.bf16.mxu0 0
        %2557 = vmatpush1.bf16.msra.mxu0 0
        %2558 = vmatprep.subr.bf16.mxu0 0
        %2559 = vmatpush1.bf16.msra.mxu0 0
        %2560 = vmatprep.subr.bf16.mxu0 0
        %2561 = vmatpush1.bf16.msra.mxu0 0
        %2562 = vmatprep.subr.bf16.mxu0 0
        %2563 = vmatpush1.bf16.msra.mxu0 0
        %2564 = vmatprep.subr.bf16.mxu0 0
        %2565 = vmatpush1.bf16.msra.mxu0 0
        %2566 = vmatprep.subr.bf16.mxu0 0
        %2567 = vmatpush1.bf16.msra.mxu0 0
        %2568 = vmatprep.subr.bf16.mxu0 0
        %2569 = vmatpush1.bf16.msra.mxu0 0
        %2570 = vmatprep.subr.bf16.mxu0 0
        %2571 = vmatpush1.bf16.msra.mxu0 0
        %2572 = vmatprep.mubr.bf16.mxu0 0
        %2573 = vmatmul.mubr.bf16.gmra.mrb[0].mxu0 %v2529
        %v2574 = vpop.f32.mrb[0].mxu0
        %v2575 = vadd.f32 0.0, %v2574
        %v2576 = vpop.f32.mrb[0].mxu0
        %v2577 = vadd.f32 0.0, %v2576
        %v2578 = vpop.f32.mrb[0].mxu0
        %v2579 = vadd.f32 0.0, %v2578
        %v2580 = vpop.f32.mrb[0].mxu0
        %v2581 = vadd.f32 0.0, %v2580
        %2582 = vmatprep.mubr.bf16.mxu0 0
        %2583 = vmatmul.mubr.bf16.gmra.mrb[0].mxu0 %v2532
        %v2584 = vpop.f32.mrb[0].mxu0
        %v2585 = vadd.f32 0.0, %v2584
        %v2586 = vpop.f32.mrb[0].mxu0
        %v2587 = vadd.f32 0.0, %v2586
        %v2588 = vpop.f32.mrb[0].mxu0
        %v2589 = vadd.f32 0.0, %v2588
        %v2590 = vpop.f32.mrb[0].mxu0
        %v2591 = vadd.f32 0.0, %v2590
        %2592 = vmatprep.mubr.bf16.mxu0 0
        %2593 = vmatmul.mubr.bf16.gmra.mrb[0].mxu0 %v2535
        %v2594 = vpop.f32.mrb[0].mxu0
        %v2595 = vadd.f32 0.0, %v2594
        %v2596 = vpop.f32.mrb[0].mxu0
        %v2597 = vadd.f32 0.0, %v2596
        %v2598 = vpop.f32.mrb[0].mxu0
        %v2599 = vadd.f32 0.0, %v2598
        %v2600 = vpop.f32.mrb[0].mxu0
        %v2601 = vadd.f32 0.0, %v2600
        %2602 = vmatprep.mubr.bf16.mxu0 0
        %2603 = vmatmul.mubr.bf16.gmra.mrb[0].mxu0 %v2538
        %v2604 = vpop.f32.mrb[0].mxu0
        %v2605 = vadd.f32 0.0, %v2604
        %v2606 = vpop.f32.mrb[0].mxu0
        %v2607 = vadd.f32 0.0, %v2606
        %v2608 = vpop.f32.mrb[0].mxu0
        %v2609 = vadd.f32 0.0, %v2608
        %v2610 = vpop.f32.mrb[0].mxu0
        %v2611 = vadd.f32 0.0, %v2610
        %2612 = vdwg.mxu0
        %v2613 = vadd.f32 %v2447, %v2575
        %v2614 = vadd.f32 %v2448, %v2577
        %v2615 = vadd.f32 %v2449, %v2579
        %v2616 = vadd.f32 %v2450, %v2581
        %v2617 = vadd.f32 %v2451, %v2585
        %v2618 = vadd.f32 %v2452, %v2587
        %v2619 = vadd.f32 %v2453, %v2589
        %v2620 = vadd.f32 %v2454, %v2591
        %v2621 = vadd.f32 %v2455, %v2595
        %v2622 = vadd.f32 %v2456, %v2597
        %v2623 = vadd.f32 %v2457, %v2599
        %v2624 = vadd.f32 %v2458, %v2601
        %v2625 = vadd.f32 %v2459, %v2605
        %v2626 = vadd.f32 %v2460, %v2607
        %v2627 = vadd.f32 %v2461, %v2609
        %v2628 = vadd.f32 %v2462, %v2611
        %2629 = vrot.lane.b32.xlu0 %v1349, 111
        %v2630 = vpop.permute.xlu0 %2629
        %2631 = vrot.lane.b32.xlu0 %v1351, 111
        %v2632 = vpop.permute.xlu0 %2631
        %2633 = vrot.lane.b32.xlu0 %v1353, 111
        %v2634 = vpop.permute.xlu0 %2633
        %2635 = vrot.lane.b32.xlu0 %v1355, 111
        %v2636 = vpop.permute.xlu0 %2635
        %2637 = vrot.lane.b32.xlu0 %v1350, 111
        %v2638 = vpop.permute.xlu0 %2637
        %2639 = vrot.lane.b32.xlu0 %v1352, 111
        %v2640 = vpop.permute.xlu0 %2639
        %2641 = vrot.lane.b32.xlu0 %v1354, 111
        %v2642 = vpop.permute.xlu0 %2641
        %2643 = vrot.lane.b32.xlu0 %v1356, 111
        %v2644 = vpop.permute.xlu0 %2643
        %v2645 = vsel %vm1210, %v2630, %v2638
        %v2646 = vsel %vm1210, %v2632, %v2640
        %v2647 = vsel %vm1210, %v2634, %v2642
        %v2648 = vsel %vm1210, %v2636, %v2644
        %v2649 = vsel %vm1210, %v2638, %v2630
        %v2650 = vsel %vm1210, %v2640, %v2632
        %v2651 = vsel %vm1210, %v2642, %v2634
        %v2652 = vsel %vm1210, %v2644, %v2636
        %v2653 = vsel %vm1223, %v2645, 0.0
        %v2654 = vsel %vm1224, %v2649, 0.0
        %v2655 = vsel %vm1223, %v2646, 0.0
        %v2656 = vsel %vm1224, %v2650, 0.0
        %v2657 = vsel %vm1223, %v2647, 0.0
        %v2658 = vsel %vm1224, %v2651, 0.0
        %v2659 = vsel %vm1223, %v2648, 0.0
        %v2660 = vsel %vm1224, %v2652, 0.0
        %s2661 = scalar_lea.vmem %s4, 256
        %v2662 = vld [vmem:[%s2661] sm:$0xf]
        %v2663 = vld [vmem:[%s2661 + $0x4] sm:$0xf]
        %v2664 = vld [vmem:[%s2661 + $0x8] sm:$0xf]
        %v2665 = vld [vmem:[%s2661 + $0xc] sm:$0xf]
        %v2666 = vld [vmem:[%s2661 + $0x10] sm:$0xf]
        %v2667 = vld [vmem:[%s2661 + $0x14] sm:$0xf]
        %v2668 = vld [vmem:[%s2661 + $0x18] sm:$0xf]
        %v2669 = vld [vmem:[%s2661 + $0x1c] sm:$0xf]
        %v2670 = vpack.c.bf16 %v2655, %v2653
        %v2671 = vpack.c.bf16 %v2656, %v2654
        %v2672 = vpack.c.bf16 %v2659, %v2657
        %v2673 = vpack.c.bf16 %v2660, %v2658
        %v2682 = vunpack.c.l.b16 %v2662
        %v2683 = vunpack.c.l.b16 %v2663
        %v2684 = vunpack.c.l.b16 %v2664
        %v2685 = vunpack.c.l.b16 %v2665
        %v2686 = vunpack.c.l.b16 %v2666
        %v2687 = vunpack.c.l.b16 %v2667
        %v2688 = vunpack.c.l.b16 %v2668
        %v2689 = vunpack.c.l.b16 %v2669
        %v2690 = vpack.c.b16 %v2683, %v2682
        %v2691 = vpack.c.b16 %v2685, %v2684
        %v2692 = vpack.c.b16 %v2687, %v2686
        %v2693 = vpack.c.b16 %v2689, %v2688
        %v2695 = vsel %vm1474, %v2690, 0
        %v2698 = vsel %vm1474, %v2691, 0
        %v2701 = vsel %vm1474, %v2692, 0
        %v2704 = vsel %vm1474, %v2693, 0
        %2706 = vmatprep.subr.bf16.mxu0 %v2671
        %2707 = vmatpush1.bf16.msra.mxu0 %v2670
        %2708 = vmatprep.subr.bf16.mxu0 %v2673
        %2709 = vmatpush1.bf16.msra.mxu0 %v2672
        %2710 = vmatprep.subr.bf16.mxu0 0
        %2711 = vmatpush1.bf16.msra.mxu0 0
        %2712 = vmatprep.subr.bf16.mxu0 0
        %2713 = vmatpush1.bf16.msra.mxu0 0
        %2714 = vmatprep.subr.bf16.mxu0 0
        %2715 = vmatpush1.bf16.msra.mxu0 0
        %2716 = vmatprep.subr.bf16.mxu0 0
        %2717 = vmatpush1.bf16.msra.mxu0 0
        %2718 = vmatprep.subr.bf16.mxu0 0
        %2719 = vmatpush1.bf16.msra.mxu0 0
        %2720 = vmatprep.subr.bf16.mxu0 0
        %2721 = vmatpush1.bf16.msra.mxu0 0
        %2722 = vmatprep.subr.bf16.mxu0 0
        %2723 = vmatpush1.bf16.msra.mxu0 0
        %2724 = vmatprep.subr.bf16.mxu0 0
        %2725 = vmatpush1.bf16.msra.mxu0 0
        %2726 = vmatprep.subr.bf16.mxu0 0
        %2727 = vmatpush1.bf16.msra.mxu0 0
        %2728 = vmatprep.subr.bf16.mxu0 0
        %2729 = vmatpush1.bf16.msra.mxu0 0
        %2730 = vmatprep.subr.bf16.mxu0 0
        %2731 = vmatpush1.bf16.msra.mxu0 0
        %2732 = vmatprep.subr.bf16.mxu0 0
        %2733 = vmatpush1.bf16.msra.mxu0 0
        %2734 = vmatprep.subr.bf16.mxu0 0
        %2735 = vmatpush1.bf16.msra.mxu0 0
        %2736 = vmatprep.subr.bf16.mxu0 0
        %2737 = vmatpush1.bf16.msra.mxu0 0
        %2738 = vmatprep.mubr.bf16.mxu0 0
        %2739 = vmatmul.mubr.bf16.gmra.mrb[0].mxu0 %v2695
        %v2740 = vpop.f32.mrb[0].mxu0
        %v2741 = vadd.f32 0.0, %v2740
        %v2742 = vpop.f32.mrb[0].mxu0
        %v2743 = vadd.f32 0.0, %v2742
        %v2744 = vpop.f32.mrb[0].mxu0
        %v2745 = vadd.f32 0.0, %v2744
        %v2746 = vpop.f32.mrb[0].mxu0
        %v2747 = vadd.f32 0.0, %v2746
        %2748 = vmatprep.mubr.bf16.mxu0 0
        %2749 = vmatmul.mubr.bf16.gmra.mrb[0].mxu0 %v2698
        %v2750 = vpop.f32.mrb[0].mxu0
        %v2751 = vadd.f32 0.0, %v2750
        %v2752 = vpop.f32.mrb[0].mxu0
        %v2753 = vadd.f32 0.0, %v2752
        %v2754 = vpop.f32.mrb[0].mxu0
        %v2755 = vadd.f32 0.0, %v2754
        %v2756 = vpop.f32.mrb[0].mxu0
        %v2757 = vadd.f32 0.0, %v2756
        %2758 = vmatprep.mubr.bf16.mxu0 0
        %2759 = vmatmul.mubr.bf16.gmra.mrb[0].mxu0 %v2701
        %v2760 = vpop.f32.mrb[0].mxu0
        %v2761 = vadd.f32 0.0, %v2760
        %v2762 = vpop.f32.mrb[0].mxu0
        %v2763 = vadd.f32 0.0, %v2762
        %v2764 = vpop.f32.mrb[0].mxu0
        %v2765 = vadd.f32 0.0, %v2764
        %v2766 = vpop.f32.mrb[0].mxu0
        %v2767 = vadd.f32 0.0, %v2766
        %2768 = vmatprep.mubr.bf16.mxu0 0
        %2769 = vmatmul.mubr.bf16.gmra.mrb[0].mxu0 %v2704
        %v2770 = vpop.f32.mrb[0].mxu0
        %v2771 = vadd.f32 0.0, %v2770
        %v2772 = vpop.f32.mrb[0].mxu0
        %v2773 = vadd.f32 0.0, %v2772
        %v2774 = vpop.f32.mrb[0].mxu0
        %v2775 = vadd.f32 0.0, %v2774
        %v2776 = vpop.f32.mrb[0].mxu0
        %v2777 = vadd.f32 0.0, %v2776
        %2778 = vdwg.mxu0
        %v2779 = vadd.f32 %v2613, %v2741
        %v2780 = vadd.f32 %v2614, %v2743
        %v2781 = vadd.f32 %v2615, %v2745
        %v2782 = vadd.f32 %v2616, %v2747
        %v2783 = vadd.f32 %v2617, %v2751
        %v2784 = vadd.f32 %v2618, %v2753
        %v2785 = vadd.f32 %v2619, %v2755
        %v2786 = vadd.f32 %v2620, %v2757
        %v2787 = vadd.f32 %v2621, %v2761
        %v2788 = vadd.f32 %v2622, %v2763
        %v2789 = vadd.f32 %v2623, %v2765
        %v2790 = vadd.f32 %v2624, %v2767
        %v2791 = vadd.f32 %v2625, %v2771
        %v2792 = vadd.f32 %v2626, %v2773
        %v2793 = vadd.f32 %v2627, %v2775
        %v2794 = vadd.f32 %v2628, %v2777
        %v2795 = vld [vmem:[#allocation6] sm:$0xff]
        %v2796 = vld [vmem:[#allocation6 + $0x8] sm:$0xff]
        %v2797 = vld [vmem:[#allocation6 + $0x10] sm:$0xff]
        %v2798 = vld [vmem:[#allocation6 + $0x18] sm:$0xff]
        %v2799 = vld [vmem:[#allocation6 + $0x20] sm:$0xff]
        %v2800 = vld [vmem:[#allocation6 + $0x28] sm:$0xff]
        %v2801 = vld [vmem:[#allocation6 + $0x30] sm:$0xff]
        %v2802 = vld [vmem:[#allocation6 + $0x38] sm:$0xff]
        %2804 = vset.pattern.permute.xlu0 0
        %2805 = vperm.xlu0 %2804, %v2795
        %v2806 = vpop.permute.xlu0 %2805
        %2809 = vset.pattern.permute.xlu0 0
        %2810 = vperm.xlu0 %2809, %v2796
        %v2811 = vpop.permute.xlu0 %2810
        %2814 = vset.pattern.permute.xlu0 0
        %2815 = vperm.xlu0 %2814, %v2797
        %v2816 = vpop.permute.xlu0 %2815
        %2819 = vset.pattern.permute.xlu0 0
        %2820 = vperm.xlu0 %2819, %v2798
        %v2821 = vpop.permute.xlu0 %2820
        %2824 = vset.pattern.permute.xlu0 0
        %2825 = vperm.xlu0 %2824, %v2799
        %v2826 = vpop.permute.xlu0 %2825
        %2829 = vset.pattern.permute.xlu0 0
        %2830 = vperm.xlu0 %2829, %v2800
        %v2831 = vpop.permute.xlu0 %2830
        %2834 = vset.pattern.permute.xlu0 0
        %2835 = vperm.xlu0 %2834, %v2801
        %v2836 = vpop.permute.xlu0 %2835
        %2839 = vset.pattern.permute.xlu0 0
        %2840 = vperm.xlu0 %2839, %v2802
        %v2841 = vpop.permute.xlu0 %2840
        %v2843 = vadd.f32 %v2779, %v2806
        %v2844 = vadd.f32 %v2780, %v2806
        %v2845 = vadd.f32 %v2781, %v2811
        %v2846 = vadd.f32 %v2782, %v2811
        %v2847 = vadd.f32 %v2783, %v2816
        %v2848 = vadd.f32 %v2784, %v2816
        %v2849 = vadd.f32 %v2785, %v2821
        %v2850 = vadd.f32 %v2786, %v2821
        %v2851 = vadd.f32 %v2787, %v2826
        %v2852 = vadd.f32 %v2788, %v2826
        %v2853 = vadd.f32 %v2789, %v2831
        %v2854 = vadd.f32 %v2790, %v2831
        %v2855 = vadd.f32 %v2791, %v2836
        %v2856 = vadd.f32 %v2792, %v2836
        %v2857 = vadd.f32 %v2793, %v2841
        %v2858 = vadd.f32 %v2794, %v2841
        %v2859 = vmax.f32 %v2843, 0.0
        %v2860 = vmax.f32 %v2844, 0.0
        %v2861 = vmax.f32 %v2845, 0.0
        %v2862 = vmax.f32 %v2846, 0.0
        %v2863 = vmax.f32 %v2847, 0.0
        %v2864 = vmax.f32 %v2848, 0.0
        %v2865 = vmax.f32 %v2849, 0.0
        %v2866 = vmax.f32 %v2850, 0.0
        %v2867 = vmax.f32 %v2851, 0.0
        %v2868 = vmax.f32 %v2852, 0.0
        %v2869 = vmax.f32 %v2853, 0.0
        %v2870 = vmax.f32 %v2854, 0.0
        %v2871 = vmax.f32 %v2855, 0.0
        %v2872 = vmax.f32 %v2856, 0.0
        %v2873 = vmax.f32 %v2857, 0.0
        %v2874 = vmax.f32 %v2858, 0.0
        %2875 = vst [vmem:[%s330] sm:$0xff] %v2859
        %2876 = vst [vmem:[%s330 + $0x8] sm:$0xff] %v2860
        %2877 = vst [vmem:[%s330 + $0x10] sm:$0xff] %v2861
        %2878 = vst [vmem:[%s330 + $0x18] sm:$0xff] %v2862
        %2879 = vst [vmem:[%s330 + $0x20] sm:$0xff] %v2863
        %2880 = vst [vmem:[%s330 + $0x28] sm:$0xff] %v2864
        %2881 = vst [vmem:[%s330 + $0x30] sm:$0xff] %v2865
        %2882 = vst [vmem:[%s330 + $0x38] sm:$0xff] %v2866
        %2883 = vst [vmem:[%s330 + $0x40] sm:$0xff] %v2867
        %2884 = vst [vmem:[%s330 + $0x48] sm:$0xff] %v2868
        %2885 = vst [vmem:[%s330 + $0x50] sm:$0xff] %v2869
        %2886 = vst [vmem:[%s330 + $0x58] sm:$0xff] %v2870
        %2887 = vst [vmem:[%s330 + $0x60] sm:$0xff] %v2871
        %2888 = vst [vmem:[%s330 + $0x68] sm:$0xff] %v2872
        %2889 = vst [vmem:[%s330 + $0x70] sm:$0xff] %v2873
        %2890 = vst [vmem:[%s330 + $0x78] sm:$0xff] %v2874
        %p2891 = scmp.lt.s32.totalorder %s21, 1
        %s2892 = scalar_select %p2891, %s21, 1
        %s2893 = smul.addr %s2892, 16
        %s2894 = smul.addr %s2893, 8
        %s2895 = scalar_lea.vmem %s6, %s2894
        %p2896 = scmp.lt.s32.totalorder %s21, 1
        %s2897 = scalar_select %p2896, %s21, 1
        %s2898 = smul.addr %s2897, 8
        %s2899 = smul.addr %s2898, 8
        %s2900 = scalar_lea.vmem %s7, %s2899
        // Predicated region
        $region57: #{backbone_forward.1} parent=43 // pred_check
          %p2901 = pneg %p170
        $region58: #{backbone_forward.1} parent=43 // pred_check_branch
          %2903 = sbr.rel (%p2901) target = $region60
        $region59: #{backbone_forward.1} parent=43 // pred_region
          _
        $region60: #{backbone_forward.1} parent=43 // pred_fallthru
          _
        // Predicated region
        $region61: #{backbone_forward.1} parent=43 // pred_check
          %p2904 = pneg %p196
        $region62: #{backbone_forward.1} parent=43 // pred_check_branch
          %2906 = sbr.rel (%p2904) target = $region64
        $region63: #{backbone_forward.1} parent=43 // pred_region
          _
        $region64: #{backbone_forward.1} parent=43 // pred_fallthru
          _
      $region44: #{backbone_forward.1} parent=5 // pred_fallthru
        _
      %p2907 = scmp.le.s32.totalorder 2, %s16
      // Predicated region
      $region65: #{backbone_forward.1} parent=5 // pred_check
        %p2908 = pneg %p2907
      $region66: #{backbone_forward.1} parent=5 // pred_check_branch
        %2910 = sbr.rel (%p2908) target = $region68
      $region67: #{backbone_forward.1} parent=5 // pred_region
        %s2911 = ssub.s32 %s16, 2
        // Predicated region
        $region69: #{backbone_forward.1} parent=67 // pred_check
          %p2912 = pneg %p176
        $region70: #{backbone_forward.1} parent=67 // pred_check_branch
          %2914 = sbr.rel (%p2912) target = $region72
        $region71: #{backbone_forward.1} parent=67 // pred_region
          %p2915 = scmp.lt.s32.totalorder %s22, 1
          %s2916 = scalar_select %p2915, %s22, 1
          %s2917 = smul.addr %s2916, 16
          %s2918 = smul.addr %s2917, 8
          %s2919 = scalar_lea.vmem %s6, %s2918
        $region72: #{backbone_forward.1} parent=67 // pred_fallthru
          _
        // Predicated region
        $region73: #{backbone_forward.1} parent=67 // pred_check
          %p2920 = pneg %p202
        $region74: #{backbone_forward.1} parent=67 // pred_check_branch
          %2922 = sbr.rel (%p2920) target = $region76
        $region75: #{backbone_forward.1} parent=67 // pred_region
          %p2923 = scmp.lt.s32.totalorder %s22, 1
          %s2924 = scalar_select %p2923, %s22, 1
          %s2925 = smul.addr %s2924, 8
          %s2926 = smul.addr %s2925, 8
          %s2927 = scalar_lea.vmem %s7, %s2926
        $region76: #{backbone_forward.1} parent=67 // pred_fallthru
          _
      $region68: #{backbone_forward.1} parent=5 // pred_fallthru
        _
    $region6: #{backbone_forward.1} parent=1 // loop_footer
      %s20 = sadd.s32 1, %s16
    $region7: #{backbone_forward.1} parent=1 // loop_footer_branch
      %15 = sbr.rel target = $region3
    $region8: #{backbone_forward.1} parent=1 // loop_exit
      _
    %2928 = vsyncpa [#allocation3], 1
    %s2929 = scalar_lea.sflag [#allocation3], 1
    %2930 = vsyncpa %s2929, 1
    %2931 = vsyncpa [#allocation5], 1

</llo_original>
